<compile_context>
chip_gen: v7x
topology: tpu7x:2x2x1
jax: 0.10.0
libtpu: 0.0.40
codegen_flags: <defaults>
</compile_context>

<pallas_src>
import functools

import jax
import jax.numpy as jnp
from jax.experimental import pallas as pl
from jax.experimental.pallas import tpu as pltpu

LN_EPS = 1e-12   # BERT LayerNorm eps
LANE = 128       # lane-padded logits slab width


# ----------------------------- kernel helpers -----------------------------

def _layernorm(x, g, b):
    mu = jnp.mean(x, axis=-1, keepdims=True)
    var = jnp.mean((x - mu) ** 2, axis=-1, keepdims=True)
    return (x - mu) * jax.lax.rsqrt(var + LN_EPS) * g + b


# ------------------------------ fused kernel -------------------------------

def fused_forward_kernel(S, H, num_heads, num_layers,
                         emb_ref, maskb_ref, embg_ref, embb_ref,
                         wqkv_ref, bqkv_ref, wo_ref, bo_ref,
                         ln1g_ref, ln1b_ref,
                         w1_ref, b1_ref, w2_ref, b2_ref,
                         ln2g_ref, ln2b_ref,
                         clsw_ref, clsb_ref,
                         logits_ref):
    """One sequence per grid step: embed-LN -> L encoder layers -> CLS head."""
    f32, bf16 = jnp.float32, jnp.bfloat16
    hd = H // num_heads
    scale = 1.0 / (hd ** 0.5)

    # Embedding LayerNorm in f32; per-program activation is a (S, H) 2-D tile.
    x = _layernorm(emb_ref[...].astype(f32), embg_ref[...], embb_ref[...])

    # Hoist the additive-mask broadcast out of all loops (JAX does not CSE
    # broadcast_in_dim); reused by every layer.  (nh, S_q, S_k), f32.
    mbias = jnp.broadcast_to(maskb_ref[...].astype(f32), (num_heads, S, S))

    for l in range(num_layers):                 # static unroll, L is small
        # ---- fused QKV projection: one (S,H)@(H,3H) bf16 MXU matmul ----
        qkv = (jnp.dot(x.astype(bf16), wqkv_ref[l],
                       preferred_element_type=f32) + bqkv_ref[l])   # (S,3H) f32

        # ---- head-batched attention (no per-head Python loop) ----
        q = jnp.transpose(qkv[:, 0 * H:1 * H].reshape(S, num_heads, hd), (1, 0, 2))
        k = jnp.transpose(qkv[:, 1 * H:2 * H].reshape(S, num_heads, hd), (1, 0, 2))
        v = jnp.transpose(qkv[:, 2 * H:3 * H].reshape(S, num_heads, hd), (1, 0, 2))

        s = jnp.einsum('hqd,hkd->hqk', q.astype(bf16), k.astype(bf16),
                       preferred_element_type=f32) * scale
        s = s + mbias                            # mask bias applied in f32
        m = jnp.max(s, axis=-1, keepdims=True)   # max-subtract in f32
        e = jnp.exp(s - m)
        p = e / jnp.sum(e, axis=-1, keepdims=True)   # exact divide (torch parity)

        ctx = jnp.einsum('hqk,hkd->hqd', p.astype(bf16), v.astype(bf16),
                         preferred_element_type=f32)            # (nh, S, hd)
        ctx = jnp.transpose(ctx, (1, 0, 2)).reshape(S, H)       # head-major concat
        attn = (jnp.dot(ctx.astype(bf16), wo_ref[l],
                        preferred_element_type=f32) + bo_ref[l])
        x1 = _layernorm(attn + x, ln1g_ref[l], ln1b_ref[l])

        # ---- FFN ----
        # TODO(synk): HF/torch BERT use exact erf GELU; tanh approximation used
        # here (guaranteed Mosaic lowering), ~1e-3 numerical divergence.
        hmid = jax.nn.gelu(
            jnp.dot(x1.astype(bf16), w1_ref[l],
                    preferred_element_type=f32) + b1_ref[l],
            approximate=True)
        ffn = (jnp.dot(hmid.astype(bf16), w2_ref[l],
                       preferred_element_type=f32) + b2_ref[l])
        x = _layernorm(ffn + x1, ln2g_ref[l], ln2b_ref[l])

    # ---- classifier on CLS token (dropout(0.1) is identity at inference) ----
    cls = x[0:1, :]                                             # (1, H)
    logits_ref[...] = (jnp.dot(cls.astype(bf16), clsw_ref[...],
                               preferred_element_type=f32)
                       + clsb_ref[...]).astype(logits_ref.dtype)


# ------------------------------ parameter init ------------------------------

def init_params(key, *, vocab, max_pos, hidden, intermediate,
                num_layers, num_labels):
    def nrm(k, shape, scale=0.02):
        return scale * jax.random.normal(k, shape, dtype=jnp.float32)

    H, I, L = hidden, intermediate, num_layers
    ks = jax.random.split(key, 8)
    return {
        'word_emb': nrm(ks[0], (vocab, H)),
        'pos_emb':  nrm(ks[1], (max_pos, H)),
        'type_emb': nrm(ks[2], (2, H)),
        'emb_ln_g': jnp.ones((1, H), jnp.float32),
        'emb_ln_b': jnp.zeros((1, H), jnp.float32),
        # per-layer weights stacked along a leading L axis (fused QKV)
        'wqkv': nrm(ks[3], (L, H, 3 * H)),
        'bqkv': jnp.zeros((L, 1, 3 * H), jnp.float32),
        'wo':   nrm(ks[4], (L, H, H)),
        'bo':   jnp.zeros((L, 1, H), jnp.float32),
        'ln1_g': jnp.ones((L, 1, H), jnp.float32),
        'ln1_b': jnp.zeros((L, 1, H), jnp.float32),
        'w1':   nrm(ks[5], (L, H, I)),
        'b1':   jnp.zeros((L, 1, I), jnp.float32),
        'w2':   nrm(ks[6], (L, I, H)),
        'b2':   jnp.zeros((L, 1, H), jnp.float32),
        'ln2_g': jnp.ones((L, 1, H), jnp.float32),
        'ln2_b': jnp.zeros((L, 1, H), jnp.float32),
        'cls_w': nrm(ks[7], (H, num_labels)),
        'cls_b': jnp.zeros((1, num_labels), jnp.float32),
    }


# --------------------------------- forward ----------------------------------

def topic_detection_forward(params, input_ids, attention_mask, *, num_heads):
    B, S = input_ids.shape
    H = params['word_emb'].shape[1]
    L = params['wqkv'].shape[0]
    num_labels = params['cls_w'].shape[1]
    bf16 = jnp.bfloat16

    # Embedding gather + sum is data-dependent -> stays in JAX glue (XLA).
    # TODO(synk): at scale, move in-kernel via PrefetchScalarGridSpec(input_ids
    # in SMEM) to avoid the extra HBM hop of the activation.
    emb = (jnp.take(params['word_emb'], input_ids, axis=0)
           + params['pos_emb'][:S][None, :, :]
           + params['type_emb'][0][None, None, :])             # (B, S, H) f32

    # BERT additive attention mask: 0 where attended, -1e9 where padded; (B,1,S).
    maskb = ((1.0 - attention_mask.astype(jnp.float32)) * -1e9)[:, None, :]

    # bf16 MXU operands (weights); LayerNorm / softmax / bias math stays f32.
    wqkv = params['wqkv'].astype(bf16)
    wo = params['wo'].astype(bf16)
    w1 = params['w1'].astype(bf16)
    w2 = params['w2'].astype(bf16)
    # Lane-dense (H, 128) classifier slab -> unmasked vector stores.
    clsw = jnp.zeros((H, LANE), bf16).at[:, :num_labels].set(
        params['cls_w'].astype(bf16))
    clsb = jnp.zeros((1, LANE), jnp.float32).at[:, :num_labels].set(
        params['cls_b'])

    args = (emb, maskb, params['emb_ln_g'], params['emb_ln_b'],
            wqkv, params['bqkv'], wo, params['bo'],
            params['ln1_g'], params['ln1_b'],
            w1, params['b1'], w2, params['b2'],
            params['ln2_g'], params['ln2_b'],
            clsw, clsb)

    def replicated(a):  # full-array block, constant (not re-fetched) across grid
        if a.ndim == 2:
            return pl.BlockSpec(a.shape, lambda b: (0, 0))
        return pl.BlockSpec(a.shape, lambda b: (0, 0, 0))

    in_specs = ([pl.BlockSpec((None, S, H), lambda b: (b, 0, 0)),   # per-seq embeddings
                 pl.BlockSpec((None, 1, S), lambda b: (b, 0, 0))]   # per-seq mask
                + [replicated(a) for a in args[2:]])

    kernel = functools.partial(fused_forward_kernel, S, H, num_heads, L)

    # Grid over the batch: one sequence per program.  "parallel" lets v7x shard
    # across its 2 TensorCores; v5e/v6e run it as a cheap sequential loop.
    # TODO(synk): at real BERT size, make L a grid axis ("arbitrary") with
    # per-layer weight BlockSpecs so layer l+1 weight DMA overlaps layer l compute.
    out = pl.pallas_call(
        kernel,
        out_shape=jax.ShapeDtypeStruct((B, 1, LANE), jnp.float32),
        grid=(B,),
        in_specs=in_specs,
        out_specs=pl.BlockSpec((None, 1, LANE), lambda b: (b, 0, 0)),
        compiler_params=pltpu.CompilerParams(
            dimension_semantics=("parallel",),
            vmem_limit_bytes=32 * 1024 * 1024),
    )(*args)
    return out[:, 0, :num_labels]


# ----------------------------------- main ------------------------------------

if __name__ == "__main__":
    B, S = 2, 8
    HIDDEN, HEADS, INTER = 32, 4, 64
    LAYERS, VOCAB, MAX_POS, NUM_LABELS = 2, 50, 16, 2

    key = jax.random.PRNGKey(0)
    k_params, k_ids = jax.random.split(key)

    params = init_params(k_params, vocab=VOCAB, max_pos=MAX_POS, hidden=HIDDEN,
                         intermediate=INTER, num_layers=LAYERS,
                         num_labels=NUM_LABELS)

    input_ids = jax.random.randint(k_ids, (B, S), 0, VOCAB, dtype=jnp.int32)
    attention_mask = jnp.ones((B, S), jnp.int32).at[1, 6:].set(0)  # pad tail of sample 1

    fwd = jax.jit(functools.partial(topic_detection_forward, num_heads=HEADS))
    logits = fwd(params, input_ids, attention_mask)
    jax.block_until_ready(logits)
    assert logits.shape == (B, NUM_LABELS)
    print("KERNEL_OK")
</pallas_src>

<mosaic_0001>
module attributes {stable_mosaic.version = 11 : i64} {
  func.func @fused_forward_kernel(%arg0: i32, %arg1: memref<1x8x32xf32, #tpu.memory_space<vmem>>, %arg2: memref<1x1x8xf32, #tpu.memory_space<vmem>>, %arg3: memref<1x32xf32, #tpu.memory_space<vmem>>, %arg4: memref<1x32xf32, #tpu.memory_space<vmem>>, %arg5: memref<2x32x96xbf16, #tpu.memory_space<vmem>>, %arg6: memref<2x1x96xf32, #tpu.memory_space<vmem>>, %arg7: memref<2x32x32xbf16, #tpu.memory_space<vmem>>, %arg8: memref<2x1x32xf32, #tpu.memory_space<vmem>>, %arg9: memref<2x1x32xf32, #tpu.memory_space<vmem>>, %arg10: memref<2x1x32xf32, #tpu.memory_space<vmem>>, %arg11: memref<2x32x64xbf16, #tpu.memory_space<vmem>>, %arg12: memref<2x1x64xf32, #tpu.memory_space<vmem>>, %arg13: memref<2x64x32xbf16, #tpu.memory_space<vmem>>, %arg14: memref<2x1x32xf32, #tpu.memory_space<vmem>>, %arg15: memref<2x1x32xf32, #tpu.memory_space<vmem>>, %arg16: memref<2x1x32xf32, #tpu.memory_space<vmem>>, %arg17: memref<32x128xbf16, #tpu.memory_space<vmem>>, %arg18: memref<1x128xf32, #tpu.memory_space<vmem>>, %arg19: memref<1x1x128xf32, #tpu.memory_space<vmem>>) attributes {dimension_semantics = [#tpu.dimension_semantics<parallel>], iteration_bounds = array<i64: 2>, scalar_prefetch = 0 : i64, scratch_operands = 0 : i64, tpu.core_type = #tpu.core_type<tc>, window_params = [{transform_indices = @transform_0, window_bounds = array<i64: 1, 8, 32>}, {transform_indices = @transform_1, window_bounds = array<i64: 1, 1, 8>}, {pipeline_mode = #tpu.pipeline_mode<synchronous>, transform_indices = @transform_2, window_bounds = array<i64: 1, 32>}, {pipeline_mode = #tpu.pipeline_mode<synchronous>, transform_indices = @transform_3, window_bounds = array<i64: 1, 32>}, {pipeline_mode = #tpu.pipeline_mode<synchronous>, transform_indices = @transform_4, window_bounds = array<i64: 2, 32, 96>}, {pipeline_mode = #tpu.pipeline_mode<synchronous>, transform_indices = @transform_5, window_bounds = array<i64: 2, 1, 96>}, {pipeline_mode = #tpu.pipeline_mode<synchronous>, transform_indices = @transform_6, window_bounds = array<i64: 2, 32, 32>}, {pipeline_mode = #tpu.pipeline_mode<synchronous>, transform_indices = @transform_7, window_bounds = array<i64: 2, 1, 32>}, {pipeline_mode = #tpu.pipeline_mode<synchronous>, transform_indices = @transform_8, window_bounds = array<i64: 2, 1, 32>}, {pipeline_mode = #tpu.pipeline_mode<synchronous>, transform_indices = @transform_9, window_bounds = array<i64: 2, 1, 32>}, {pipeline_mode = #tpu.pipeline_mode<synchronous>, transform_indices = @transform_10, window_bounds = array<i64: 2, 32, 64>}, {pipeline_mode = #tpu.pipeline_mode<synchronous>, transform_indices = @transform_11, window_bounds = array<i64: 2, 1, 64>}, {pipeline_mode = #tpu.pipeline_mode<synchronous>, transform_indices = @transform_12, window_bounds = array<i64: 2, 64, 32>}, {pipeline_mode = #tpu.pipeline_mode<synchronous>, transform_indices = @transform_13, window_bounds = array<i64: 2, 1, 32>}, {pipeline_mode = #tpu.pipeline_mode<synchronous>, transform_indices = @transform_14, window_bounds = array<i64: 2, 1, 32>}, {pipeline_mode = #tpu.pipeline_mode<synchronous>, transform_indices = @transform_15, window_bounds = array<i64: 2, 1, 32>}, {pipeline_mode = #tpu.pipeline_mode<synchronous>, transform_indices = @transform_16, window_bounds = array<i64: 32, 128>}, {pipeline_mode = #tpu.pipeline_mode<synchronous>, transform_indices = @transform_17, window_bounds = array<i64: 1, 128>}, {transform_indices = @transform_18, window_bounds = array<i64: 1, 1, 128>}]} {
    %c0 = arith.constant 0 : index
    %c0_0 = arith.constant 0 : index
    %c0_1 = arith.constant 0 : index
    %0 = vector.load %arg1[%c0, %c0_0, %c0_1] : memref<1x8x32xf32, #tpu.memory_space<vmem>>, vector<1x8x32xf32>
    %1 = vector.shape_cast %0 : vector<1x8x32xf32> to vector<8x32xf32>
    %c0_2 = arith.constant 0 : index
    %c0_3 = arith.constant 0 : index
    %2 = vector.load %arg3[%c0_2, %c0_3] : memref<1x32xf32, #tpu.memory_space<vmem>>, vector<1x32xf32>
    %c0_4 = arith.constant 0 : index
    %c0_5 = arith.constant 0 : index
    %3 = vector.load %arg4[%c0_4, %c0_5] : memref<1x32xf32, #tpu.memory_space<vmem>>, vector<1x32xf32>
    %cst = arith.constant dense<0.000000e+00> : vector<8xf32>
    %4 = vector.multi_reduction <add>, %1, %cst [1] : vector<8x32xf32> to vector<8xf32>
    %5 = vector.shape_cast %4 : vector<8xf32> to vector<8x1xf32>
    %cst_6 = arith.constant 3.200000e+01 : f32
    %6 = vector.broadcast %cst_6 : f32 to vector<8x1xf32>
    %7 = arith.divf %5, %6 : vector<8x1xf32>
    %8 = vector.broadcast %7 : vector<8x1xf32> to vector<8x32xf32>
    %9 = arith.subf %1, %8 : vector<8x32xf32>
    %10 = arith.mulf %9, %9 : vector<8x32xf32>
    %cst_7 = arith.constant dense<0.000000e+00> : vector<8xf32>
    %11 = vector.multi_reduction <add>, %10, %cst_7 [1] : vector<8x32xf32> to vector<8xf32>
    %12 = vector.shape_cast %11 : vector<8xf32> to vector<8x1xf32>
    %cst_8 = arith.constant 3.200000e+01 : f32
    %13 = vector.broadcast %cst_8 : f32 to vector<8x1xf32>
    %14 = arith.divf %12, %13 : vector<8x1xf32>
    %15 = vector.broadcast %7 : vector<8x1xf32> to vector<8x32xf32>
    %16 = arith.subf %1, %15 : vector<8x32xf32>
    %cst_9 = arith.constant 9.99999996E-13 : f32
    %17 = vector.broadcast %cst_9 : f32 to vector<8x1xf32>
    %18 = arith.addf %14, %17 : vector<8x1xf32>
    %19 = math.rsqrt %18 : vector<8x1xf32>
    %20 = vector.broadcast %19 : vector<8x1xf32> to vector<8x32xf32>
    %21 = arith.mulf %16, %20 : vector<8x32xf32>
    %22 = vector.broadcast %2 : vector<1x32xf32> to vector<8x32xf32>
    %23 = arith.mulf %21, %22 : vector<8x32xf32>
    %24 = vector.broadcast %3 : vector<1x32xf32> to vector<8x32xf32>
    %25 = arith.addf %23, %24 : vector<8x32xf32>
    %c0_10 = arith.constant 0 : index
    %c0_11 = arith.constant 0 : index
    %c0_12 = arith.constant 0 : index
    %26 = vector.load %arg2[%c0_10, %c0_11, %c0_12] : memref<1x1x8xf32, #tpu.memory_space<vmem>>, vector<1x1x8xf32>
    %27 = vector.shape_cast %26 : vector<1x1x8xf32> to vector<1x8xf32>
    %28 = vector.shape_cast %27 : vector<1x8xf32> to vector<1x1x8xf32>
    %29 = vector.broadcast %28 : vector<1x1x8xf32> to vector<4x8x8xf32>
    %30 = arith.truncf %25 : vector<8x32xf32> to vector<8x32xbf16>
    %c0_13 = arith.constant 0 : index
    %c0_14 = arith.constant 0 : index
    %c0_15 = arith.constant 0 : index
    %31 = vector.load %arg5[%c0_13, %c0_14, %c0_15] : memref<2x32x96xbf16, #tpu.memory_space<vmem>>, vector<1x32x96xbf16>
    %32 = vector.shape_cast %31 : vector<1x32x96xbf16> to vector<32x96xbf16>
    %cst_16 = arith.constant dense<0.000000e+00> : vector<8x96xf32>
    %33 = tpu.matmul %30, %32, %cst_16 {dimension_numbers = #tpu.dot_dimension_numbers<[1], [0], [0], [1], [0, 0, 1, 1], [], []>} : vector<8x32xbf16>, vector<32x96xbf16>, vector<8x96xf32> -> vector<8x96xf32>
    %c0_17 = arith.constant 0 : index
    %c0_18 = arith.constant 0 : index
    %c0_19 = arith.constant 0 : index
    %34 = vector.load %arg6[%c0_17, %c0_18, %c0_19] : memref<2x1x96xf32, #tpu.memory_space<vmem>>, vector<1x1x96xf32>
    %35 = vector.shape_cast %34 : vector<1x1x96xf32> to vector<1x96xf32>
    %36 = vector.broadcast %35 : vector<1x96xf32> to vector<8x96xf32>
    %37 = arith.addf %33, %36 : vector<8x96xf32>
    %38 = vector.extract_strided_slice %37 {offsets = [0, 0], sizes = [8, 32], strides = [1, 1]} : vector<8x96xf32> to vector<8x32xf32>
    %39 = vector.shape_cast %38 : vector<8x32xf32> to vector<8x4x8xf32>
    %40 = tpu.transpose %39, [1, 0, 2] : vector<8x4x8xf32> -> vector<4x8x8xf32>
    %41 = vector.extract_strided_slice %37 {offsets = [0, 32], sizes = [8, 32], strides = [1, 1]} : vector<8x96xf32> to vector<8x32xf32>
    %42 = vector.shape_cast %41 : vector<8x32xf32> to vector<8x4x8xf32>
    %43 = tpu.transpose %42, [1, 0, 2] : vector<8x4x8xf32> -> vector<4x8x8xf32>
    %44 = vector.extract_strided_slice %37 {offsets = [0, 64], sizes = [8, 32], strides = [1, 1]} : vector<8x96xf32> to vector<8x32xf32>
    %45 = vector.shape_cast %44 : vector<8x32xf32> to vector<8x4x8xf32>
    %46 = tpu.transpose %45, [1, 0, 2] : vector<8x4x8xf32> -> vector<4x8x8xf32>
    %47 = arith.truncf %40 : vector<4x8x8xf32> to vector<4x8x8xbf16>
    %48 = arith.truncf %43 : vector<4x8x8xf32> to vector<4x8x8xbf16>
    "tpu.trace_start"() <{level = 10 : i32, message = "hqd,hkd->hqk"}> : () -> ()
    %cst_20 = arith.constant dense<0.000000e+00> : vector<4x8x8xf32>
    %49 = tpu.matmul %47, %48, %cst_20 {dimension_numbers = #tpu.dot_dimension_numbers<[2], [2], [1], [1], [0, 0, 0, 1, 1, 1], [0], [0]>} : vector<4x8x8xbf16>, vector<4x8x8xbf16>, vector<4x8x8xf32> -> vector<4x8x8xf32>
    "tpu.trace_stop"() : () -> ()
    %cst_21 = arith.constant 0.353553385 : f32
    %50 = vector.broadcast %cst_21 : f32 to vector<4x8x8xf32>
    %51 = arith.mulf %49, %50 : vector<4x8x8xf32>
    %52 = arith.addf %51, %29 : vector<4x8x8xf32>
    %cst_22 = arith.constant dense<0xFF800000> : vector<4x8xf32>
    %53 = vector.multi_reduction <maximumf>, %52, %cst_22 [2] : vector<4x8x8xf32> to vector<4x8xf32>
    %54 = vector.shape_cast %53 : vector<4x8xf32> to vector<4x8x1xf32>
    %55 = vector.broadcast %54 : vector<4x8x1xf32> to vector<4x8x8xf32>
    %56 = arith.subf %52, %55 : vector<4x8x8xf32>
    %57 = math.exp %56 : vector<4x8x8xf32>
    %cst_23 = arith.constant dense<0.000000e+00> : vector<4x8xf32>
    %58 = vector.multi_reduction <add>, %57, %cst_23 [2] : vector<4x8x8xf32> to vector<4x8xf32>
    %59 = vector.shape_cast %58 : vector<4x8xf32> to vector<4x8x1xf32>
    %60 = vector.broadcast %59 : vector<4x8x1xf32> to vector<4x8x8xf32>
    %61 = arith.divf %57, %60 : vector<4x8x8xf32>
    %62 = arith.truncf %61 : vector<4x8x8xf32> to vector<4x8x8xbf16>
    %63 = arith.truncf %46 : vector<4x8x8xf32> to vector<4x8x8xbf16>
    "tpu.trace_start"() <{level = 10 : i32, message = "hqk,hkd->hqd"}> : () -> ()
    %cst_24 = arith.constant dense<0.000000e+00> : vector<4x8x8xf32>
    %64 = tpu.matmul %62, %63, %cst_24 {dimension_numbers = #tpu.dot_dimension_numbers<[2], [1], [1], [2], [0, 0, 0, 1, 1, 2], [0], [0]>} : vector<4x8x8xbf16>, vector<4x8x8xbf16>, vector<4x8x8xf32> -> vector<4x8x8xf32>
    "tpu.trace_stop"() : () -> ()
    %65 = tpu.transpose %64, [1, 0, 2] : vector<4x8x8xf32> -> vector<8x4x8xf32>
    %66 = vector.shape_cast %65 : vector<8x4x8xf32> to vector<8x32xf32>
    %67 = arith.truncf %66 : vector<8x32xf32> to vector<8x32xbf16>
    %c0_25 = arith.constant 0 : index
    %c0_26 = arith.constant 0 : index
    %c0_27 = arith.constant 0 : index
    %68 = vector.load %arg7[%c0_25, %c0_26, %c0_27] : memref<2x32x32xbf16, #tpu.memory_space<vmem>>, vector<1x32x32xbf16>
    %69 = vector.shape_cast %68 : vector<1x32x32xbf16> to vector<32x32xbf16>
    %cst_28 = arith.constant dense<0.000000e+00> : vector<8x32xf32>
    %70 = tpu.matmul %67, %69, %cst_28 {dimension_numbers = #tpu.dot_dimension_numbers<[1], [0], [0], [1], [0, 0, 1, 1], [], []>} : vector<8x32xbf16>, vector<32x32xbf16>, vector<8x32xf32> -> vector<8x32xf32>
    %c0_29 = arith.constant 0 : index
    %c0_30 = arith.constant 0 : index
    %c0_31 = arith.constant 0 : index
    %71 = vector.load %arg8[%c0_29, %c0_30, %c0_31] : memref<2x1x32xf32, #tpu.memory_space<vmem>>, vector<1x1x32xf32>
    %72 = vector.shape_cast %71 : vector<1x1x32xf32> to vector<1x32xf32>
    %73 = vector.broadcast %72 : vector<1x32xf32> to vector<8x32xf32>
    %74 = arith.addf %70, %73 : vector<8x32xf32>
    %75 = arith.addf %74, %25 : vector<8x32xf32>
    %c0_32 = arith.constant 0 : index
    %c0_33 = arith.constant 0 : index
    %c0_34 = arith.constant 0 : index
    %76 = vector.load %arg9[%c0_32, %c0_33, %c0_34] : memref<2x1x32xf32, #tpu.memory_space<vmem>>, vector<1x1x32xf32>
    %77 = vector.shape_cast %76 : vector<1x1x32xf32> to vector<1x32xf32>
    %c0_35 = arith.constant 0 : index
    %c0_36 = arith.constant 0 : index
    %c0_37 = arith.constant 0 : index
    %78 = vector.load %arg10[%c0_35, %c0_36, %c0_37] : memref<2x1x32xf32, #tpu.memory_space<vmem>>, vector<1x1x32xf32>
    %79 = vector.shape_cast %78 : vector<1x1x32xf32> to vector<1x32xf32>
    %cst_38 = arith.constant dense<0.000000e+00> : vector<8xf32>
    %80 = vector.multi_reduction <add>, %75, %cst_38 [1] : vector<8x32xf32> to vector<8xf32>
    %81 = vector.shape_cast %80 : vector<8xf32> to vector<8x1xf32>
    %cst_39 = arith.constant 3.200000e+01 : f32
    %82 = vector.broadcast %cst_39 : f32 to vector<8x1xf32>
    %83 = arith.divf %81, %82 : vector<8x1xf32>
    %84 = vector.broadcast %83 : vector<8x1xf32> to vector<8x32xf32>
    %85 = arith.subf %75, %84 : vector<8x32xf32>
    %86 = arith.mulf %85, %85 : vector<8x32xf32>
    %cst_40 = arith.constant dense<0.000000e+00> : vector<8xf32>
    %87 = vector.multi_reduction <add>, %86, %cst_40 [1] : vector<8x32xf32> to vector<8xf32>
    %88 = vector.shape_cast %87 : vector<8xf32> to vector<8x1xf32>
    %cst_41 = arith.constant 3.200000e+01 : f32
    %89 = vector.broadcast %cst_41 : f32 to vector<8x1xf32>
    %90 = arith.divf %88, %89 : vector<8x1xf32>
    %91 = vector.broadcast %83 : vector<8x1xf32> to vector<8x32xf32>
    %92 = arith.subf %75, %91 : vector<8x32xf32>
    %cst_42 = arith.constant 9.99999996E-13 : f32
    %93 = vector.broadcast %cst_42 : f32 to vector<8x1xf32>
    %94 = arith.addf %90, %93 : vector<8x1xf32>
    %95 = math.rsqrt %94 : vector<8x1xf32>
    %96 = vector.broadcast %95 : vector<8x1xf32> to vector<8x32xf32>
    %97 = arith.mulf %92, %96 : vector<8x32xf32>
    %98 = vector.broadcast %77 : vector<1x32xf32> to vector<8x32xf32>
    %99 = arith.mulf %97, %98 : vector<8x32xf32>
    %100 = vector.broadcast %79 : vector<1x32xf32> to vector<8x32xf32>
    %101 = arith.addf %99, %100 : vector<8x32xf32>
    %102 = arith.truncf %101 : vector<8x32xf32> to vector<8x32xbf16>
    %c0_43 = arith.constant 0 : index
    %c0_44 = arith.constant 0 : index
    %c0_45 = arith.constant 0 : index
    %103 = vector.load %arg11[%c0_43, %c0_44, %c0_45] : memref<2x32x64xbf16, #tpu.memory_space<vmem>>, vector<1x32x64xbf16>
    %104 = vector.shape_cast %103 : vector<1x32x64xbf16> to vector<32x64xbf16>
    %cst_46 = arith.constant dense<0.000000e+00> : vector<8x64xf32>
    %105 = tpu.matmul %102, %104, %cst_46 {dimension_numbers = #tpu.dot_dimension_numbers<[1], [0], [0], [1], [0, 0, 1, 1], [], []>} : vector<8x32xbf16>, vector<32x64xbf16>, vector<8x64xf32> -> vector<8x64xf32>
    %c0_47 = arith.constant 0 : index
    %c0_48 = arith.constant 0 : index
    %c0_49 = arith.constant 0 : index
    %106 = vector.load %arg12[%c0_47, %c0_48, %c0_49] : memref<2x1x64xf32, #tpu.memory_space<vmem>>, vector<1x1x64xf32>
    %107 = vector.shape_cast %106 : vector<1x1x64xf32> to vector<1x64xf32>
    %108 = vector.broadcast %107 : vector<1x64xf32> to vector<8x64xf32>
    %109 = arith.addf %105, %108 : vector<8x64xf32>
    %110 = arith.mulf %109, %109 : vector<8x64xf32>
    %111 = arith.mulf %109, %110 : vector<8x64xf32>
    %cst_50 = arith.constant 4.471500e-02 : f32
    %112 = vector.broadcast %cst_50 : f32 to vector<8x64xf32>
    %113 = arith.mulf %112, %111 : vector<8x64xf32>
    %114 = arith.addf %109, %113 : vector<8x64xf32>
    %cst_51 = arith.constant 0.797884583 : f32
    %115 = vector.broadcast %cst_51 : f32 to vector<8x64xf32>
    %116 = arith.mulf %115, %114 : vector<8x64xf32>
    %117 = math.tanh %116 : vector<8x64xf32>
    %cst_52 = arith.constant 1.000000e+00 : f32
    %118 = vector.broadcast %cst_52 : f32 to vector<8x64xf32>
    %119 = arith.addf %118, %117 : vector<8x64xf32>
    %cst_53 = arith.constant 5.000000e-01 : f32
    %120 = vector.broadcast %cst_53 : f32 to vector<8x64xf32>
    %121 = arith.mulf %120, %119 : vector<8x64xf32>
    %122 = arith.mulf %109, %121 : vector<8x64xf32>
    %123 = arith.truncf %122 : vector<8x64xf32> to vector<8x64xbf16>
    %c0_54 = arith.constant 0 : index
    %c0_55 = arith.constant 0 : index
    %c0_56 = arith.constant 0 : index
    %124 = vector.load %arg13[%c0_54, %c0_55, %c0_56] : memref<2x64x32xbf16, #tpu.memory_space<vmem>>, vector<1x64x32xbf16>
    %125 = vector.shape_cast %124 : vector<1x64x32xbf16> to vector<64x32xbf16>
    %cst_57 = arith.constant dense<0.000000e+00> : vector<8x32xf32>
    %126 = tpu.matmul %123, %125, %cst_57 {dimension_numbers = #tpu.dot_dimension_numbers<[1], [0], [0], [1], [0, 0, 1, 1], [], []>} : vector<8x64xbf16>, vector<64x32xbf16>, vector<8x32xf32> -> vector<8x32xf32>
    %c0_58 = arith.constant 0 : index
    %c0_59 = arith.constant 0 : index
    %c0_60 = arith.constant 0 : index
    %127 = vector.load %arg14[%c0_58, %c0_59, %c0_60] : memref<2x1x32xf32, #tpu.memory_space<vmem>>, vector<1x1x32xf32>
    %128 = vector.shape_cast %127 : vector<1x1x32xf32> to vector<1x32xf32>
    %129 = vector.broadcast %128 : vector<1x32xf32> to vector<8x32xf32>
    %130 = arith.addf %126, %129 : vector<8x32xf32>
    %131 = arith.addf %130, %101 : vector<8x32xf32>
    %c0_61 = arith.constant 0 : index
    %c0_62 = arith.constant 0 : index
    %c0_63 = arith.constant 0 : index
    %132 = vector.load %arg15[%c0_61, %c0_62, %c0_63] : memref<2x1x32xf32, #tpu.memory_space<vmem>>, vector<1x1x32xf32>
    %133 = vector.shape_cast %132 : vector<1x1x32xf32> to vector<1x32xf32>
    %c0_64 = arith.constant 0 : index
    %c0_65 = arith.constant 0 : index
    %c0_66 = arith.constant 0 : index
    %134 = vector.load %arg16[%c0_64, %c0_65, %c0_66] : memref<2x1x32xf32, #tpu.memory_space<vmem>>, vector<1x1x32xf32>
    %135 = vector.shape_cast %134 : vector<1x1x32xf32> to vector<1x32xf32>
    %cst_67 = arith.constant dense<0.000000e+00> : vector<8xf32>
    %136 = vector.multi_reduction <add>, %131, %cst_67 [1] : vector<8x32xf32> to vector<8xf32>
    %137 = vector.shape_cast %136 : vector<8xf32> to vector<8x1xf32>
    %cst_68 = arith.constant 3.200000e+01 : f32
    %138 = vector.broadcast %cst_68 : f32 to vector<8x1xf32>
    %139 = arith.divf %137, %138 : vector<8x1xf32>
    %140 = vector.broadcast %139 : vector<8x1xf32> to vector<8x32xf32>
    %141 = arith.subf %131, %140 : vector<8x32xf32>
    %142 = arith.mulf %141, %141 : vector<8x32xf32>
    %cst_69 = arith.constant dense<0.000000e+00> : vector<8xf32>
    %143 = vector.multi_reduction <add>, %142, %cst_69 [1] : vector<8x32xf32> to vector<8xf32>
    %144 = vector.shape_cast %143 : vector<8xf32> to vector<8x1xf32>
    %cst_70 = arith.constant 3.200000e+01 : f32
    %145 = vector.broadcast %cst_70 : f32 to vector<8x1xf32>
    %146 = arith.divf %144, %145 : vector<8x1xf32>
    %147 = vector.broadcast %139 : vector<8x1xf32> to vector<8x32xf32>
    %148 = arith.subf %131, %147 : vector<8x32xf32>
    %cst_71 = arith.constant 9.99999996E-13 : f32
    %149 = vector.broadcast %cst_71 : f32 to vector<8x1xf32>
    %150 = arith.addf %146, %149 : vector<8x1xf32>
    %151 = math.rsqrt %150 : vector<8x1xf32>
    %152 = vector.broadcast %151 : vector<8x1xf32> to vector<8x32xf32>
    %153 = arith.mulf %148, %152 : vector<8x32xf32>
    %154 = vector.broadcast %133 : vector<1x32xf32> to vector<8x32xf32>
    %155 = arith.mulf %153, %154 : vector<8x32xf32>
    %156 = vector.broadcast %135 : vector<1x32xf32> to vector<8x32xf32>
    %157 = arith.addf %155, %156 : vector<8x32xf32>
    %158 = arith.truncf %157 : vector<8x32xf32> to vector<8x32xbf16>
    %c1 = arith.constant 1 : index
    %c0_72 = arith.constant 0 : index
    %c0_73 = arith.constant 0 : index
    %159 = vector.load %arg5[%c1, %c0_72, %c0_73] : memref<2x32x96xbf16, #tpu.memory_space<vmem>>, vector<1x32x96xbf16>
    %160 = vector.shape_cast %159 : vector<1x32x96xbf16> to vector<32x96xbf16>
    %cst_74 = arith.constant dense<0.000000e+00> : vector<8x96xf32>
    %161 = tpu.matmul %158, %160, %cst_74 {dimension_numbers = #tpu.dot_dimension_numbers<[1], [0], [0], [1], [0, 0, 1, 1], [], []>} : vector<8x32xbf16>, vector<32x96xbf16>, vector<8x96xf32> -> vector<8x96xf32>
    %c1_75 = arith.constant 1 : index
    %c0_76 = arith.constant 0 : index
    %c0_77 = arith.constant 0 : index
    %162 = vector.load %arg6[%c1_75, %c0_76, %c0_77] : memref<2x1x96xf32, #tpu.memory_space<vmem>>, vector<1x1x96xf32>
    %163 = vector.shape_cast %162 : vector<1x1x96xf32> to vector<1x96xf32>
    %164 = vector.broadcast %163 : vector<1x96xf32> to vector<8x96xf32>
    %165 = arith.addf %161, %164 : vector<8x96xf32>
    %166 = vector.extract_strided_slice %165 {offsets = [0, 0], sizes = [8, 32], strides = [1, 1]} : vector<8x96xf32> to vector<8x32xf32>
    %167 = vector.shape_cast %166 : vector<8x32xf32> to vector<8x4x8xf32>
    %168 = tpu.transpose %167, [1, 0, 2] : vector<8x4x8xf32> -> vector<4x8x8xf32>
    %169 = vector.extract_strided_slice %165 {offsets = [0, 32], sizes = [8, 32], strides = [1, 1]} : vector<8x96xf32> to vector<8x32xf32>
    %170 = vector.shape_cast %169 : vector<8x32xf32> to vector<8x4x8xf32>
    %171 = tpu.transpose %170, [1, 0, 2] : vector<8x4x8xf32> -> vector<4x8x8xf32>
    %172 = vector.extract_strided_slice %165 {offsets = [0, 64], sizes = [8, 32], strides = [1, 1]} : vector<8x96xf32> to vector<8x32xf32>
    %173 = vector.shape_cast %172 : vector<8x32xf32> to vector<8x4x8xf32>
    %174 = tpu.transpose %173, [1, 0, 2] : vector<8x4x8xf32> -> vector<4x8x8xf32>
    %175 = arith.truncf %168 : vector<4x8x8xf32> to vector<4x8x8xbf16>
    %176 = arith.truncf %171 : vector<4x8x8xf32> to vector<4x8x8xbf16>
    "tpu.trace_start"() <{level = 10 : i32, message = "hqd,hkd->hqk"}> : () -> ()
    %cst_78 = arith.constant dense<0.000000e+00> : vector<4x8x8xf32>
    %177 = tpu.matmul %175, %176, %cst_78 {dimension_numbers = #tpu.dot_dimension_numbers<[2], [2], [1], [1], [0, 0, 0, 1, 1, 1], [0], [0]>} : vector<4x8x8xbf16>, vector<4x8x8xbf16>, vector<4x8x8xf32> -> vector<4x8x8xf32>
    "tpu.trace_stop"() : () -> ()
    %cst_79 = arith.constant 0.353553385 : f32
    %178 = vector.broadcast %cst_79 : f32 to vector<4x8x8xf32>
    %179 = arith.mulf %177, %178 : vector<4x8x8xf32>
    %180 = arith.addf %179, %29 : vector<4x8x8xf32>
    %cst_80 = arith.constant dense<0xFF800000> : vector<4x8xf32>
    %181 = vector.multi_reduction <maximumf>, %180, %cst_80 [2] : vector<4x8x8xf32> to vector<4x8xf32>
    %182 = vector.shape_cast %181 : vector<4x8xf32> to vector<4x8x1xf32>
    %183 = vector.broadcast %182 : vector<4x8x1xf32> to vector<4x8x8xf32>
    %184 = arith.subf %180, %183 : vector<4x8x8xf32>
    %185 = math.exp %184 : vector<4x8x8xf32>
    %cst_81 = arith.constant dense<0.000000e+00> : vector<4x8xf32>
    %186 = vector.multi_reduction <add>, %185, %cst_81 [2] : vector<4x8x8xf32> to vector<4x8xf32>
    %187 = vector.shape_cast %186 : vector<4x8xf32> to vector<4x8x1xf32>
    %188 = vector.broadcast %187 : vector<4x8x1xf32> to vector<4x8x8xf32>
    %189 = arith.divf %185, %188 : vector<4x8x8xf32>
    %190 = arith.truncf %189 : vector<4x8x8xf32> to vector<4x8x8xbf16>
    %191 = arith.truncf %174 : vector<4x8x8xf32> to vector<4x8x8xbf16>
    "tpu.trace_start"() <{level = 10 : i32, message = "hqk,hkd->hqd"}> : () -> ()
    %cst_82 = arith.constant dense<0.000000e+00> : vector<4x8x8xf32>
    %192 = tpu.matmul %190, %191, %cst_82 {dimension_numbers = #tpu.dot_dimension_numbers<[2], [1], [1], [2], [0, 0, 0, 1, 1, 2], [0], [0]>} : vector<4x8x8xbf16>, vector<4x8x8xbf16>, vector<4x8x8xf32> -> vector<4x8x8xf32>
    "tpu.trace_stop"() : () -> ()
    %193 = tpu.transpose %192, [1, 0, 2] : vector<4x8x8xf32> -> vector<8x4x8xf32>
    %194 = vector.shape_cast %193 : vector<8x4x8xf32> to vector<8x32xf32>
    %195 = arith.truncf %194 : vector<8x32xf32> to vector<8x32xbf16>
    %c1_83 = arith.constant 1 : index
    %c0_84 = arith.constant 0 : index
    %c0_85 = arith.constant 0 : index
    %196 = vector.load %arg7[%c1_83, %c0_84, %c0_85] : memref<2x32x32xbf16, #tpu.memory_space<vmem>>, vector<1x32x32xbf16>
    %197 = vector.shape_cast %196 : vector<1x32x32xbf16> to vector<32x32xbf16>
    %cst_86 = arith.constant dense<0.000000e+00> : vector<8x32xf32>
    %198 = tpu.matmul %195, %197, %cst_86 {dimension_numbers = #tpu.dot_dimension_numbers<[1], [0], [0], [1], [0, 0, 1, 1], [], []>} : vector<8x32xbf16>, vector<32x32xbf16>, vector<8x32xf32> -> vector<8x32xf32>
    %c1_87 = arith.constant 1 : index
    %c0_88 = arith.constant 0 : index
    %c0_89 = arith.constant 0 : index
    %199 = vector.load %arg8[%c1_87, %c0_88, %c0_89] : memref<2x1x32xf32, #tpu.memory_space<vmem>>, vector<1x1x32xf32>
    %200 = vector.shape_cast %199 : vector<1x1x32xf32> to vector<1x32xf32>
    %201 = vector.broadcast %200 : vector<1x32xf32> to vector<8x32xf32>
    %202 = arith.addf %198, %201 : vector<8x32xf32>
    %203 = arith.addf %202, %157 : vector<8x32xf32>
    %c1_90 = arith.constant 1 : index
    %c0_91 = arith.constant 0 : index
    %c0_92 = arith.constant 0 : index
    %204 = vector.load %arg9[%c1_90, %c0_91, %c0_92] : memref<2x1x32xf32, #tpu.memory_space<vmem>>, vector<1x1x32xf32>
    %205 = vector.shape_cast %204 : vector<1x1x32xf32> to vector<1x32xf32>
    %c1_93 = arith.constant 1 : index
    %c0_94 = arith.constant 0 : index
    %c0_95 = arith.constant 0 : index
    %206 = vector.load %arg10[%c1_93, %c0_94, %c0_95] : memref<2x1x32xf32, #tpu.memory_space<vmem>>, vector<1x1x32xf32>
    %207 = vector.shape_cast %206 : vector<1x1x32xf32> to vector<1x32xf32>
    %cst_96 = arith.constant dense<0.000000e+00> : vector<8xf32>
    %208 = vector.multi_reduction <add>, %203, %cst_96 [1] : vector<8x32xf32> to vector<8xf32>
    %209 = vector.shape_cast %208 : vector<8xf32> to vector<8x1xf32>
    %cst_97 = arith.constant 3.200000e+01 : f32
    %210 = vector.broadcast %cst_97 : f32 to vector<8x1xf32>
    %211 = arith.divf %209, %210 : vector<8x1xf32>
    %212 = vector.broadcast %211 : vector<8x1xf32> to vector<8x32xf32>
    %213 = arith.subf %203, %212 : vector<8x32xf32>
    %214 = arith.mulf %213, %213 : vector<8x32xf32>
    %cst_98 = arith.constant dense<0.000000e+00> : vector<8xf32>
    %215 = vector.multi_reduction <add>, %214, %cst_98 [1] : vector<8x32xf32> to vector<8xf32>
    %216 = vector.shape_cast %215 : vector<8xf32> to vector<8x1xf32>
    %cst_99 = arith.constant 3.200000e+01 : f32
    %217 = vector.broadcast %cst_99 : f32 to vector<8x1xf32>
    %218 = arith.divf %216, %217 : vector<8x1xf32>
    %219 = vector.broadcast %211 : vector<8x1xf32> to vector<8x32xf32>
    %220 = arith.subf %203, %219 : vector<8x32xf32>
    %cst_100 = arith.constant 9.99999996E-13 : f32
    %221 = vector.broadcast %cst_100 : f32 to vector<8x1xf32>
    %222 = arith.addf %218, %221 : vector<8x1xf32>
    %223 = math.rsqrt %222 : vector<8x1xf32>
    %224 = vector.broadcast %223 : vector<8x1xf32> to vector<8x32xf32>
    %225 = arith.mulf %220, %224 : vector<8x32xf32>
    %226 = vector.broadcast %205 : vector<1x32xf32> to vector<8x32xf32>
    %227 = arith.mulf %225, %226 : vector<8x32xf32>
    %228 = vector.broadcast %207 : vector<1x32xf32> to vector<8x32xf32>
    %229 = arith.addf %227, %228 : vector<8x32xf32>
    %230 = arith.truncf %229 : vector<8x32xf32> to vector<8x32xbf16>
    %c1_101 = arith.constant 1 : index
    %c0_102 = arith.constant 0 : index
    %c0_103 = arith.constant 0 : index
    %231 = vector.load %arg11[%c1_101, %c0_102, %c0_103] : memref<2x32x64xbf16, #tpu.memory_space<vmem>>, vector<1x32x64xbf16>
    %232 = vector.shape_cast %231 : vector<1x32x64xbf16> to vector<32x64xbf16>
    %cst_104 = arith.constant dense<0.000000e+00> : vector<8x64xf32>
    %233 = tpu.matmul %230, %232, %cst_104 {dimension_numbers = #tpu.dot_dimension_numbers<[1], [0], [0], [1], [0, 0, 1, 1], [], []>} : vector<8x32xbf16>, vector<32x64xbf16>, vector<8x64xf32> -> vector<8x64xf32>
    %c1_105 = arith.constant 1 : index
    %c0_106 = arith.constant 0 : index
    %c0_107 = arith.constant 0 : index
    %234 = vector.load %arg12[%c1_105, %c0_106, %c0_107] : memref<2x1x64xf32, #tpu.memory_space<vmem>>, vector<1x1x64xf32>
    %235 = vector.shape_cast %234 : vector<1x1x64xf32> to vector<1x64xf32>
    %236 = vector.broadcast %235 : vector<1x64xf32> to vector<8x64xf32>
    %237 = arith.addf %233, %236 : vector<8x64xf32>
    %238 = arith.mulf %237, %237 : vector<8x64xf32>
    %239 = arith.mulf %237, %238 : vector<8x64xf32>
    %cst_108 = arith.constant 4.471500e-02 : f32
    %240 = vector.broadcast %cst_108 : f32 to vector<8x64xf32>
    %241 = arith.mulf %240, %239 : vector<8x64xf32>
    %242 = arith.addf %237, %241 : vector<8x64xf32>
    %cst_109 = arith.constant 0.797884583 : f32
    %243 = vector.broadcast %cst_109 : f32 to vector<8x64xf32>
    %244 = arith.mulf %243, %242 : vector<8x64xf32>
    %245 = math.tanh %244 : vector<8x64xf32>
    %cst_110 = arith.constant 1.000000e+00 : f32
    %246 = vector.broadcast %cst_110 : f32 to vector<8x64xf32>
    %247 = arith.addf %246, %245 : vector<8x64xf32>
    %cst_111 = arith.constant 5.000000e-01 : f32
    %248 = vector.broadcast %cst_111 : f32 to vector<8x64xf32>
    %249 = arith.mulf %248, %247 : vector<8x64xf32>
    %250 = arith.mulf %237, %249 : vector<8x64xf32>
    %251 = arith.truncf %250 : vector<8x64xf32> to vector<8x64xbf16>
    %c1_112 = arith.constant 1 : index
    %c0_113 = arith.constant 0 : index
    %c0_114 = arith.constant 0 : index
    %252 = vector.load %arg13[%c1_112, %c0_113, %c0_114] : memref<2x64x32xbf16, #tpu.memory_space<vmem>>, vector<1x64x32xbf16>
    %253 = vector.shape_cast %252 : vector<1x64x32xbf16> to vector<64x32xbf16>
    %cst_115 = arith.constant dense<0.000000e+00> : vector<8x32xf32>
    %254 = tpu.matmul %251, %253, %cst_115 {dimension_numbers = #tpu.dot_dimension_numbers<[1], [0], [0], [1], [0, 0, 1, 1], [], []>} : vector<8x64xbf16>, vector<64x32xbf16>, vector<8x32xf32> -> vector<8x32xf32>
    %c1_116 = arith.constant 1 : index
    %c0_117 = arith.constant 0 : index
    %c0_118 = arith.constant 0 : index
    %255 = vector.load %arg14[%c1_116, %c0_117, %c0_118] : memref<2x1x32xf32, #tpu.memory_space<vmem>>, vector<1x1x32xf32>
    %256 = vector.shape_cast %255 : vector<1x1x32xf32> to vector<1x32xf32>
    %257 = vector.broadcast %256 : vector<1x32xf32> to vector<8x32xf32>
    %258 = arith.addf %254, %257 : vector<8x32xf32>
    %259 = arith.addf %258, %229 : vector<8x32xf32>
    %c1_119 = arith.constant 1 : index
    %c0_120 = arith.constant 0 : index
    %c0_121 = arith.constant 0 : index
    %260 = vector.load %arg15[%c1_119, %c0_120, %c0_121] : memref<2x1x32xf32, #tpu.memory_space<vmem>>, vector<1x1x32xf32>
    %261 = vector.shape_cast %260 : vector<1x1x32xf32> to vector<1x32xf32>
    %c1_122 = arith.constant 1 : index
    %c0_123 = arith.constant 0 : index
    %c0_124 = arith.constant 0 : index
    %262 = vector.load %arg16[%c1_122, %c0_123, %c0_124] : memref<2x1x32xf32, #tpu.memory_space<vmem>>, vector<1x1x32xf32>
    %263 = vector.shape_cast %262 : vector<1x1x32xf32> to vector<1x32xf32>
    %cst_125 = arith.constant dense<0.000000e+00> : vector<8xf32>
    %264 = vector.multi_reduction <add>, %259, %cst_125 [1] : vector<8x32xf32> to vector<8xf32>
    %265 = vector.shape_cast %264 : vector<8xf32> to vector<8x1xf32>
    %cst_126 = arith.constant 3.200000e+01 : f32
    %266 = vector.broadcast %cst_126 : f32 to vector<8x1xf32>
    %267 = arith.divf %265, %266 : vector<8x1xf32>
    %268 = vector.broadcast %267 : vector<8x1xf32> to vector<8x32xf32>
    %269 = arith.subf %259, %268 : vector<8x32xf32>
    %270 = arith.mulf %269, %269 : vector<8x32xf32>
    %cst_127 = arith.constant dense<0.000000e+00> : vector<8xf32>
    %271 = vector.multi_reduction <add>, %270, %cst_127 [1] : vector<8x32xf32> to vector<8xf32>
    %272 = vector.shape_cast %271 : vector<8xf32> to vector<8x1xf32>
    %cst_128 = arith.constant 3.200000e+01 : f32
    %273 = vector.broadcast %cst_128 : f32 to vector<8x1xf32>
    %274 = arith.divf %272, %273 : vector<8x1xf32>
    %275 = vector.broadcast %267 : vector<8x1xf32> to vector<8x32xf32>
    %276 = arith.subf %259, %275 : vector<8x32xf32>
    %cst_129 = arith.constant 9.99999996E-13 : f32
    %277 = vector.broadcast %cst_129 : f32 to vector<8x1xf32>
    %278 = arith.addf %274, %277 : vector<8x1xf32>
    %279 = math.rsqrt %278 : vector<8x1xf32>
    %280 = vector.broadcast %279 : vector<8x1xf32> to vector<8x32xf32>
    %281 = arith.mulf %276, %280 : vector<8x32xf32>
    %282 = vector.broadcast %261 : vector<1x32xf32> to vector<8x32xf32>
    %283 = arith.mulf %281, %282 : vector<8x32xf32>
    %284 = vector.broadcast %263 : vector<1x32xf32> to vector<8x32xf32>
    %285 = arith.addf %283, %284 : vector<8x32xf32>
    %286 = vector.extract_strided_slice %285 {offsets = [0, 0], sizes = [1, 32], strides = [1, 1]} : vector<8x32xf32> to vector<1x32xf32>
    %287 = arith.truncf %286 : vector<1x32xf32> to vector<1x32xbf16>
    %c0_130 = arith.constant 0 : index
    %c0_131 = arith.constant 0 : index
    %288 = vector.load %arg17[%c0_130, %c0_131] : memref<32x128xbf16, #tpu.memory_space<vmem>>, vector<32x128xbf16>
    %cst_132 = arith.constant dense<0.000000e+00> : vector<1x128xf32>
    %289 = tpu.matmul %287, %288, %cst_132 {dimension_numbers = #tpu.dot_dimension_numbers<[1], [0], [0], [1], [0, 0, 1, 1], [], []>} : vector<1x32xbf16>, vector<32x128xbf16>, vector<1x128xf32> -> vector<1x128xf32>
    %c0_133 = arith.constant 0 : index
    %c0_134 = arith.constant 0 : index
    %290 = vector.load %arg18[%c0_133, %c0_134] : memref<1x128xf32, #tpu.memory_space<vmem>>, vector<1x128xf32>
    %291 = arith.addf %289, %290 : vector<1x128xf32>
    %c0_135 = arith.constant 0 : index
    %c0_136 = arith.constant 0 : index
    %c0_137 = arith.constant 0 : index
    %292 = vector.load %arg19[%c0_135, %c0_136, %c0_137] : memref<1x1x128xf32, #tpu.memory_space<vmem>>, vector<1x1x128xf32>
    %293 = vector.shape_cast %292 : vector<1x1x128xf32> to vector<1x128xf32>
    %294 = vector.shape_cast %291 : vector<1x128xf32> to vector<1x1x128xf32>
    tpu.vector_store %arg19[%c0_135, %c0_136, %c0_137], %294 {strides = array<i32>} : memref<1x1x128xf32, #tpu.memory_space<vmem>>, vector<1x1x128xf32>,
    return
  }
  func.func @transform_0(%arg0: i32) -> (i32, i32, i32) {
    %c0_i32 = arith.constant 0 : i32
    %c0_i32_0 = arith.constant 0 : i32
    %c0_i32_1 = arith.constant 0 : i32
    return %arg0, %c0_i32, %c0_i32_0 : i32, i32, i32
  }
  func.func @transform_1(%arg0: i32) -> (i32, i32, i32) {
    %c0_i32 = arith.constant 0 : i32
    %c0_i32_0 = arith.constant 0 : i32
    %c0_i32_1 = arith.constant 0 : i32
    return %arg0, %c0_i32, %c0_i32_0 : i32, i32, i32
  }
  func.func @transform_2(%arg0: i32) -> (i32, i32) {
    %c0_i32 = arith.constant 0 : i32
    %c0_i32_0 = arith.constant 0 : i32
    %c0_i32_1 = arith.constant 0 : i32
    return %c0_i32, %c0_i32_0 : i32, i32
  }
  func.func @transform_3(%arg0: i32) -> (i32, i32) {
    %c0_i32 = arith.constant 0 : i32
    %c0_i32_0 = arith.constant 0 : i32
    %c0_i32_1 = arith.constant 0 : i32
    return %c0_i32, %c0_i32_0 : i32, i32
  }
  func.func @transform_4(%arg0: i32) -> (i32, i32, i32) {
    %c0_i32 = arith.constant 0 : i32
    %c0_i32_0 = arith.constant 0 : i32
    %c0_i32_1 = arith.constant 0 : i32
    %c0_i32_2 = arith.constant 0 : i32
    return %c0_i32, %c0_i32_0, %c0_i32_1 : i32, i32, i32
  }
  func.func @transform_5(%arg0: i32) -> (i32, i32, i32) {
    %c0_i32 = arith.constant 0 : i32
    %c0_i32_0 = arith.constant 0 : i32
    %c0_i32_1 = arith.constant 0 : i32
    %c0_i32_2 = arith.constant 0 : i32
    return %c0_i32, %c0_i32_0, %c0_i32_1 : i32, i32, i32
  }
  func.func @transform_6(%arg0: i32) -> (i32, i32, i32) {
    %c0_i32 = arith.constant 0 : i32
    %c0_i32_0 = arith.constant 0 : i32
    %c0_i32_1 = arith.constant 0 : i32
    %c0_i32_2 = arith.constant 0 : i32
    return %c0_i32, %c0_i32_0, %c0_i32_1 : i32, i32, i32
  }
  func.func @transform_7(%arg0: i32) -> (i32, i32, i32) {
    %c0_i32 = arith.constant 0 : i32
    %c0_i32_0 = arith.constant 0 : i32
    %c0_i32_1 = arith.constant 0 : i32
    %c0_i32_2 = arith.constant 0 : i32
    return %c0_i32, %c0_i32_0, %c0_i32_1 : i32, i32, i32
  }
  func.func @transform_8(%arg0: i32) -> (i32, i32, i32) {
    %c0_i32 = arith.constant 0 : i32
    %c0_i32_0 = arith.constant 0 : i32
    %c0_i32_1 = arith.constant 0 : i32
    %c0_i32_2 = arith.constant 0 : i32
    return %c0_i32, %c0_i32_0, %c0_i32_1 : i32, i32, i32
  }
  func.func @transform_9(%arg0: i32) -> (i32, i32, i32) {
    %c0_i32 = arith.constant 0 : i32
    %c0_i32_0 = arith.constant 0 : i32
    %c0_i32_1 = arith.constant 0 : i32
    %c0_i32_2 = arith.constant 0 : i32
    return %c0_i32, %c0_i32_0, %c0_i32_1 : i32, i32, i32
  }
  func.func @transform_10(%arg0: i32) -> (i32, i32, i32) {
    %c0_i32 = arith.constant 0 : i32
    %c0_i32_0 = arith.constant 0 : i32
    %c0_i32_1 = arith.constant 0 : i32
    %c0_i32_2 = arith.constant 0 : i32
    return %c0_i32, %c0_i32_0, %c0_i32_1 : i32, i32, i32
  }
  func.func @transform_11(%arg0: i32) -> (i32, i32, i32) {
    %c0_i32 = arith.constant 0 : i32
    %c0_i32_0 = arith.constant 0 : i32
    %c0_i32_1 = arith.constant 0 : i32
    %c0_i32_2 = arith.constant 0 : i32
    return %c0_i32, %c0_i32_0, %c0_i32_1 : i32, i32, i32
  }
  func.func @transform_12(%arg0: i32) -> (i32, i32, i32) {
    %c0_i32 = arith.constant 0 : i32
    %c0_i32_0 = arith.constant 0 : i32
    %c0_i32_1 = arith.constant 0 : i32
    %c0_i32_2 = arith.constant 0 : i32
    return %c0_i32, %c0_i32_0, %c0_i32_1 : i32, i32, i32
  }
  func.func @transform_13(%arg0: i32) -> (i32, i32, i32) {
    %c0_i32 = arith.constant 0 : i32
    %c0_i32_0 = arith.constant 0 : i32
    %c0_i32_1 = arith.constant 0 : i32
    %c0_i32_2 = arith.constant 0 : i32
    return %c0_i32, %c0_i32_0, %c0_i32_1 : i32, i32, i32
  }
  func.func @transform_14(%arg0: i32) -> (i32, i32, i32) {
    %c0_i32 = arith.constant 0 : i32
    %c0_i32_0 = arith.constant 0 : i32
    %c0_i32_1 = arith.constant 0 : i32
    %c0_i32_2 = arith.constant 0 : i32
    return %c0_i32, %c0_i32_0, %c0_i32_1 : i32, i32, i32
  }
  func.func @transform_15(%arg0: i32) -> (i32, i32, i32) {
    %c0_i32 = arith.constant 0 : i32
    %c0_i32_0 = arith.constant 0 : i32
    %c0_i32_1 = arith.constant 0 : i32
    %c0_i32_2 = arith.constant 0 : i32
    return %c0_i32, %c0_i32_0, %c0_i32_1 : i32, i32, i32
  }
  func.func @transform_16(%arg0: i32) -> (i32, i32) {
    %c0_i32 = arith.constant 0 : i32
    %c0_i32_0 = arith.constant 0 : i32
    %c0_i32_1 = arith.constant 0 : i32
    return %c0_i32, %c0_i32_0 : i32, i32
  }
  func.func @transform_17(%arg0: i32) -> (i32, i32) {
    %c0_i32 = arith.constant 0 : i32
    %c0_i32_0 = arith.constant 0 : i32
    %c0_i32_1 = arith.constant 0 : i32
    return %c0_i32, %c0_i32_0 : i32, i32
  }
  func.func @transform_18(%arg0: i32) -> (i32, i32, i32) {
    %c0_i32 = arith.constant 0 : i32
    %c0_i32_0 = arith.constant 0 : i32
    %c0_i32_1 = arith.constant 0 : i32
    return %arg0, %c0_i32, %c0_i32_0 : i32, i32, i32
  }
}

</mosaic_0001>

<llo_original>
// kernel: topic_detection_forward.1
$region0: #{topic_detection_forward.1}
  #allocation0 [shape = 'u32[]', space=smem, size = 0x4, offset = 0x4, fixed_abs, tag = 'smem constant byte address 0x4 - core index']
  #allocation1 [shape = 'u32[144,128]{1,0:T(1,128)}', space=vmem, size = 0x12000, scoped, tag = 'internal scratch']
  %s0 = inlined_call_operand.vmem [shape: f32[2,8,32], index: 0, kind: input, shape index: {}]
  %s1 = inlined_call_operand.vmem [shape: f32[2,1,8], index: 1, kind: input, shape index: {}]
  %s2 = inlined_call_operand.vmem [shape: f32[1,32], index: 2, kind: input, shape index: {}]
  %s3 = inlined_call_operand.vmem [shape: f32[1,32], index: 3, kind: input, shape index: {}]
  %s4 = inlined_call_operand.vmem [shape: bf16[2,32,96], index: 4, kind: input, shape index: {}]
  %s5 = inlined_call_operand.vmem [shape: f32[2,1,96], index: 5, kind: input, shape index: {}]
  %s6 = inlined_call_operand.vmem [shape: bf16[2,32,32], index: 6, kind: input, shape index: {}]
  %s7 = inlined_call_operand.vmem [shape: f32[2,1,32], index: 7, kind: input, shape index: {}]
  %s8 = inlined_call_operand.vmem [shape: f32[2,1,32], index: 8, kind: input, shape index: {}]
  %s9 = inlined_call_operand.vmem [shape: f32[2,1,32], index: 9, kind: input, shape index: {}]
  %s10 = inlined_call_operand.vmem [shape: bf16[2,32,64], index: 10, kind: input, shape index: {}]
  %s11 = inlined_call_operand.vmem [shape: f32[2,1,64], index: 11, kind: input, shape index: {}]
  %s12 = inlined_call_operand.vmem [shape: bf16[2,64,32], index: 12, kind: input, shape index: {}]
  %s13 = inlined_call_operand.vmem [shape: f32[2,1,32], index: 13, kind: input, shape index: {}]
  %s14 = inlined_call_operand.vmem [shape: f32[2,1,32], index: 14, kind: input, shape index: {}]
  %s15 = inlined_call_operand.vmem [shape: f32[2,1,32], index: 15, kind: input, shape index: {}]
  %s16 = inlined_call_operand.vmem [shape: bf16[32,128], index: 16, kind: input, shape index: {}]
  %s17 = inlined_call_operand.vmem [shape: f32[1,128], index: 17, kind: input, shape index: {}]
  %s18 = inlined_call_operand.hbm [shape: f32[2,1,128], index: 18, kind: output, shape index: {}]
  %s19 = sld [smem:[#allocation0]]
  $region105: #{topic_detection_forward.1} parent=0
    _
  %s21 = ssub.s32 1, %s19
  %s22 = scalar_select 0, %s21, %s19
  $region1: #{topic_detection_forward.1} parent=0
    #allocation2 [shape = 'u8[1024]{0}', space=vmem, size = 0x400, scoped, tag = 'output window, operand 0']
    #allocation3 [shape = 's32[2]{0}', space=sflag, size = 0x8, scoped, tag = 'scoped memory for topic_detection_forward.1']
    %23 = vsyncpa [#allocation3], 0
    %s24 = scalar_lea.sflag [#allocation3], 1
    %25 = vsyncpa %s24, 0
    loop: start=0, step=1, limit=4
    $region2: #{topic_detection_forward.1} parent=1 // loop_pre_header
      _
    $region3: #{topic_detection_forward.1} parent=1 // loop_header
      %s27 = sphi 0, %s31
      %p28 = scmp.ge.s32.totalorder %s27, 4
      %s37 = sphi 0, %s39
      %s40 = sphi 0, %s37
      %s41 = sphi 0, %s40
      %s57 = sphi 0, %s41
      %s63 = sphi 0, %s65
      %s66 = sphi 0, %s63
      %s67 = sphi 0, %s66
      %s83 = sphi 0, %s67
      %s87 = sphi 0, %s87
      %s89 = sphi 0, %s87
      %s90 = sphi 0, %s89
      %s104 = sphi 0, %s90
      %s108 = sphi 0, %s108
      %s110 = sphi 0, %s108
      %s111 = sphi 0, %s110
      %s125 = sphi 0, %s111
      %s129 = sphi 0, %s129
      %s131 = sphi 0, %s129
      %s132 = sphi 0, %s131
      %s146 = sphi 0, %s132
      %s150 = sphi 0, %s150
      %s152 = sphi 0, %s150
      %s153 = sphi 0, %s152
      %s167 = sphi 0, %s153
      %s171 = sphi 0, %s171
      %s173 = sphi 0, %s171
      %s174 = sphi 0, %s173
      %s188 = sphi 0, %s174
      %s192 = sphi 0, %s192
      %s194 = sphi 0, %s192
      %s195 = sphi 0, %s194
      %s209 = sphi 0, %s195
      %s213 = sphi 0, %s213
      %s215 = sphi 0, %s213
      %s216 = sphi 0, %s215
      %s230 = sphi 0, %s216
      %s234 = sphi 0, %s234
      %s236 = sphi 0, %s234
      %s237 = sphi 0, %s236
      %s251 = sphi 0, %s237
      %s255 = sphi 0, %s255
      %s257 = sphi 0, %s255
      %s258 = sphi 0, %s257
      %s272 = sphi 0, %s258
      %s276 = sphi 0, %s276
      %s278 = sphi 0, %s276
      %s279 = sphi 0, %s278
      %s293 = sphi 0, %s279
      %s297 = sphi 0, %s297
      %s299 = sphi 0, %s297
      %s300 = sphi 0, %s299
      %s314 = sphi 0, %s300
      %s318 = sphi 0, %s318
      %s320 = sphi 0, %s318
      %s321 = sphi 0, %s320
      %s335 = sphi 0, %s321
      %s339 = sphi 0, %s339
      %s341 = sphi 0, %s339
      %s342 = sphi 0, %s341
      %s356 = sphi 0, %s342
      %s360 = sphi 0, %s360
      %s362 = sphi 0, %s360
      %s363 = sphi 0, %s362
      %s377 = sphi 0, %s363
      %s381 = sphi 0, %s381
      %s383 = sphi 0, %s381
      %s384 = sphi 0, %s383
      %s398 = sphi 0, %s384
      %s402 = sphi 0, %s402
      %s404 = sphi 0, %s402
      %s405 = sphi 0, %s404
      %s419 = sphi 0, %s405
      %s425 = sphi 0, %s427
      %s428 = sphi 0, %s425
      %s429 = sphi 0, %s428
      %s445 = sphi 0, %s429
    $region4: #{topic_detection_forward.1} parent=1 // loop_header_branch
      %30 = sbr.rel (%p28) target = $region8
    $region5: #{topic_detection_forward.1} parent=1 // loop_body
      %s32 = ssub.s32 %s27, 1
      %s33 = ssub.s32 %s27, 2
      %s34 = sadd.s32 %s27, 1
      %s35 = ssub.s32 %s27, %s34
      %p36 = scmp.eq.s32.totalorder %s35, 0
      %s38 = sadd.s32 %s37, 1
      %s39 = scalar_select %p36, %s37, %s38
      %p42 = pneg %p36
      %p43 = scmp.eq.s32.totalorder %s27, 1
      %p44 = por %p42, %p43
      %p45 = scmp.ne.s32.totalorder %s37, %s40
      %p46 = scmp.eq.s32.totalorder %s27, 0
      %p47 = por %p45, %p46
      %p48 = scmp.ne.s32.totalorder %s37, %s40
      %p49 = scmp.eq.s32.totalorder %s32, 1
      %p50 = por %p48, %p49
      %p51 = scmp.ne.s32.totalorder %s40, %s41
      %p52 = scmp.eq.s32.totalorder %s32, 0
      %p53 = por %p51, %p52
      %p54 = scmp.ne.s32.totalorder %s40, %s41
      %p55 = scmp.eq.s32.totalorder %s33, 1
      %p56 = por %p54, %p55
      %p58 = scmp.ne.s32.totalorder %s41, %s57
      %p59 = scmp.eq.s32.totalorder %s33, 0
      %p60 = por %p58, %p59
      %s61 = ssub.s32 %s27, %s34
      %p62 = scmp.eq.s32.totalorder %s61, 0
      %s64 = sadd.s32 %s63, 1
      %s65 = scalar_select %p62, %s63, %s64
      %p68 = pneg %p62
      %p69 = scmp.eq.s32.totalorder %s27, 1
      %p70 = por %p68, %p69
      %p71 = scmp.ne.s32.totalorder %s63, %s66
      %p72 = scmp.eq.s32.totalorder %s27, 0
      %p73 = por %p71, %p72
      %p74 = scmp.ne.s32.totalorder %s63, %s66
      %p75 = scmp.eq.s32.totalorder %s32, 1
      %p76 = por %p74, %p75
      %p77 = scmp.ne.s32.totalorder %s66, %s67
      %p78 = scmp.eq.s32.totalorder %s32, 0
      %p79 = por %p77, %p78
      %p80 = scmp.ne.s32.totalorder %s66, %s67
      %p81 = scmp.eq.s32.totalorder %s33, 1
      %p82 = por %p80, %p81
      %p84 = scmp.ne.s32.totalorder %s67, %s83
      %p85 = scmp.eq.s32.totalorder %s33, 0
      %p86 = por %p84, %p85
      %s88 = sadd.s32 %s87, 1
      %p91 = scmp.eq.s32.totalorder %s27, 1
      %p92 = scmp.ne.s32.totalorder %s87, %s89
      %p93 = scmp.eq.s32.totalorder %s27, 0
      %p94 = por %p92, %p93
      %p95 = scmp.ne.s32.totalorder %s87, %s89
      %p96 = scmp.eq.s32.totalorder %s32, 1
      %p97 = por %p95, %p96
      %p98 = scmp.ne.s32.totalorder %s89, %s90
      %p99 = scmp.eq.s32.totalorder %s32, 0
      %p100 = por %p98, %p99
      %p101 = scmp.ne.s32.totalorder %s89, %s90
      %p102 = scmp.eq.s32.totalorder %s33, 1
      %p103 = por %p101, %p102
      %p105 = scmp.ne.s32.totalorder %s90, %s104
      %p106 = scmp.eq.s32.totalorder %s33, 0
      %p107 = por %p105, %p106
      %s109 = sadd.s32 %s108, 1
      %p112 = scmp.eq.s32.totalorder %s27, 1
      %p113 = scmp.ne.s32.totalorder %s108, %s110
      %p114 = scmp.eq.s32.totalorder %s27, 0
      %p115 = por %p113, %p114
      %p116 = scmp.ne.s32.totalorder %s108, %s110
      %p117 = scmp.eq.s32.totalorder %s32, 1
      %p118 = por %p116, %p117
      %p119 = scmp.ne.s32.totalorder %s110, %s111
      %p120 = scmp.eq.s32.totalorder %s32, 0
      %p121 = por %p119, %p120
      %p122 = scmp.ne.s32.totalorder %s110, %s111
      %p123 = scmp.eq.s32.totalorder %s33, 1
      %p124 = por %p122, %p123
      %p126 = scmp.ne.s32.totalorder %s111, %s125
      %p127 = scmp.eq.s32.totalorder %s33, 0
      %p128 = por %p126, %p127
      %s130 = sadd.s32 %s129, 1
      %p133 = scmp.eq.s32.totalorder %s27, 1
      %p134 = scmp.ne.s32.totalorder %s129, %s131
      %p135 = scmp.eq.s32.totalorder %s27, 0
      %p136 = por %p134, %p135
      %p137 = scmp.ne.s32.totalorder %s129, %s131
      %p138 = scmp.eq.s32.totalorder %s32, 1
      %p139 = por %p137, %p138
      %p140 = scmp.ne.s32.totalorder %s131, %s132
      %p141 = scmp.eq.s32.totalorder %s32, 0
      %p142 = por %p140, %p141
      %p143 = scmp.ne.s32.totalorder %s131, %s132
      %p144 = scmp.eq.s32.totalorder %s33, 1
      %p145 = por %p143, %p144
      %p147 = scmp.ne.s32.totalorder %s132, %s146
      %p148 = scmp.eq.s32.totalorder %s33, 0
      %p149 = por %p147, %p148
      %s151 = sadd.s32 %s150, 1
      %p154 = scmp.eq.s32.totalorder %s27, 1
      %p155 = scmp.ne.s32.totalorder %s150, %s152
      %p156 = scmp.eq.s32.totalorder %s27, 0
      %p157 = por %p155, %p156
      %p158 = scmp.ne.s32.totalorder %s150, %s152
      %p159 = scmp.eq.s32.totalorder %s32, 1
      %p160 = por %p158, %p159
      %p161 = scmp.ne.s32.totalorder %s152, %s153
      %p162 = scmp.eq.s32.totalorder %s32, 0
      %p163 = por %p161, %p162
      %p164 = scmp.ne.s32.totalorder %s152, %s153
      %p165 = scmp.eq.s32.totalorder %s33, 1
      %p166 = por %p164, %p165
      %p168 = scmp.ne.s32.totalorder %s153, %s167
      %p169 = scmp.eq.s32.totalorder %s33, 0
      %p170 = por %p168, %p169
      %s172 = sadd.s32 %s171, 1
      %p175 = scmp.eq.s32.totalorder %s27, 1
      %p176 = scmp.ne.s32.totalorder %s171, %s173
      %p177 = scmp.eq.s32.totalorder %s27, 0
      %p178 = por %p176, %p177
      %p179 = scmp.ne.s32.totalorder %s171, %s173
      %p180 = scmp.eq.s32.totalorder %s32, 1
      %p181 = por %p179, %p180
      %p182 = scmp.ne.s32.totalorder %s173, %s174
      %p183 = scmp.eq.s32.totalorder %s32, 0
      %p184 = por %p182, %p183
      %p185 = scmp.ne.s32.totalorder %s173, %s174
      %p186 = scmp.eq.s32.totalorder %s33, 1
      %p187 = por %p185, %p186
      %p189 = scmp.ne.s32.totalorder %s174, %s188
      %p190 = scmp.eq.s32.totalorder %s33, 0
      %p191 = por %p189, %p190
      %s193 = sadd.s32 %s192, 1
      %p196 = scmp.eq.s32.totalorder %s27, 1
      %p197 = scmp.ne.s32.totalorder %s192, %s194
      %p198 = scmp.eq.s32.totalorder %s27, 0
      %p199 = por %p197, %p198
      %p200 = scmp.ne.s32.totalorder %s192, %s194
      %p201 = scmp.eq.s32.totalorder %s32, 1
      %p202 = por %p200, %p201
      %p203 = scmp.ne.s32.totalorder %s194, %s195
      %p204 = scmp.eq.s32.totalorder %s32, 0
      %p205 = por %p203, %p204
      %p206 = scmp.ne.s32.totalorder %s194, %s195
      %p207 = scmp.eq.s32.totalorder %s33, 1
      %p208 = por %p206, %p207
      %p210 = scmp.ne.s32.totalorder %s195, %s209
      %p211 = scmp.eq.s32.totalorder %s33, 0
      %p212 = por %p210, %p211
      %s214 = sadd.s32 %s213, 1
      %p217 = scmp.eq.s32.totalorder %s27, 1
      %p218 = scmp.ne.s32.totalorder %s213, %s215
      %p219 = scmp.eq.s32.totalorder %s27, 0
      %p220 = por %p218, %p219
      %p221 = scmp.ne.s32.totalorder %s213, %s215
      %p222 = scmp.eq.s32.totalorder %s32, 1
      %p223 = por %p221, %p222
      %p224 = scmp.ne.s32.totalorder %s215, %s216
      %p225 = scmp.eq.s32.totalorder %s32, 0
      %p226 = por %p224, %p225
      %p227 = scmp.ne.s32.totalorder %s215, %s216
      %p228 = scmp.eq.s32.totalorder %s33, 1
      %p229 = por %p227, %p228
      %p231 = scmp.ne.s32.totalorder %s216, %s230
      %p232 = scmp.eq.s32.totalorder %s33, 0
      %p233 = por %p231, %p232
      %s235 = sadd.s32 %s234, 1
      %p238 = scmp.eq.s32.totalorder %s27, 1
      %p239 = scmp.ne.s32.totalorder %s234, %s236
      %p240 = scmp.eq.s32.totalorder %s27, 0
      %p241 = por %p239, %p240
      %p242 = scmp.ne.s32.totalorder %s234, %s236
      %p243 = scmp.eq.s32.totalorder %s32, 1
      %p244 = por %p242, %p243
      %p245 = scmp.ne.s32.totalorder %s236, %s237
      %p246 = scmp.eq.s32.totalorder %s32, 0
      %p247 = por %p245, %p246
      %p248 = scmp.ne.s32.totalorder %s236, %s237
      %p249 = scmp.eq.s32.totalorder %s33, 1
      %p250 = por %p248, %p249
      %p252 = scmp.ne.s32.totalorder %s237, %s251
      %p253 = scmp.eq.s32.totalorder %s33, 0
      %p254 = por %p252, %p253
      %s256 = sadd.s32 %s255, 1
      %p259 = scmp.eq.s32.totalorder %s27, 1
      %p260 = scmp.ne.s32.totalorder %s255, %s257
      %p261 = scmp.eq.s32.totalorder %s27, 0
      %p262 = por %p260, %p261
      %p263 = scmp.ne.s32.totalorder %s255, %s257
      %p264 = scmp.eq.s32.totalorder %s32, 1
      %p265 = por %p263, %p264
      %p266 = scmp.ne.s32.totalorder %s257, %s258
      %p267 = scmp.eq.s32.totalorder %s32, 0
      %p268 = por %p266, %p267
      %p269 = scmp.ne.s32.totalorder %s257, %s258
      %p270 = scmp.eq.s32.totalorder %s33, 1
      %p271 = por %p269, %p270
      %p273 = scmp.ne.s32.totalorder %s258, %s272
      %p274 = scmp.eq.s32.totalorder %s33, 0
      %p275 = por %p273, %p274
      %s277 = sadd.s32 %s276, 1
      %p280 = scmp.eq.s32.totalorder %s27, 1
      %p281 = scmp.ne.s32.totalorder %s276, %s278
      %p282 = scmp.eq.s32.totalorder %s27, 0
      %p283 = por %p281, %p282
      %p284 = scmp.ne.s32.totalorder %s276, %s278
      %p285 = scmp.eq.s32.totalorder %s32, 1
      %p286 = por %p284, %p285
      %p287 = scmp.ne.s32.totalorder %s278, %s279
      %p288 = scmp.eq.s32.totalorder %s32, 0
      %p289 = por %p287, %p288
      %p290 = scmp.ne.s32.totalorder %s278, %s279
      %p291 = scmp.eq.s32.totalorder %s33, 1
      %p292 = por %p290, %p291
      %p294 = scmp.ne.s32.totalorder %s279, %s293
      %p295 = scmp.eq.s32.totalorder %s33, 0
      %p296 = por %p294, %p295
      %s298 = sadd.s32 %s297, 1
      %p301 = scmp.eq.s32.totalorder %s27, 1
      %p302 = scmp.ne.s32.totalorder %s297, %s299
      %p303 = scmp.eq.s32.totalorder %s27, 0
      %p304 = por %p302, %p303
      %p305 = scmp.ne.s32.totalorder %s297, %s299
      %p306 = scmp.eq.s32.totalorder %s32, 1
      %p307 = por %p305, %p306
      %p308 = scmp.ne.s32.totalorder %s299, %s300
      %p309 = scmp.eq.s32.totalorder %s32, 0
      %p310 = por %p308, %p309
      %p311 = scmp.ne.s32.totalorder %s299, %s300
      %p312 = scmp.eq.s32.totalorder %s33, 1
      %p313 = por %p311, %p312
      %p315 = scmp.ne.s32.totalorder %s300, %s314
      %p316 = scmp.eq.s32.totalorder %s33, 0
      %p317 = por %p315, %p316
      %s319 = sadd.s32 %s318, 1
      %p322 = scmp.eq.s32.totalorder %s27, 1
      %p323 = scmp.ne.s32.totalorder %s318, %s320
      %p324 = scmp.eq.s32.totalorder %s27, 0
      %p325 = por %p323, %p324
      %p326 = scmp.ne.s32.totalorder %s318, %s320
      %p327 = scmp.eq.s32.totalorder %s32, 1
      %p328 = por %p326, %p327
      %p329 = scmp.ne.s32.totalorder %s320, %s321
      %p330 = scmp.eq.s32.totalorder %s32, 0
      %p331 = por %p329, %p330
      %p332 = scmp.ne.s32.totalorder %s320, %s321
      %p333 = scmp.eq.s32.totalorder %s33, 1
      %p334 = por %p332, %p333
      %p336 = scmp.ne.s32.totalorder %s321, %s335
      %p337 = scmp.eq.s32.totalorder %s33, 0
      %p338 = por %p336, %p337
      %s340 = sadd.s32 %s339, 1
      %p343 = scmp.eq.s32.totalorder %s27, 1
      %p344 = scmp.ne.s32.totalorder %s339, %s341
      %p345 = scmp.eq.s32.totalorder %s27, 0
      %p346 = por %p344, %p345
      %p347 = scmp.ne.s32.totalorder %s339, %s341
      %p348 = scmp.eq.s32.totalorder %s32, 1
      %p349 = por %p347, %p348
      %p350 = scmp.ne.s32.totalorder %s341, %s342
      %p351 = scmp.eq.s32.totalorder %s32, 0
      %p352 = por %p350, %p351
      %p353 = scmp.ne.s32.totalorder %s341, %s342
      %p354 = scmp.eq.s32.totalorder %s33, 1
      %p355 = por %p353, %p354
      %p357 = scmp.ne.s32.totalorder %s342, %s356
      %p358 = scmp.eq.s32.totalorder %s33, 0
      %p359 = por %p357, %p358
      %s361 = sadd.s32 %s360, 1
      %p364 = scmp.eq.s32.totalorder %s27, 1
      %p365 = scmp.ne.s32.totalorder %s360, %s362
      %p366 = scmp.eq.s32.totalorder %s27, 0
      %p367 = por %p365, %p366
      %p368 = scmp.ne.s32.totalorder %s360, %s362
      %p369 = scmp.eq.s32.totalorder %s32, 1
      %p370 = por %p368, %p369
      %p371 = scmp.ne.s32.totalorder %s362, %s363
      %p372 = scmp.eq.s32.totalorder %s32, 0
      %p373 = por %p371, %p372
      %p374 = scmp.ne.s32.totalorder %s362, %s363
      %p375 = scmp.eq.s32.totalorder %s33, 1
      %p376 = por %p374, %p375
      %p378 = scmp.ne.s32.totalorder %s363, %s377
      %p379 = scmp.eq.s32.totalorder %s33, 0
      %p380 = por %p378, %p379
      %s382 = sadd.s32 %s381, 1
      %p385 = scmp.eq.s32.totalorder %s27, 1
      %p386 = scmp.ne.s32.totalorder %s381, %s383
      %p387 = scmp.eq.s32.totalorder %s27, 0
      %p388 = por %p386, %p387
      %p389 = scmp.ne.s32.totalorder %s381, %s383
      %p390 = scmp.eq.s32.totalorder %s32, 1
      %p391 = por %p389, %p390
      %p392 = scmp.ne.s32.totalorder %s383, %s384
      %p393 = scmp.eq.s32.totalorder %s32, 0
      %p394 = por %p392, %p393
      %p395 = scmp.ne.s32.totalorder %s383, %s384
      %p396 = scmp.eq.s32.totalorder %s33, 1
      %p397 = por %p395, %p396
      %p399 = scmp.ne.s32.totalorder %s384, %s398
      %p400 = scmp.eq.s32.totalorder %s33, 0
      %p401 = por %p399, %p400
      %s403 = sadd.s32 %s402, 1
      %p406 = scmp.eq.s32.totalorder %s27, 1
      %p407 = scmp.ne.s32.totalorder %s402, %s404
      %p408 = scmp.eq.s32.totalorder %s27, 0
      %p409 = por %p407, %p408
      %p410 = scmp.ne.s32.totalorder %s402, %s404
      %p411 = scmp.eq.s32.totalorder %s32, 1
      %p412 = por %p410, %p411
      %p413 = scmp.ne.s32.totalorder %s404, %s405
      %p414 = scmp.eq.s32.totalorder %s32, 0
      %p415 = por %p413, %p414
      %p416 = scmp.ne.s32.totalorder %s404, %s405
      %p417 = scmp.eq.s32.totalorder %s33, 1
      %p418 = por %p416, %p417
      %p420 = scmp.ne.s32.totalorder %s405, %s419
      %p421 = scmp.eq.s32.totalorder %s33, 0
      %p422 = por %p420, %p421
      %s423 = ssub.s32 %s27, %s34
      %p424 = scmp.eq.s32.totalorder %s423, 0
      %s426 = sadd.s32 %s425, 1
      %s427 = scalar_select %p424, %s425, %s426
      %p430 = pneg %p424
      %p431 = scmp.eq.s32.totalorder %s27, 1
      %p432 = por %p430, %p431
      %p433 = scmp.ne.s32.totalorder %s425, %s428
      %p434 = scmp.eq.s32.totalorder %s27, 0
      %p435 = por %p433, %p434
      %p436 = scmp.ne.s32.totalorder %s425, %s428
      %p437 = scmp.eq.s32.totalorder %s32, 1
      %p438 = por %p436, %p437
      %p439 = scmp.ne.s32.totalorder %s428, %s429
      %p440 = scmp.eq.s32.totalorder %s32, 0
      %p441 = por %p439, %p440
      %p442 = scmp.ne.s32.totalorder %s428, %s429
      %p443 = scmp.eq.s32.totalorder %s33, 1
      %p444 = por %p442, %p443
      %p446 = scmp.ne.s32.totalorder %s429, %s445
      %p447 = scmp.eq.s32.totalorder %s33, 0
      %p448 = por %p446, %p447
      %p449 = scmp.le.s32.totalorder 1, %s27
      %p450 = scmp.lt.s32.totalorder %s27, 3
      %p451 = pnand %p449, %p450
      %p452 = pneg %p451
      // Predicated region
      $region9: #{topic_detection_forward.1} parent=5 // pred_check
        _
      $region10: #{topic_detection_forward.1} parent=5 // pred_check_branch
        %454 = sbr.rel (%p451) target = $region12
      $region11: #{topic_detection_forward.1} parent=5 // pred_region
        %s455 = ssub.s32 %s27, 1
        // Predicated region
        $region13: #{topic_detection_forward.1} parent=11 // pred_check
          %p456 = pneg %p100
        $region14: #{topic_detection_forward.1} parent=11 // pred_check_branch
          %458 = sbr.rel (%p456) target = $region16
        $region15: #{topic_detection_forward.1} parent=11 // pred_region
          _
        $region16: #{topic_detection_forward.1} parent=11 // pred_fallthru
          _
        // Predicated region
        $region17: #{topic_detection_forward.1} parent=11 // pred_check
          %p459 = pneg %p121
        $region18: #{topic_detection_forward.1} parent=11 // pred_check_branch
          %461 = sbr.rel (%p459) target = $region20
        $region19: #{topic_detection_forward.1} parent=11 // pred_region
          _
        $region20: #{topic_detection_forward.1} parent=11 // pred_fallthru
          _
        // Predicated region
        $region21: #{topic_detection_forward.1} parent=11 // pred_check
          %p462 = pneg %p142
        $region22: #{topic_detection_forward.1} parent=11 // pred_check_branch
          %464 = sbr.rel (%p462) target = $region24
        $region23: #{topic_detection_forward.1} parent=11 // pred_region
          _
        $region24: #{topic_detection_forward.1} parent=11 // pred_fallthru
          _
        // Predicated region
        $region25: #{topic_detection_forward.1} parent=11 // pred_check
          %p465 = pneg %p163
        $region26: #{topic_detection_forward.1} parent=11 // pred_check_branch
          %467 = sbr.rel (%p465) target = $region28
        $region27: #{topic_detection_forward.1} parent=11 // pred_region
          _
        $region28: #{topic_detection_forward.1} parent=11 // pred_fallthru
          _
        // Predicated region
        $region29: #{topic_detection_forward.1} parent=11 // pred_check
          %p468 = pneg %p184
        $region30: #{topic_detection_forward.1} parent=11 // pred_check_branch
          %470 = sbr.rel (%p468) target = $region32
        $region31: #{topic_detection_forward.1} parent=11 // pred_region
          _
        $region32: #{topic_detection_forward.1} parent=11 // pred_fallthru
          _
        // Predicated region
        $region33: #{topic_detection_forward.1} parent=11 // pred_check
          %p471 = pneg %p205
        $region34: #{topic_detection_forward.1} parent=11 // pred_check_branch
          %473 = sbr.rel (%p471) target = $region36
        $region35: #{topic_detection_forward.1} parent=11 // pred_region
          _
        $region36: #{topic_detection_forward.1} parent=11 // pred_fallthru
          _
        // Predicated region
        $region37: #{topic_detection_forward.1} parent=11 // pred_check
          %p474 = pneg %p226
        $region38: #{topic_detection_forward.1} parent=11 // pred_check_branch
          %476 = sbr.rel (%p474) target = $region40
        $region39: #{topic_detection_forward.1} parent=11 // pred_region
          _
        $region40: #{topic_detection_forward.1} parent=11 // pred_fallthru
          _
        // Predicated region
        $region41: #{topic_detection_forward.1} parent=11 // pred_check
          %p477 = pneg %p247
        $region42: #{topic_detection_forward.1} parent=11 // pred_check_branch
          %479 = sbr.rel (%p477) target = $region44
        $region43: #{topic_detection_forward.1} parent=11 // pred_region
          _
        $region44: #{topic_detection_forward.1} parent=11 // pred_fallthru
          _
        // Predicated region
        $region45: #{topic_detection_forward.1} parent=11 // pred_check
          %p480 = pneg %p268
        $region46: #{topic_detection_forward.1} parent=11 // pred_check_branch
          %482 = sbr.rel (%p480) target = $region48
        $region47: #{topic_detection_forward.1} parent=11 // pred_region
          _
        $region48: #{topic_detection_forward.1} parent=11 // pred_fallthru
          _
        // Predicated region
        $region49: #{topic_detection_forward.1} parent=11 // pred_check
          %p483 = pneg %p289
        $region50: #{topic_detection_forward.1} parent=11 // pred_check_branch
          %485 = sbr.rel (%p483) target = $region52
        $region51: #{topic_detection_forward.1} parent=11 // pred_region
          _
        $region52: #{topic_detection_forward.1} parent=11 // pred_fallthru
          _
        // Predicated region
        $region53: #{topic_detection_forward.1} parent=11 // pred_check
          %p486 = pneg %p310
        $region54: #{topic_detection_forward.1} parent=11 // pred_check_branch
          %488 = sbr.rel (%p486) target = $region56
        $region55: #{topic_detection_forward.1} parent=11 // pred_region
          _
        $region56: #{topic_detection_forward.1} parent=11 // pred_fallthru
          _
        // Predicated region
        $region57: #{topic_detection_forward.1} parent=11 // pred_check
          %p489 = pneg %p331
        $region58: #{topic_detection_forward.1} parent=11 // pred_check_branch
          %491 = sbr.rel (%p489) target = $region60
        $region59: #{topic_detection_forward.1} parent=11 // pred_region
          _
        $region60: #{topic_detection_forward.1} parent=11 // pred_fallthru
          _
        // Predicated region
        $region61: #{topic_detection_forward.1} parent=11 // pred_check
          %p492 = pneg %p352
        $region62: #{topic_detection_forward.1} parent=11 // pred_check_branch
          %494 = sbr.rel (%p492) target = $region64
        $region63: #{topic_detection_forward.1} parent=11 // pred_region
          _
        $region64: #{topic_detection_forward.1} parent=11 // pred_fallthru
          _
        // Predicated region
        $region65: #{topic_detection_forward.1} parent=11 // pred_check
          %p495 = pneg %p373
        $region66: #{topic_detection_forward.1} parent=11 // pred_check_branch
          %497 = sbr.rel (%p495) target = $region68
        $region67: #{topic_detection_forward.1} parent=11 // pred_region
          _
        $region68: #{topic_detection_forward.1} parent=11 // pred_fallthru
          _
        // Predicated region
        $region69: #{topic_detection_forward.1} parent=11 // pred_check
          %p498 = pneg %p394
        $region70: #{topic_detection_forward.1} parent=11 // pred_check_branch
          %500 = sbr.rel (%p498) target = $region72
        $region71: #{topic_detection_forward.1} parent=11 // pred_region
          _
        $region72: #{topic_detection_forward.1} parent=11 // pred_fallthru
          _
        // Predicated region
        $region73: #{topic_detection_forward.1} parent=11 // pred_check
          %p501 = pneg %p415
        $region74: #{topic_detection_forward.1} parent=11 // pred_check_branch
          %503 = sbr.rel (%p501) target = $region76
        $region75: #{topic_detection_forward.1} parent=11 // pred_region
          _
        $region76: #{topic_detection_forward.1} parent=11 // pred_fallthru
          _
      $region12: #{topic_detection_forward.1} parent=5 // pred_fallthru
        _
      %p504 = scmp.lt.s32.totalorder %s27, 2
      // Predicated region
      $region77: #{topic_detection_forward.1} parent=5 // pred_check
        %p505 = pneg %p504
      $region78: #{topic_detection_forward.1} parent=5 // pred_check_branch
        %507 = sbr.rel (%p505) target = $region80
      $region79: #{topic_detection_forward.1} parent=5 // pred_region
        // Predicated region
        $region81: #{topic_detection_forward.1} parent=79 // pred_check
          %p508 = pneg %p47
        $region82: #{topic_detection_forward.1} parent=79 // pred_check_branch
          %510 = sbr.rel (%p508) target = $region84
        $region83: #{topic_detection_forward.1} parent=79 // pred_region
          %p511 = scmp.lt.s32.totalorder %s27, 1
          %s512 = scalar_select %p511, %s27, 1
          %s513 = smul.addr %s512, 8
          %s514 = scalar_lea.vmem %s0, %s513
        $region84: #{topic_detection_forward.1} parent=79 // pred_fallthru
          _
        // Predicated region
        $region85: #{topic_detection_forward.1} parent=79 // pred_check
          %p515 = pneg %p73
        $region86: #{topic_detection_forward.1} parent=79 // pred_check_branch
          %517 = sbr.rel (%p515) target = $region88
        $region87: #{topic_detection_forward.1} parent=79 // pred_region
          %p518 = scmp.lt.s32.totalorder %s27, 1
          %s519 = scalar_select %p518, %s27, 1
          %s520 = scalar_lea.vmem %s1, %s519
        $region88: #{topic_detection_forward.1} parent=79 // pred_fallthru
          _
      $region80: #{topic_detection_forward.1} parent=5 // pred_fallthru
        _
      %p521 = scmp.le.s32.totalorder 1, %s27
      %p522 = scmp.lt.s32.totalorder %s27, 3
      %p523 = pnand %p521, %p522
      %p524 = pneg %p523
      // Predicated region
      $region89: #{topic_detection_forward.1} parent=5 // pred_check
        _
      $region90: #{topic_detection_forward.1} parent=5 // pred_check_branch
        %526 = sbr.rel (%p523) target = $region92
      $region91: #{topic_detection_forward.1} parent=5 // pred_region
        %s527 = ssub.s32 %s27, 1
        %p528 = scmp.lt.s32.totalorder %s32, 1
        %s529 = scalar_select %p528, %s32, 1
        %s530 = smul.addr %s529, 8
        %s531 = scalar_lea.vmem %s0, %s530
        %p532 = pneg %p53
        %p533 = pneg %p50
        %p534 = scmp.lt.s32.totalorder %s32, 1
        %s535 = scalar_select %p534, %s32, 1
        %s536 = scalar_lea.vmem %s1, %s535
        %p537 = pneg %p79
        %p538 = pneg %p76
        %p539 = pneg %p100
        %p540 = pneg %p97
        %p541 = pneg %p121
        %p542 = pneg %p118
        %p543 = pneg %p142
        %p544 = pneg %p139
        %p545 = pneg %p163
        %p546 = pneg %p160
        %p547 = pneg %p184
        %p548 = pneg %p181
        %p549 = pneg %p205
        %p550 = pneg %p202
        %p551 = pneg %p226
        %p552 = pneg %p223
        %p553 = pneg %p247
        %p554 = pneg %p244
        %p555 = pneg %p268
        %p556 = pneg %p265
        %p557 = pneg %p289
        %p558 = pneg %p286
        %p559 = pneg %p310
        %p560 = pneg %p307
        %p561 = pneg %p331
        %p562 = pneg %p328
        %p563 = pneg %p352
        %p564 = pneg %p349
        %p565 = pneg %p373
        %p566 = pneg %p370
        %p567 = pneg %p394
        %p568 = pneg %p391
        %p569 = pneg %p415
        %p570 = pneg %p412
        %p571 = pneg %p441
        %p572 = pneg %p438
        %s573 = sand.u32 %s428, 1
        %s574 = scalar_lea.sflag [#allocation3], %s573
        %s575 = sand.u32 %s428, 1
        %s576 = scalar_lea.vmem [#allocation2], %s575
        %p577 = scmp.lt.s32.totalorder %s32, 1
        %s578 = scalar_select %p577, %s32, 1
        %s579 = smul.addr %s578, 8
        %s580 = scalar_lea.vmem %s0, %s579
        %p581 = scmp.lt.s32.totalorder %s32, 1
        %s582 = scalar_select %p581, %s32, 1
        %s583 = scalar_lea.vmem %s1, %s582
        %v585 = vld [vmem:[%s580] sm:$0xff]
        %v586 = vld [vmem:[%s2] sm:$0x1]
        %v587 = vld [vmem:[%s3] sm:$0x1]
        %vm588 = vcmask 261120
        %v589 = vsel %vm588, %v585, 0.0
        %590 = vadd.xlane.f32.xlu0 %v589
        %v591 = vpop.xlane.xlu0 %590
        %v592 = vrcp.pop 32.0
        %v593 = vmul.f32 %v591, %v592
        %v594 = vsub.f32 %v585, %v593
        %v595 = vmul.f32 %v594, %v594
        %v596 = vsel %vm588, %v595, 0.0
        %597 = vadd.xlane.f32.xlu0 %v596
        %v598 = vpop.xlane.xlu0 %597
        %v599 = vmul.f32 %v598, %v592
        %v600 = vadd.f32 %v599, 1e-12
        %v601 = vrsqrt.pop %v600
        %v602 = vmul.f32 %v594, %v601
        %v604 = vlaneseq
        %v605 = vshrl.u32 %v604, 7
        %v606 = vsub.s32 0, %v605
        %v607 = vrot.slane %v586, %v606
        %v609 = vmul.f32 %v602, %v607
        %v611 = vlaneseq
        %v612 = vshrl.u32 %v611, 7
        %v613 = vsub.s32 0, %v612
        %v614 = vrot.slane %v587, %v613
        %v616 = vadd.f32 %v609, %v614
        %v617 = vld [vmem:[%s583] sm:$0x1]
        %v619 = vlaneseq
        %v620 = vshrl.u32 %v619, 7
        %v621 = vsub.s32 0, %v620
        %v622 = vrot.slane %v617, %v621
        %v624 = vpack.c.bf16 %v616, %v616
        %v625 = vld [vmem:[%s4] sm:$0xf]
        %v626 = vld [vmem:[%s4 + $0x4] sm:$0xf]
        %v627 = vld [vmem:[%s4 + $0x8] sm:$0xf]
        %v628 = vld [vmem:[%s4 + $0xc] sm:$0xf]
        %v629 = vld [vmem:[%s5] sm:$0x1]
        %v631 = vlaneseq
        %v632 = vshrl.u32 %v631, 7
        %v633 = vsub.s32 0, %v632
        %v634 = vrot.slane %v629, %v633
        %v640 = vunpack.c.l.b16 %v625
        %v641 = vunpack.c.l.b16 %v626
        %v642 = vunpack.c.l.b16 %v627
        %v643 = vunpack.c.l.b16 %v628
        %v644 = vpack.c.b16 %v641, %v640
        %v645 = vpack.c.b16 %v643, %v642
        %v649 = vsel %vm588, %v624, 0
        %651 = vmatprep.subr.bf16.mxu0 0
        %652 = vmatpush1.bf16.msra.mxu0 %v644
        %653 = vmatprep.subr.bf16.mxu0 0
        %654 = vmatpush1.bf16.msra.mxu0 %v645
        %655 = vmatprep.subr.bf16.mxu0 0
        %656 = vmatpush1.bf16.msra.mxu0 0
        %657 = vmatprep.subr.bf16.mxu0 0
        %658 = vmatpush1.bf16.msra.mxu0 0
        %659 = vmatprep.subr.bf16.mxu0 0
        %660 = vmatpush1.bf16.msra.mxu0 0
        %661 = vmatprep.subr.bf16.mxu0 0
        %662 = vmatpush1.bf16.msra.mxu0 0
        %663 = vmatprep.subr.bf16.mxu0 0
        %664 = vmatpush1.bf16.msra.mxu0 0
        %665 = vmatprep.subr.bf16.mxu0 0
        %666 = vmatpush1.bf16.msra.mxu0 0
        %667 = vmatprep.subr.bf16.mxu0 0
        %668 = vmatpush1.bf16.msra.mxu0 0
        %669 = vmatprep.subr.bf16.mxu0 0
        %670 = vmatpush1.bf16.msra.mxu0 0
        %671 = vmatprep.subr.bf16.mxu0 0
        %672 = vmatpush1.bf16.msra.mxu0 0
        %673 = vmatprep.subr.bf16.mxu0 0
        %674 = vmatpush1.bf16.msra.mxu0 0
        %675 = vmatprep.subr.bf16.mxu0 0
        %676 = vmatpush1.bf16.msra.mxu0 0
        %677 = vmatprep.subr.bf16.mxu0 0
        %678 = vmatpush1.bf16.msra.mxu0 0
        %679 = vmatprep.subr.bf16.mxu0 0
        %680 = vmatpush1.bf16.msra.mxu0 0
        %681 = vmatprep.subr.bf16.mxu0 0
        %682 = vmatpush1.bf16.msra.mxu0 0
        %683 = vmatprep.mubr.bf16.mxu0 0
        %684 = vmatmul.mubr.bf16.gmra.mrb[0].mxu0 %v649
        %v685 = vpop.f32.mrb[0].mxu0
        %v686 = vadd.f32 %v634, %v685
        %v687 = vpop.f32.mrb[0].mxu0
        %v688 = vpop.f32.mrb[0].mxu0
        %v689 = vpop.f32.mrb[0].mxu0
        %690 = vdwg.mxu0
        %692 = vrot.lane.b32.xlu0 %v686, 120
        %v693 = vpop.permute.xlu0 %692
        %695 = vrot.lane.b32.xlu0 %v686, 112
        %v696 = vpop.permute.xlu0 %695
        %698 = vrot.lane.b32.xlu0 %v686, 104
        %v699 = vpop.permute.xlu0 %698
        %v701 = vcombine.low %v686, %v696
        %v702 = vcombine.high %v686, %v696
        %v704 = vunpack.c.l.s4 1983009808
        %v705 = vunpack.c.0.s8 %v704
        %v706 = vlaneseq
        %v707 = vshrl.u32 %v706, 7
        %v708 = vsub.s32 %v705, %v707
        %v709 = vrot.slane %v701, %v708
        %v711 = vunpack.c.l.s4 1983009808
        %v712 = vunpack.c.0.s8 %v711
        %v713 = vlaneseq
        %v714 = vshrl.u32 %v713, 7
        %v715 = vsub.s32 %v712, %v714
        %v716 = vrot.slane %v702, %v715
        %v717 = vcombine.low %v693, %v699
        %v718 = vcombine.high %v693, %v699
        %v720 = vunpack.c.l.s4 1983009808
        %v721 = vunpack.c.0.s8 %v720
        %v722 = vlaneseq
        %v723 = vshrl.u32 %v722, 7
        %v724 = vsub.s32 %v721, %v723
        %v725 = vrot.slane %v717, %v724
        %v727 = vunpack.c.l.s4 1983009808
        %v728 = vunpack.c.0.s8 %v727
        %v729 = vlaneseq
        %v730 = vshrl.u32 %v729, 7
        %v731 = vsub.s32 %v728, %v730
        %v732 = vrot.slane %v718, %v731
        %v733 = vcombine.low %v709, %v725
        %v734 = vcombine.high %v709, %v725
        %v736 = vunpack.c.l.s4 1934713408
        %v737 = vunpack.c.0.s8 %v736
        %v738 = vlaneseq
        %v739 = vshrl.u32 %v738, 7
        %v740 = vsub.s32 %v737, %v739
        %v741 = vrot.slane %v733, %v740
        %v743 = vunpack.c.l.s4 1934713408
        %v744 = vunpack.c.0.s8 %v743
        %v745 = vlaneseq
        %v746 = vshrl.u32 %v745, 7
        %v747 = vsub.s32 %v744, %v746
        %v748 = vrot.slane %v734, %v747
        %v749 = vcombine.low %v716, %v732
        %v750 = vcombine.high %v716, %v732
        %v752 = vunpack.c.l.s4 1934713408
        %v753 = vunpack.c.0.s8 %v752
        %v754 = vlaneseq
        %v755 = vshrl.u32 %v754, 7
        %v756 = vsub.s32 %v753, %v755
        %v757 = vrot.slane %v749, %v756
        %v759 = vunpack.c.l.s4 1934713408
        %v760 = vunpack.c.0.s8 %v759
        %v761 = vlaneseq
        %v762 = vshrl.u32 %v761, 7
        %v763 = vsub.s32 %v760, %v762
        %v764 = vrot.slane %v750, %v763
        %v765 = vcombine.high %v741, 0.0
        %v766 = vcombine.high %v748, 0.0
        %v767 = vcombine.high %v757, 0.0
        %v768 = vcombine.high %v764, 0.0
        %v769 = vcombine.low %v741, %v748
        %v771 = vunpack.c.l.s4 1983009808
        %v772 = vunpack.c.0.s8 %v771
        %v773 = vlaneseq
        %v774 = vshrl.u32 %v773, 7
        %v775 = vsub.s32 %v772, %v774
        %v776 = vrot.slane %v769, %v775
        %v777 = vcombine.low %v765, %v766
        %v779 = vunpack.c.l.s4 1983009808
        %v780 = vunpack.c.0.s8 %v779
        %v781 = vlaneseq
        %v782 = vshrl.u32 %v781, 7
        %v783 = vsub.s32 %v780, %v782
        %v784 = vrot.slane %v777, %v783
        %v785 = vcombine.low %v757, %v764
        %v787 = vunpack.c.l.s4 1983009808
        %v788 = vunpack.c.0.s8 %v787
        %v789 = vlaneseq
        %v790 = vshrl.u32 %v789, 7
        %v791 = vsub.s32 %v788, %v790
        %v792 = vrot.slane %v785, %v791
        %v793 = vcombine.low %v767, %v768
        %v795 = vunpack.c.l.s4 1983009808
        %v796 = vunpack.c.0.s8 %v795
        %v797 = vlaneseq
        %v798 = vshrl.u32 %v797, 7
        %v799 = vsub.s32 %v796, %v798
        %v800 = vrot.slane %v793, %v799
        %v801 = vcombine.low %v776, %v784
        %v802 = vcombine.high %v776, %v784
        %v804 = vunpack.c.l.s4 1934713408
        %v805 = vunpack.c.0.s8 %v804
        %v806 = vlaneseq
        %v807 = vshrl.u32 %v806, 7
        %v808 = vsub.s32 %v805, %v807
        %v809 = vrot.slane %v801, %v808
        %v811 = vunpack.c.l.s4 1934713408
        %v812 = vunpack.c.0.s8 %v811
        %v813 = vlaneseq
        %v814 = vshrl.u32 %v813, 7
        %v815 = vsub.s32 %v812, %v814
        %v816 = vrot.slane %v802, %v815
        %v817 = vcombine.low %v792, %v800
        %v818 = vcombine.high %v792, %v800
        %v820 = vunpack.c.l.s4 1934713408
        %v821 = vunpack.c.0.s8 %v820
        %v822 = vlaneseq
        %v823 = vshrl.u32 %v822, 7
        %v824 = vsub.s32 %v821, %v823
        %v825 = vrot.slane %v817, %v824
        %v827 = vunpack.c.l.s4 1934713408
        %v828 = vunpack.c.0.s8 %v827
        %v829 = vlaneseq
        %v830 = vshrl.u32 %v829, 7
        %v831 = vsub.s32 %v828, %v830
        %v832 = vrot.slane %v818, %v831
        %v833 = vcombine.low %v809, %v825
        %v834 = vcombine.high %v809, %v825
        %v835 = vcombine.low %v816, %v832
        %v836 = vcombine.high %v816, %v832
        %837 = vrot.lane.b32.xlu0 %v686, 96
        %v838 = vpop.permute.xlu0 %837
        %839 = vrot.lane.b32.xlu0 %v693, 96
        %v840 = vpop.permute.xlu0 %839
        %841 = vrot.lane.b32.xlu0 %v696, 96
        %v842 = vpop.permute.xlu0 %841
        %843 = vrot.lane.b32.xlu0 %v699, 96
        %v844 = vpop.permute.xlu0 %843
        %v849 = vcombine.low %v838, %v842
        %v850 = vcombine.high %v838, %v842
        %v852 = vunpack.c.l.s4 1983009808
        %v853 = vunpack.c.0.s8 %v852
        %v854 = vlaneseq
        %v855 = vshrl.u32 %v854, 7
        %v856 = vsub.s32 %v853, %v855
        %v857 = vrot.slane %v849, %v856
        %v859 = vunpack.c.l.s4 1983009808
        %v860 = vunpack.c.0.s8 %v859
        %v861 = vlaneseq
        %v862 = vshrl.u32 %v861, 7
        %v863 = vsub.s32 %v860, %v862
        %v864 = vrot.slane %v850, %v863
        %v865 = vcombine.low %v840, %v844
        %v866 = vcombine.high %v840, %v844
        %v868 = vunpack.c.l.s4 1983009808
        %v869 = vunpack.c.0.s8 %v868
        %v870 = vlaneseq
        %v871 = vshrl.u32 %v870, 7
        %v872 = vsub.s32 %v869, %v871
        %v873 = vrot.slane %v865, %v872
        %v875 = vunpack.c.l.s4 1983009808
        %v876 = vunpack.c.0.s8 %v875
        %v877 = vlaneseq
        %v878 = vshrl.u32 %v877, 7
        %v879 = vsub.s32 %v876, %v878
        %v880 = vrot.slane %v866, %v879
        %v881 = vcombine.low %v857, %v873
        %v882 = vcombine.high %v857, %v873
        %v884 = vunpack.c.l.s4 1934713408
        %v885 = vunpack.c.0.s8 %v884
        %v886 = vlaneseq
        %v887 = vshrl.u32 %v886, 7
        %v888 = vsub.s32 %v885, %v887
        %v889 = vrot.slane %v881, %v888
        %v891 = vunpack.c.l.s4 1934713408
        %v892 = vunpack.c.0.s8 %v891
        %v893 = vlaneseq
        %v894 = vshrl.u32 %v893, 7
        %v895 = vsub.s32 %v892, %v894
        %v896 = vrot.slane %v882, %v895
        %v897 = vcombine.low %v864, %v880
        %v898 = vcombine.high %v864, %v880
        %v900 = vunpack.c.l.s4 1934713408
        %v901 = vunpack.c.0.s8 %v900
        %v902 = vlaneseq
        %v903 = vshrl.u32 %v902, 7
        %v904 = vsub.s32 %v901, %v903
        %v905 = vrot.slane %v897, %v904
        %v907 = vunpack.c.l.s4 1934713408
        %v908 = vunpack.c.0.s8 %v907
        %v909 = vlaneseq
        %v910 = vshrl.u32 %v909, 7
        %v911 = vsub.s32 %v908, %v910
        %v912 = vrot.slane %v898, %v911
        %v913 = vcombine.high %v889, 0.0
        %v914 = vcombine.high %v896, 0.0
        %v915 = vcombine.high %v905, 0.0
        %v916 = vcombine.high %v912, 0.0
        %v917 = vcombine.low %v889, %v896
        %v919 = vunpack.c.l.s4 1983009808
        %v920 = vunpack.c.0.s8 %v919
        %v921 = vlaneseq
        %v922 = vshrl.u32 %v921, 7
        %v923 = vsub.s32 %v920, %v922
        %v924 = vrot.slane %v917, %v923
        %v925 = vcombine.low %v913, %v914
        %v927 = vunpack.c.l.s4 1983009808
        %v928 = vunpack.c.0.s8 %v927
        %v929 = vlaneseq
        %v930 = vshrl.u32 %v929, 7
        %v931 = vsub.s32 %v928, %v930
        %v932 = vrot.slane %v925, %v931
        %v933 = vcombine.low %v905, %v912
        %v935 = vunpack.c.l.s4 1983009808
        %v936 = vunpack.c.0.s8 %v935
        %v937 = vlaneseq
        %v938 = vshrl.u32 %v937, 7
        %v939 = vsub.s32 %v936, %v938
        %v940 = vrot.slane %v933, %v939
        %v941 = vcombine.low %v915, %v916
        %v943 = vunpack.c.l.s4 1983009808
        %v944 = vunpack.c.0.s8 %v943
        %v945 = vlaneseq
        %v946 = vshrl.u32 %v945, 7
        %v947 = vsub.s32 %v944, %v946
        %v948 = vrot.slane %v941, %v947
        %v949 = vcombine.low %v924, %v932
        %v950 = vcombine.high %v924, %v932
        %v952 = vunpack.c.l.s4 1934713408
        %v953 = vunpack.c.0.s8 %v952
        %v954 = vlaneseq
        %v955 = vshrl.u32 %v954, 7
        %v956 = vsub.s32 %v953, %v955
        %v957 = vrot.slane %v949, %v956
        %v959 = vunpack.c.l.s4 1934713408
        %v960 = vunpack.c.0.s8 %v959
        %v961 = vlaneseq
        %v962 = vshrl.u32 %v961, 7
        %v963 = vsub.s32 %v960, %v962
        %v964 = vrot.slane %v950, %v963
        %v965 = vcombine.low %v940, %v948
        %v966 = vcombine.high %v940, %v948
        %v968 = vunpack.c.l.s4 1934713408
        %v969 = vunpack.c.0.s8 %v968
        %v970 = vlaneseq
        %v971 = vshrl.u32 %v970, 7
        %v972 = vsub.s32 %v969, %v971
        %v973 = vrot.slane %v965, %v972
        %v975 = vunpack.c.l.s4 1934713408
        %v976 = vunpack.c.0.s8 %v975
        %v977 = vlaneseq
        %v978 = vshrl.u32 %v977, 7
        %v979 = vsub.s32 %v976, %v978
        %v980 = vrot.slane %v966, %v979
        %v981 = vcombine.low %v957, %v973
        %v982 = vcombine.high %v957, %v973
        %v983 = vcombine.low %v964, %v980
        %v984 = vcombine.high %v964, %v980
        %985 = vrot.lane.b32.xlu0 %v686, 64
        %v986 = vpop.permute.xlu0 %985
        %987 = vrot.lane.b32.xlu0 %v693, 64
        %v988 = vpop.permute.xlu0 %987
        %989 = vrot.lane.b32.xlu0 %v696, 64
        %v990 = vpop.permute.xlu0 %989
        %991 = vrot.lane.b32.xlu0 %v699, 64
        %v992 = vpop.permute.xlu0 %991
        %v997 = vcombine.low %v986, %v990
        %v998 = vcombine.high %v986, %v990
        %v1000 = vunpack.c.l.s4 1983009808
        %v1001 = vunpack.c.0.s8 %v1000
        %v1002 = vlaneseq
        %v1003 = vshrl.u32 %v1002, 7
        %v1004 = vsub.s32 %v1001, %v1003
        %v1005 = vrot.slane %v997, %v1004
        %v1007 = vunpack.c.l.s4 1983009808
        %v1008 = vunpack.c.0.s8 %v1007
        %v1009 = vlaneseq
        %v1010 = vshrl.u32 %v1009, 7
        %v1011 = vsub.s32 %v1008, %v1010
        %v1012 = vrot.slane %v998, %v1011
        %v1013 = vcombine.low %v988, %v992
        %v1014 = vcombine.high %v988, %v992
        %v1016 = vunpack.c.l.s4 1983009808
        %v1017 = vunpack.c.0.s8 %v1016
        %v1018 = vlaneseq
        %v1019 = vshrl.u32 %v1018, 7
        %v1020 = vsub.s32 %v1017, %v1019
        %v1021 = vrot.slane %v1013, %v1020
        %v1023 = vunpack.c.l.s4 1983009808
        %v1024 = vunpack.c.0.s8 %v1023
        %v1025 = vlaneseq
        %v1026 = vshrl.u32 %v1025, 7
        %v1027 = vsub.s32 %v1024, %v1026
        %v1028 = vrot.slane %v1014, %v1027
        %v1029 = vcombine.low %v1005, %v1021
        %v1030 = vcombine.high %v1005, %v1021
        %v1032 = vunpack.c.l.s4 1934713408
        %v1033 = vunpack.c.0.s8 %v1032
        %v1034 = vlaneseq
        %v1035 = vshrl.u32 %v1034, 7
        %v1036 = vsub.s32 %v1033, %v1035
        %v1037 = vrot.slane %v1029, %v1036
        %v1039 = vunpack.c.l.s4 1934713408
        %v1040 = vunpack.c.0.s8 %v1039
        %v1041 = vlaneseq
        %v1042 = vshrl.u32 %v1041, 7
        %v1043 = vsub.s32 %v1040, %v1042
        %v1044 = vrot.slane %v1030, %v1043
        %v1045 = vcombine.low %v1012, %v1028
        %v1046 = vcombine.high %v1012, %v1028
        %v1048 = vunpack.c.l.s4 1934713408
        %v1049 = vunpack.c.0.s8 %v1048
        %v1050 = vlaneseq
        %v1051 = vshrl.u32 %v1050, 7
        %v1052 = vsub.s32 %v1049, %v1051
        %v1053 = vrot.slane %v1045, %v1052
        %v1055 = vunpack.c.l.s4 1934713408
        %v1056 = vunpack.c.0.s8 %v1055
        %v1057 = vlaneseq
        %v1058 = vshrl.u32 %v1057, 7
        %v1059 = vsub.s32 %v1056, %v1058
        %v1060 = vrot.slane %v1046, %v1059
        %v1061 = vcombine.high %v1037, 0.0
        %v1062 = vcombine.high %v1044, 0.0
        %v1063 = vcombine.high %v1053, 0.0
        %v1064 = vcombine.high %v1060, 0.0
        %v1065 = vcombine.low %v1037, %v1044
        %v1067 = vunpack.c.l.s4 1983009808
        %v1068 = vunpack.c.0.s8 %v1067
        %v1069 = vlaneseq
        %v1070 = vshrl.u32 %v1069, 7
        %v1071 = vsub.s32 %v1068, %v1070
        %v1072 = vrot.slane %v1065, %v1071
        %v1073 = vcombine.low %v1061, %v1062
        %v1075 = vunpack.c.l.s4 1983009808
        %v1076 = vunpack.c.0.s8 %v1075
        %v1077 = vlaneseq
        %v1078 = vshrl.u32 %v1077, 7
        %v1079 = vsub.s32 %v1076, %v1078
        %v1080 = vrot.slane %v1073, %v1079
        %v1081 = vcombine.low %v1053, %v1060
        %v1083 = vunpack.c.l.s4 1983009808
        %v1084 = vunpack.c.0.s8 %v1083
        %v1085 = vlaneseq
        %v1086 = vshrl.u32 %v1085, 7
        %v1087 = vsub.s32 %v1084, %v1086
        %v1088 = vrot.slane %v1081, %v1087
        %v1089 = vcombine.low %v1063, %v1064
        %v1091 = vunpack.c.l.s4 1983009808
        %v1092 = vunpack.c.0.s8 %v1091
        %v1093 = vlaneseq
        %v1094 = vshrl.u32 %v1093, 7
        %v1095 = vsub.s32 %v1092, %v1094
        %v1096 = vrot.slane %v1089, %v1095
        %v1097 = vcombine.low %v1072, %v1080
        %v1098 = vcombine.high %v1072, %v1080
        %v1100 = vunpack.c.l.s4 1934713408
        %v1101 = vunpack.c.0.s8 %v1100
        %v1102 = vlaneseq
        %v1103 = vshrl.u32 %v1102, 7
        %v1104 = vsub.s32 %v1101, %v1103
        %v1105 = vrot.slane %v1097, %v1104
        %v1107 = vunpack.c.l.s4 1934713408
        %v1108 = vunpack.c.0.s8 %v1107
        %v1109 = vlaneseq
        %v1110 = vshrl.u32 %v1109, 7
        %v1111 = vsub.s32 %v1108, %v1110
        %v1112 = vrot.slane %v1098, %v1111
        %v1113 = vcombine.low %v1088, %v1096
        %v1114 = vcombine.high %v1088, %v1096
        %v1116 = vunpack.c.l.s4 1934713408
        %v1117 = vunpack.c.0.s8 %v1116
        %v1118 = vlaneseq
        %v1119 = vshrl.u32 %v1118, 7
        %v1120 = vsub.s32 %v1117, %v1119
        %v1121 = vrot.slane %v1113, %v1120
        %v1123 = vunpack.c.l.s4 1934713408
        %v1124 = vunpack.c.0.s8 %v1123
        %v1125 = vlaneseq
        %v1126 = vshrl.u32 %v1125, 7
        %v1127 = vsub.s32 %v1124, %v1126
        %v1128 = vrot.slane %v1114, %v1127
        %v1129 = vcombine.low %v1105, %v1121
        %v1130 = vcombine.high %v1105, %v1121
        %v1131 = vcombine.low %v1112, %v1128
        %v1132 = vcombine.high %v1112, %v1128
        %v1133 = vpack.c.bf16 %v833, %v833
        %v1134 = vpack.c.bf16 %v834, %v834
        %v1135 = vpack.c.bf16 %v835, %v835
        %v1136 = vpack.c.bf16 %v836, %v836
        %v1137 = vpack.c.bf16 %v981, %v981
        %v1138 = vpack.c.bf16 %v982, %v982
        %v1139 = vpack.c.bf16 %v983, %v983
        %v1140 = vpack.c.bf16 %v984, %v984
        %vm1141 = vcmask 64512
        %v1143 = vsel %vm1141, %v1133, 0
        %v1146 = vsel %vm1141, %v1137, 0
        %1148 = vmatprep.subr.bf16.mxu0 0
        %1149 = vmatpush1.bf16.xpose.msra.mxu0 %v1146
        %1150 = vmatprep.subr.bf16.mxu0 0
        %1151 = vmatpush1.bf16.xpose.msra.mxu0 0
        %1152 = vmatprep.subr.bf16.mxu0 0
        %1153 = vmatpush1.bf16.xpose.msra.mxu0 0
        %1154 = vmatprep.subr.bf16.mxu0 0
        %1155 = vmatpush1.bf16.xpose.msra.mxu0 0
        %1156 = vmatprep.subr.bf16.mxu0 0
        %1157 = vmatpush1.bf16.xpose.msra.mxu0 0
        %1158 = vmatprep.subr.bf16.mxu0 0
        %1159 = vmatpush1.bf16.xpose.msra.mxu0 0
        %1160 = vmatprep.subr.bf16.mxu0 0
        %1161 = vmatpush1.bf16.xpose.msra.mxu0 0
        %1162 = vmatprep.subr.bf16.mxu0 0
        %1163 = vmatpush1.bf16.xpose.msra.mxu0 0
        %1164 = vmatprep.subr.bf16.mxu0 0
        %1165 = vmatpush1.bf16.xpose.msra.mxu0 0
        %1166 = vmatprep.subr.bf16.mxu0 0
        %1167 = vmatpush1.bf16.xpose.msra.mxu0 0
        %1168 = vmatprep.subr.bf16.mxu0 0
        %1169 = vmatpush1.bf16.xpose.msra.mxu0 0
        %1170 = vmatprep.subr.bf16.mxu0 0
        %1171 = vmatpush1.bf16.xpose.msra.mxu0 0
        %1172 = vmatprep.subr.bf16.mxu0 0
        %1173 = vmatpush1.bf16.xpose.msra.mxu0 0
        %1174 = vmatprep.subr.bf16.mxu0 0
        %1175 = vmatpush1.bf16.xpose.msra.mxu0 0
        %1176 = vmatprep.subr.bf16.mxu0 0
        %1177 = vmatpush1.bf16.xpose.msra.mxu0 0
        %1178 = vmatprep.subr.bf16.mxu0 0
        %1179 = vmatpush1.bf16.xpose.msra.mxu0 0
        %1180 = vmatprep.mubr.bf16.mxu0 0
        %1181 = vmatmul.mubr.bf16.gmra.mrb[0].mxu0 %v1143
        %v1182 = vpop.f32.mrb[0].mxu0
        %v1183 = vadd.f32 0.0, %v1182
        %v1184 = vpop.f32.mrb[0].mxu0
        %v1185 = vpop.f32.mrb[0].mxu0
        %v1186 = vpop.f32.mrb[0].mxu0
        %1187 = vdwg.mxu0
        %v1189 = vsel %vm1141, %v1134, 0
        %v1192 = vsel %vm1141, %v1138, 0
        %1194 = vmatprep.subr.bf16.mxu0 0
        %1195 = vmatpush1.bf16.xpose.msra.mxu0 %v1192
        %1196 = vmatprep.subr.bf16.mxu0 0
        %1197 = vmatpush1.bf16.xpose.msra.mxu0 0
        %1198 = vmatprep.subr.bf16.mxu0 0
        %1199 = vmatpush1.bf16.xpose.msra.mxu0 0
        %1200 = vmatprep.subr.bf16.mxu0 0
        %1201 = vmatpush1.bf16.xpose.msra.mxu0 0
        %1202 = vmatprep.subr.bf16.mxu0 0
        %1203 = vmatpush1.bf16.xpose.msra.mxu0 0
        %1204 = vmatprep.subr.bf16.mxu0 0
        %1205 = vmatpush1.bf16.xpose.msra.mxu0 0
        %1206 = vmatprep.subr.bf16.mxu0 0
        %1207 = vmatpush1.bf16.xpose.msra.mxu0 0
        %1208 = vmatprep.subr.bf16.mxu0 0
        %1209 = vmatpush1.bf16.xpose.msra.mxu0 0
        %1210 = vmatprep.subr.bf16.mxu0 0
        %1211 = vmatpush1.bf16.xpose.msra.mxu0 0
        %1212 = vmatprep.subr.bf16.mxu0 0
        %1213 = vmatpush1.bf16.xpose.msra.mxu0 0
        %1214 = vmatprep.subr.bf16.mxu0 0
        %1215 = vmatpush1.bf16.xpose.msra.mxu0 0
        %1216 = vmatprep.subr.bf16.mxu0 0
        %1217 = vmatpush1.bf16.xpose.msra.mxu0 0
        %1218 = vmatprep.subr.bf16.mxu0 0
        %1219 = vmatpush1.bf16.xpose.msra.mxu0 0
        %1220 = vmatprep.subr.bf16.mxu0 0
        %1221 = vmatpush1.bf16.xpose.msra.mxu0 0
        %1222 = vmatprep.subr.bf16.mxu0 0
        %1223 = vmatpush1.bf16.xpose.msra.mxu0 0
        %1224 = vmatprep.subr.bf16.mxu0 0
        %1225 = vmatpush1.bf16.xpose.msra.mxu0 0
        %1226 = vmatprep.mubr.bf16.mxu0 0
        %1227 = vmatmul.mubr.bf16.gmra.mrb[0].mxu0 %v1189
        %v1228 = vpop.f32.mrb[0].mxu0
        %v1229 = vadd.f32 0.0, %v1228
        %v1230 = vpop.f32.mrb[0].mxu0
        %v1231 = vpop.f32.mrb[0].mxu0
        %v1232 = vpop.f32.mrb[0].mxu0
        %1233 = vdwg.mxu0
        %v1235 = vsel %vm1141, %v1135, 0
        %v1238 = vsel %vm1141, %v1139, 0
        %1240 = vmatprep.subr.bf16.mxu0 0
        %1241 = vmatpush1.bf16.xpose.msra.mxu0 %v1238
        %1242 = vmatprep.subr.bf16.mxu0 0
        %1243 = vmatpush1.bf16.xpose.msra.mxu0 0
        %1244 = vmatprep.subr.bf16.mxu0 0
        %1245 = vmatpush1.bf16.xpose.msra.mxu0 0
        %1246 = vmatprep.subr.bf16.mxu0 0
        %1247 = vmatpush1.bf16.xpose.msra.mxu0 0
        %1248 = vmatprep.subr.bf16.mxu0 0
        %1249 = vmatpush1.bf16.xpose.msra.mxu0 0
        %1250 = vmatprep.subr.bf16.mxu0 0
        %1251 = vmatpush1.bf16.xpose.msra.mxu0 0
        %1252 = vmatprep.subr.bf16.mxu0 0
        %1253 = vmatpush1.bf16.xpose.msra.mxu0 0
        %1254 = vmatprep.subr.bf16.mxu0 0
        %1255 = vmatpush1.bf16.xpose.msra.mxu0 0
        %1256 = vmatprep.subr.bf16.mxu0 0
        %1257 = vmatpush1.bf16.xpose.msra.mxu0 0
        %1258 = vmatprep.subr.bf16.mxu0 0
        %1259 = vmatpush1.bf16.xpose.msra.mxu0 0
        %1260 = vmatprep.subr.bf16.mxu0 0
        %1261 = vmatpush1.bf16.xpose.msra.mxu0 0
        %1262 = vmatprep.subr.bf16.mxu0 0
        %1263 = vmatpush1.bf16.xpose.msra.mxu0 0
        %1264 = vmatprep.subr.bf16.mxu0 0
        %1265 = vmatpush1.bf16.xpose.msra.mxu0 0
        %1266 = vmatprep.subr.bf16.mxu0 0
        %1267 = vmatpush1.bf16.xpose.msra.mxu0 0
        %1268 = vmatprep.subr.bf16.mxu0 0
        %1269 = vmatpush1.bf16.xpose.msra.mxu0 0
        %1270 = vmatprep.subr.bf16.mxu0 0
        %1271 = vmatpush1.bf16.xpose.msra.mxu0 0
        %1272 = vmatprep.mubr.bf16.mxu0 0
        %1273 = vmatmul.mubr.bf16.gmra.mrb[0].mxu0 %v1235
        %v1274 = vpop.f32.mrb[0].mxu0
        %v1275 = vadd.f32 0.0, %v1274
        %v1276 = vpop.f32.mrb[0].mxu0
        %v1277 = vpop.f32.mrb[0].mxu0
        %v1278 = vpop.f32.mrb[0].mxu0
        %1279 = vdwg.mxu0
        %v1281 = vsel %vm1141, %v1136, 0
        %v1284 = vsel %vm1141, %v1140, 0
        %1286 = vmatprep.subr.bf16.mxu0 0
        %1287 = vmatpush1.bf16.xpose.msra.mxu0 %v1284
        %1288 = vmatprep.subr.bf16.mxu0 0
        %1289 = vmatpush1.bf16.xpose.msra.mxu0 0
        %1290 = vmatprep.subr.bf16.mxu0 0
        %1291 = vmatpush1.bf16.xpose.msra.mxu0 0
        %1292 = vmatprep.subr.bf16.mxu0 0
        %1293 = vmatpush1.bf16.xpose.msra.mxu0 0
        %1294 = vmatprep.subr.bf16.mxu0 0
        %1295 = vmatpush1.bf16.xpose.msra.mxu0 0
        %1296 = vmatprep.subr.bf16.mxu0 0
        %1297 = vmatpush1.bf16.xpose.msra.mxu0 0
        %1298 = vmatprep.subr.bf16.mxu0 0
        %1299 = vmatpush1.bf16.xpose.msra.mxu0 0
        %1300 = vmatprep.subr.bf16.mxu0 0
        %1301 = vmatpush1.bf16.xpose.msra.mxu0 0
        %1302 = vmatprep.subr.bf16.mxu0 0
        %1303 = vmatpush1.bf16.xpose.msra.mxu0 0
        %1304 = vmatprep.subr.bf16.mxu0 0
        %1305 = vmatpush1.bf16.xpose.msra.mxu0 0
        %1306 = vmatprep.subr.bf16.mxu0 0
        %1307 = vmatpush1.bf16.xpose.msra.mxu0 0
        %1308 = vmatprep.subr.bf16.mxu0 0
        %1309 = vmatpush1.bf16.xpose.msra.mxu0 0
        %1310 = vmatprep.subr.bf16.mxu0 0
        %1311 = vmatpush1.bf16.xpose.msra.mxu0 0
        %1312 = vmatprep.subr.bf16.mxu0 0
        %1313 = vmatpush1.bf16.xpose.msra.mxu0 0
        %1314 = vmatprep.subr.bf16.mxu0 0
        %1315 = vmatpush1.bf16.xpose.msra.mxu0 0
        %1316 = vmatprep.subr.bf16.mxu0 0
        %1317 = vmatpush1.bf16.xpose.msra.mxu0 0
        %1318 = vmatprep.mubr.bf16.mxu0 0
        %1319 = vmatmul.mubr.bf16.gmra.mrb[0].mxu0 %v1281
        %v1320 = vpop.f32.mrb[0].mxu0
        %v1321 = vadd.f32 0.0, %v1320
        %v1322 = vpop.f32.mrb[0].mxu0
        %v1323 = vpop.f32.mrb[0].mxu0
        %v1324 = vpop.f32.mrb[0].mxu0
        %1325 = vdwg.mxu0
        %v1326 = vmul.f32 %v1183, 0.35355338
        %v1327 = vmul.f32 %v1229, 0.35355338
        %v1328 = vmul.f32 %v1275, 0.35355338
        %v1329 = vmul.f32 %v1321, 0.35355338
        %v1330 = vadd.f32 %v1326, %v622
        %v1331 = vadd.f32 %v1327, %v622
        %v1332 = vadd.f32 %v1328, %v622
        %v1333 = vadd.f32 %v1329, %v622
        %v1334 = vsel %vm1141, %v1330, -inf
        %1335 = vmax.xlane.f32.xlu0 %v1334
        %v1336 = vpop.xlane.xlu0 %1335
        %v1337 = vsel %vm1141, %v1331, -inf
        %1338 = vmax.xlane.f32.xlu0 %v1337
        %v1339 = vpop.xlane.xlu0 %1338
        %v1340 = vsel %vm1141, %v1332, -inf
        %1341 = vmax.xlane.f32.xlu0 %v1340
        %v1342 = vpop.xlane.xlu0 %1341
        %v1343 = vsel %vm1141, %v1333, -inf
        %1344 = vmax.xlane.f32.xlu0 %v1343
        %v1345 = vpop.xlane.xlu0 %1344
        %v1346 = vsub.f32 %v1330, %v1336
        %v1347 = vsub.f32 %v1331, %v1339
        %v1348 = vsub.f32 %v1332, %v1342
        %v1349 = vsub.f32 %v1333, %v1345
        %v1350 = vmul.f32 %v1346, 1.442695
        %v1351 = vpow.pop %v1350
        %v1352 = vmul.f32 %v1347, 1.442695
        %v1353 = vpow.pop %v1352
        %v1354 = vmul.f32 %v1348, 1.442695
        %v1355 = vpow.pop %v1354
        %v1356 = vmul.f32 %v1349, 1.442695
        %v1357 = vpow.pop %v1356
        %v1358 = vsel %vm1141, %v1351, 0.0
        %1359 = vadd.xlane.f32.xlu0 %v1358
        %v1360 = vpop.xlane.xlu0 %1359
        %v1361 = vsel %vm1141, %v1353, 0.0
        %1362 = vadd.xlane.f32.xlu0 %v1361
        %v1363 = vpop.xlane.xlu0 %1362
        %v1364 = vsel %vm1141, %v1355, 0.0
        %1365 = vadd.xlane.f32.xlu0 %v1364
        %v1366 = vpop.xlane.xlu0 %1365
        %v1367 = vsel %vm1141, %v1357, 0.0
        %1368 = vadd.xlane.f32.xlu0 %v1367
        %v1369 = vpop.xlane.xlu0 %1368
        %v1370 = vrcp.pop %v1360
        %v1371 = vmul.f32 %v1351, %v1370
        %v1372 = vrcp.pop %v1363
        %v1373 = vmul.f32 %v1353, %v1372
        %v1374 = vrcp.pop %v1366
        %v1375 = vmul.f32 %v1355, %v1374
        %v1376 = vrcp.pop %v1369
        %v1377 = vmul.f32 %v1357, %v1376
        %v1378 = vpack.c.bf16 %v1371, %v1371
        %v1379 = vpack.c.bf16 %v1373, %v1373
        %v1380 = vpack.c.bf16 %v1375, %v1375
        %v1381 = vpack.c.bf16 %v1377, %v1377
        %v1382 = vpack.c.bf16 %v1129, %v1129
        %v1383 = vpack.c.bf16 %v1130, %v1130
        %v1384 = vpack.c.bf16 %v1131, %v1131
        %v1385 = vpack.c.bf16 %v1132, %v1132
        %v1387 = vsel %vm1141, %v1378, 0
        %vm1389 = vcmask 1043456
        %v1391 = vsel %vm1389, %v1382, 0
        %1393 = vmatprep.subr.bf16.mxu0 0
        %1394 = vmatpush1.bf16.msra.mxu0 %v1391
        %1395 = vmatprep.subr.bf16.mxu0 0
        %1396 = vmatpush1.bf16.msra.mxu0 0
        %1397 = vmatprep.subr.bf16.mxu0 0
        %1398 = vmatpush1.bf16.msra.mxu0 0
        %1399 = vmatprep.subr.bf16.mxu0 0
        %1400 = vmatpush1.bf16.msra.mxu0 0
        %1401 = vmatprep.subr.bf16.mxu0 0
        %1402 = vmatpush1.bf16.msra.mxu0 0
        %1403 = vmatprep.subr.bf16.mxu0 0
        %1404 = vmatpush1.bf16.msra.mxu0 0
        %1405 = vmatprep.subr.bf16.mxu0 0
        %1406 = vmatpush1.bf16.msra.mxu0 0
        %1407 = vmatprep.subr.bf16.mxu0 0
        %1408 = vmatpush1.bf16.msra.mxu0 0
        %1409 = vmatprep.subr.bf16.mxu0 0
        %1410 = vmatpush1.bf16.msra.mxu0 0
        %1411 = vmatprep.subr.bf16.mxu0 0
        %1412 = vmatpush1.bf16.msra.mxu0 0
        %1413 = vmatprep.subr.bf16.mxu0 0
        %1414 = vmatpush1.bf16.msra.mxu0 0
        %1415 = vmatprep.subr.bf16.mxu0 0
        %1416 = vmatpush1.bf16.msra.mxu0 0
        %1417 = vmatprep.subr.bf16.mxu0 0
        %1418 = vmatpush1.bf16.msra.mxu0 0
        %1419 = vmatprep.subr.bf16.mxu0 0
        %1420 = vmatpush1.bf16.msra.mxu0 0
        %1421 = vmatprep.subr.bf16.mxu0 0
        %1422 = vmatpush1.bf16.msra.mxu0 0
        %1423 = vmatprep.subr.bf16.mxu0 0
        %1424 = vmatpush1.bf16.msra.mxu0 0
        %1425 = vmatprep.mubr.bf16.mxu0 0
        %1426 = vmatmul.mubr.bf16.gmra.mrb[0].mxu0 %v1387
        %v1427 = vpop.f32.mrb[0].mxu0
        %v1428 = vadd.f32 0.0, %v1427
        %v1429 = vpop.f32.mrb[0].mxu0
        %v1430 = vpop.f32.mrb[0].mxu0
        %v1431 = vpop.f32.mrb[0].mxu0
        %1432 = vdwg.mxu0
        %v1434 = vsel %vm1141, %v1379, 0
        %v1437 = vsel %vm1389, %v1383, 0
        %1439 = vmatprep.subr.bf16.mxu0 0
        %1440 = vmatpush1.bf16.msra.mxu0 %v1437
        %1441 = vmatprep.subr.bf16.mxu0 0
        %1442 = vmatpush1.bf16.msra.mxu0 0
        %1443 = vmatprep.subr.bf16.mxu0 0
        %1444 = vmatpush1.bf16.msra.mxu0 0
        %1445 = vmatprep.subr.bf16.mxu0 0
        %1446 = vmatpush1.bf16.msra.mxu0 0
        %1447 = vmatprep.subr.bf16.mxu0 0
        %1448 = vmatpush1.bf16.msra.mxu0 0
        %1449 = vmatprep.subr.bf16.mxu0 0
        %1450 = vmatpush1.bf16.msra.mxu0 0
        %1451 = vmatprep.subr.bf16.mxu0 0
        %1452 = vmatpush1.bf16.msra.mxu0 0
        %1453 = vmatprep.subr.bf16.mxu0 0
        %1454 = vmatpush1.bf16.msra.mxu0 0
        %1455 = vmatprep.subr.bf16.mxu0 0
        %1456 = vmatpush1.bf16.msra.mxu0 0
        %1457 = vmatprep.subr.bf16.mxu0 0
        %1458 = vmatpush1.bf16.msra.mxu0 0
        %1459 = vmatprep.subr.bf16.mxu0 0
        %1460 = vmatpush1.bf16.msra.mxu0 0
        %1461 = vmatprep.subr.bf16.mxu0 0
        %1462 = vmatpush1.bf16.msra.mxu0 0
        %1463 = vmatprep.subr.bf16.mxu0 0
        %1464 = vmatpush1.bf16.msra.mxu0 0
        %1465 = vmatprep.subr.bf16.mxu0 0
        %1466 = vmatpush1.bf16.msra.mxu0 0
        %1467 = vmatprep.subr.bf16.mxu0 0
        %1468 = vmatpush1.bf16.msra.mxu0 0
        %1469 = vmatprep.subr.bf16.mxu0 0
        %1470 = vmatpush1.bf16.msra.mxu0 0
        %1471 = vmatprep.mubr.bf16.mxu0 0
        %1472 = vmatmul.mubr.bf16.gmra.mrb[0].mxu0 %v1434
        %v1473 = vpop.f32.mrb[0].mxu0
        %v1474 = vadd.f32 0.0, %v1473
        %v1475 = vpop.f32.mrb[0].mxu0
        %v1476 = vpop.f32.mrb[0].mxu0
        %v1477 = vpop.f32.mrb[0].mxu0
        %1478 = vdwg.mxu0
        %v1480 = vsel %vm1141, %v1380, 0
        %v1483 = vsel %vm1389, %v1384, 0
        %1485 = vmatprep.subr.bf16.mxu0 0
        %1486 = vmatpush1.bf16.msra.mxu0 %v1483
        %1487 = vmatprep.subr.bf16.mxu0 0
        %1488 = vmatpush1.bf16.msra.mxu0 0
        %1489 = vmatprep.subr.bf16.mxu0 0
        %1490 = vmatpush1.bf16.msra.mxu0 0
        %1491 = vmatprep.subr.bf16.mxu0 0
        %1492 = vmatpush1.bf16.msra.mxu0 0
        %1493 = vmatprep.subr.bf16.mxu0 0
        %1494 = vmatpush1.bf16.msra.mxu0 0
        %1495 = vmatprep.subr.bf16.mxu0 0
        %1496 = vmatpush1.bf16.msra.mxu0 0
        %1497 = vmatprep.subr.bf16.mxu0 0
        %1498 = vmatpush1.bf16.msra.mxu0 0
        %1499 = vmatprep.subr.bf16.mxu0 0
        %1500 = vmatpush1.bf16.msra.mxu0 0
        %1501 = vmatprep.subr.bf16.mxu0 0
        %1502 = vmatpush1.bf16.msra.mxu0 0
        %1503 = vmatprep.subr.bf16.mxu0 0
        %1504 = vmatpush1.bf16.msra.mxu0 0
        %1505 = vmatprep.subr.bf16.mxu0 0
        %1506 = vmatpush1.bf16.msra.mxu0 0
        %1507 = vmatprep.subr.bf16.mxu0 0
        %1508 = vmatpush1.bf16.msra.mxu0 0
        %1509 = vmatprep.subr.bf16.mxu0 0
        %1510 = vmatpush1.bf16.msra.mxu0 0
        %1511 = vmatprep.subr.bf16.mxu0 0
        %1512 = vmatpush1.bf16.msra.mxu0 0
        %1513 = vmatprep.subr.bf16.mxu0 0
        %1514 = vmatpush1.bf16.msra.mxu0 0
        %1515 = vmatprep.subr.bf16.mxu0 0
        %1516 = vmatpush1.bf16.msra.mxu0 0
        %1517 = vmatprep.mubr.bf16.mxu0 0
        %1518 = vmatmul.mubr.bf16.gmra.mrb[0].mxu0 %v1480
        %v1519 = vpop.f32.mrb[0].mxu0
        %v1520 = vadd.f32 0.0, %v1519
        %v1521 = vpop.f32.mrb[0].mxu0
        %v1522 = vpop.f32.mrb[0].mxu0
        %v1523 = vpop.f32.mrb[0].mxu0
        %1524 = vdwg.mxu0
        %v1526 = vsel %vm1141, %v1381, 0
        %v1529 = vsel %vm1389, %v1385, 0
        %1531 = vmatprep.subr.bf16.mxu0 0
        %1532 = vmatpush1.bf16.msra.mxu0 %v1529
        %1533 = vmatprep.subr.bf16.mxu0 0
        %1534 = vmatpush1.bf16.msra.mxu0 0
        %1535 = vmatprep.subr.bf16.mxu0 0
        %1536 = vmatpush1.bf16.msra.mxu0 0
        %1537 = vmatprep.subr.bf16.mxu0 0
        %1538 = vmatpush1.bf16.msra.mxu0 0
        %1539 = vmatprep.subr.bf16.mxu0 0
        %1540 = vmatpush1.bf16.msra.mxu0 0
        %1541 = vmatprep.subr.bf16.mxu0 0
        %1542 = vmatpush1.bf16.msra.mxu0 0
        %1543 = vmatprep.subr.bf16.mxu0 0
        %1544 = vmatpush1.bf16.msra.mxu0 0
        %1545 = vmatprep.subr.bf16.mxu0 0
        %1546 = vmatpush1.bf16.msra.mxu0 0
        %1547 = vmatprep.subr.bf16.mxu0 0
        %1548 = vmatpush1.bf16.msra.mxu0 0
        %1549 = vmatprep.subr.bf16.mxu0 0
        %1550 = vmatpush1.bf16.msra.mxu0 0
        %1551 = vmatprep.subr.bf16.mxu0 0
        %1552 = vmatpush1.bf16.msra.mxu0 0
        %1553 = vmatprep.subr.bf16.mxu0 0
        %1554 = vmatpush1.bf16.msra.mxu0 0
        %1555 = vmatprep.subr.bf16.mxu0 0
        %1556 = vmatpush1.bf16.msra.mxu0 0
        %1557 = vmatprep.subr.bf16.mxu0 0
        %1558 = vmatpush1.bf16.msra.mxu0 0
        %1559 = vmatprep.subr.bf16.mxu0 0
        %1560 = vmatpush1.bf16.msra.mxu0 0
        %1561 = vmatprep.subr.bf16.mxu0 0
        %1562 = vmatpush1.bf16.msra.mxu0 0
        %1563 = vmatprep.mubr.bf16.mxu0 0
        %1564 = vmatmul.mubr.bf16.gmra.mrb[0].mxu0 %v1526
        %v1565 = vpop.f32.mrb[0].mxu0
        %v1566 = vadd.f32 0.0, %v1565
        %v1567 = vpop.f32.mrb[0].mxu0
        %v1568 = vpop.f32.mrb[0].mxu0
        %v1569 = vpop.f32.mrb[0].mxu0
        %1570 = vdwg.mxu0
        %v1571 = vcombine.low %v1428, %v1520
        %v1572 = vcombine.high %v1428, %v1520
        %v1574 = vunpack.c.l.s4 1983009808
        %v1575 = vunpack.c.0.s8 %v1574
        %v1576 = vlaneseq
        %v1577 = vshrl.u32 %v1576, 7
        %v1578 = vsub.s32 %v1575, %v1577
        %v1579 = vrot.slane %v1571, %v1578
        %v1581 = vunpack.c.l.s4 1983009808
        %v1582 = vunpack.c.0.s8 %v1581
        %v1583 = vlaneseq
        %v1584 = vshrl.u32 %v1583, 7
        %v1585 = vsub.s32 %v1582, %v1584
        %v1586 = vrot.slane %v1572, %v1585
        %v1587 = vcombine.low %v1474, %v1566
        %v1588 = vcombine.high %v1474, %v1566
        %v1590 = vunpack.c.l.s4 1983009808
        %v1591 = vunpack.c.0.s8 %v1590
        %v1592 = vlaneseq
        %v1593 = vshrl.u32 %v1592, 7
        %v1594 = vsub.s32 %v1591, %v1593
        %v1595 = vrot.slane %v1587, %v1594
        %v1597 = vunpack.c.l.s4 1983009808
        %v1598 = vunpack.c.0.s8 %v1597
        %v1599 = vlaneseq
        %v1600 = vshrl.u32 %v1599, 7
        %v1601 = vsub.s32 %v1598, %v1600
        %v1602 = vrot.slane %v1588, %v1601
        %v1603 = vcombine.low %v1579, %v1595
        %v1604 = vcombine.high %v1579, %v1595
        %v1606 = vunpack.c.l.s4 1934713408
        %v1607 = vunpack.c.0.s8 %v1606
        %v1608 = vlaneseq
        %v1609 = vshrl.u32 %v1608, 7
        %v1610 = vsub.s32 %v1607, %v1609
        %v1611 = vrot.slane %v1603, %v1610
        %v1613 = vunpack.c.l.s4 1934713408
        %v1614 = vunpack.c.0.s8 %v1613
        %v1615 = vlaneseq
        %v1616 = vshrl.u32 %v1615, 7
        %v1617 = vsub.s32 %v1614, %v1616
        %v1618 = vrot.slane %v1604, %v1617
        %v1619 = vcombine.low %v1586, %v1602
        %v1620 = vcombine.high %v1586, %v1602
        %v1622 = vunpack.c.l.s4 1934713408
        %v1623 = vunpack.c.0.s8 %v1622
        %v1624 = vlaneseq
        %v1625 = vshrl.u32 %v1624, 7
        %v1626 = vsub.s32 %v1623, %v1625
        %v1627 = vrot.slane %v1619, %v1626
        %v1629 = vunpack.c.l.s4 1934713408
        %v1630 = vunpack.c.0.s8 %v1629
        %v1631 = vlaneseq
        %v1632 = vshrl.u32 %v1631, 7
        %v1633 = vsub.s32 %v1630, %v1632
        %v1634 = vrot.slane %v1620, %v1633
        %v1635 = vcombine.high %v1611, 0.0
        %v1636 = vcombine.high %v1618, 0.0
        %v1637 = vcombine.high %v1627, 0.0
        %v1638 = vcombine.high %v1634, 0.0
        %v1639 = vcombine.low %v1611, %v1618
        %v1641 = vunpack.c.l.s4 1983009808
        %v1642 = vunpack.c.0.s8 %v1641
        %v1643 = vlaneseq
        %v1644 = vshrl.u32 %v1643, 7
        %v1645 = vsub.s32 %v1642, %v1644
        %v1646 = vrot.slane %v1639, %v1645
        %v1647 = vcombine.low %v1635, %v1636
        %v1649 = vunpack.c.l.s4 1983009808
        %v1650 = vunpack.c.0.s8 %v1649
        %v1651 = vlaneseq
        %v1652 = vshrl.u32 %v1651, 7
        %v1653 = vsub.s32 %v1650, %v1652
        %v1654 = vrot.slane %v1647, %v1653
        %v1655 = vcombine.low %v1627, %v1634
        %v1657 = vunpack.c.l.s4 1983009808
        %v1658 = vunpack.c.0.s8 %v1657
        %v1659 = vlaneseq
        %v1660 = vshrl.u32 %v1659, 7
        %v1661 = vsub.s32 %v1658, %v1660
        %v1662 = vrot.slane %v1655, %v1661
        %v1663 = vcombine.low %v1637, %v1638
        %v1665 = vunpack.c.l.s4 1983009808
        %v1666 = vunpack.c.0.s8 %v1665
        %v1667 = vlaneseq
        %v1668 = vshrl.u32 %v1667, 7
        %v1669 = vsub.s32 %v1666, %v1668
        %v1670 = vrot.slane %v1663, %v1669
        %v1671 = vcombine.low %v1646, %v1654
        %v1672 = vcombine.high %v1646, %v1654
        %v1674 = vunpack.c.l.s4 1934713408
        %v1675 = vunpack.c.0.s8 %v1674
        %v1676 = vlaneseq
        %v1677 = vshrl.u32 %v1676, 7
        %v1678 = vsub.s32 %v1675, %v1677
        %v1679 = vrot.slane %v1671, %v1678
        %v1681 = vunpack.c.l.s4 1934713408
        %v1682 = vunpack.c.0.s8 %v1681
        %v1683 = vlaneseq
        %v1684 = vshrl.u32 %v1683, 7
        %v1685 = vsub.s32 %v1682, %v1684
        %v1686 = vrot.slane %v1672, %v1685
        %v1687 = vcombine.low %v1662, %v1670
        %v1688 = vcombine.high %v1662, %v1670
        %v1690 = vunpack.c.l.s4 1934713408
        %v1691 = vunpack.c.0.s8 %v1690
        %v1692 = vlaneseq
        %v1693 = vshrl.u32 %v1692, 7
        %v1694 = vsub.s32 %v1691, %v1693
        %v1695 = vrot.slane %v1687, %v1694
        %v1697 = vunpack.c.l.s4 1934713408
        %v1698 = vunpack.c.0.s8 %v1697
        %v1699 = vlaneseq
        %v1700 = vshrl.u32 %v1699, 7
        %v1701 = vsub.s32 %v1698, %v1700
        %v1702 = vrot.slane %v1688, %v1701
        %v1703 = vcombine.low %v1679, %v1695
        %v1704 = vcombine.high %v1679, %v1695
        %v1705 = vcombine.low %v1686, %v1702
        %v1706 = vcombine.high %v1686, %v1702
        %1708 = vrot.lane.b32.xlu0 %v1704, 8
        %v1709 = vpop.permute.xlu0 %1708
        %1712 = vrot.lane.b32.xlu0 %v1705, 16
        %v1713 = vpop.permute.xlu0 %1712
        %1716 = vrot.lane.b32.xlu0 %v1706, 24
        %v1717 = vpop.permute.xlu0 %1716
        %v1719 = vsel %vm1141, %v1703, %v1709
        %vm1720 = vcmask 130048
        %v1721 = vsel %vm1720, %v1719, %v1713
        %vm1722 = vcmask 195584
        %v1723 = vsel %vm1722, %v1721, %v1717
        %v1724 = vpack.c.bf16 %v1723, %v1723
        %v1725 = vld [vmem:[%s6] sm:$0xf]
        %v1726 = vld [vmem:[%s6 + $0x4] sm:$0xf]
        %v1727 = vld [vmem:[%s6 + $0x8] sm:$0xf]
        %v1728 = vld [vmem:[%s6 + $0xc] sm:$0xf]
        %v1729 = vld [vmem:[%s7] sm:$0x1]
        %v1731 = vlaneseq
        %v1732 = vshrl.u32 %v1731, 7
        %v1733 = vsub.s32 0, %v1732
        %v1734 = vrot.slane %v1729, %v1733
        %v1740 = vunpack.c.l.b16 %v1725
        %v1741 = vunpack.c.l.b16 %v1726
        %v1742 = vunpack.c.l.b16 %v1727
        %v1743 = vunpack.c.l.b16 %v1728
        %v1744 = vpack.c.b16 %v1741, %v1740
        %v1745 = vpack.c.b16 %v1743, %v1742
        %v1749 = vsel %vm588, %v1724, 0
        %1751 = vmatprep.subr.bf16.mxu0 0
        %1752 = vmatpush1.bf16.msra.mxu0 %v1744
        %1753 = vmatprep.subr.bf16.mxu0 0
        %1754 = vmatpush1.bf16.msra.mxu0 %v1745
        %1755 = vmatprep.subr.bf16.mxu0 0
        %1756 = vmatpush1.bf16.msra.mxu0 0
        %1757 = vmatprep.subr.bf16.mxu0 0
        %1758 = vmatpush1.bf16.msra.mxu0 0
        %1759 = vmatprep.subr.bf16.mxu0 0
        %1760 = vmatpush1.bf16.msra.mxu0 0
        %1761 = vmatprep.subr.bf16.mxu0 0
        %1762 = vmatpush1.bf16.msra.mxu0 0
        %1763 = vmatprep.subr.bf16.mxu0 0
        %1764 = vmatpush1.bf16.msra.mxu0 0
        %1765 = vmatprep.subr.bf16.mxu0 0
        %1766 = vmatpush1.bf16.msra.mxu0 0
        %1767 = vmatprep.subr.bf16.mxu0 0
        %1768 = vmatpush1.bf16.msra.mxu0 0
        %1769 = vmatprep.subr.bf16.mxu0 0
        %1770 = vmatpush1.bf16.msra.mxu0 0
        %1771 = vmatprep.subr.bf16.mxu0 0
        %1772 = vmatpush1.bf16.msra.mxu0 0
        %1773 = vmatprep.subr.bf16.mxu0 0
        %1774 = vmatpush1.bf16.msra.mxu0 0
        %1775 = vmatprep.subr.bf16.mxu0 0
        %1776 = vmatpush1.bf16.msra.mxu0 0
        %1777 = vmatprep.subr.bf16.mxu0 0
        %1778 = vmatpush1.bf16.msra.mxu0 0
        %1779 = vmatprep.subr.bf16.mxu0 0
        %1780 = vmatpush1.bf16.msra.mxu0 0
        %1781 = vmatprep.subr.bf16.mxu0 0
        %1782 = vmatpush1.bf16.msra.mxu0 0
        %1783 = vmatprep.mubr.bf16.mxu0 0
        %1784 = vmatmul.mubr.bf16.gmra.mrb[0].mxu0 %v1749
        %v1785 = vpop.f32.mrb[0].mxu0
        %v1786 = vadd.f32 %v1734, %v1785
        %v1787 = vpop.f32.mrb[0].mxu0
        %v1788 = vpop.f32.mrb[0].mxu0
        %v1789 = vpop.f32.mrb[0].mxu0
        %1790 = vdwg.mxu0
        %v1791 = vadd.f32 %v1786, %v616
        %v1792 = vld [vmem:[%s8] sm:$0x1]
        %v1793 = vld [vmem:[%s9] sm:$0x1]
        %v1794 = vsel %vm588, %v1791, 0.0
        %1795 = vadd.xlane.f32.xlu0 %v1794
        %v1796 = vpop.xlane.xlu0 %1795
        %v1797 = vmul.f32 %v1796, %v592
        %v1798 = vsub.f32 %v1791, %v1797
        %v1799 = vmul.f32 %v1798, %v1798
        %v1800 = vsel %vm588, %v1799, 0.0
        %1801 = vadd.xlane.f32.xlu0 %v1800
        %v1802 = vpop.xlane.xlu0 %1801
        %v1803 = vmul.f32 %v1802, %v592
        %v1804 = vadd.f32 %v1803, 1e-12
        %v1805 = vrsqrt.pop %v1804
        %v1806 = vmul.f32 %v1798, %v1805
        %v1808 = vlaneseq
        %v1809 = vshrl.u32 %v1808, 7
        %v1810 = vsub.s32 0, %v1809
        %v1811 = vrot.slane %v1792, %v1810
        %v1813 = vmul.f32 %v1806, %v1811
        %v1815 = vlaneseq
        %v1816 = vshrl.u32 %v1815, 7
        %v1817 = vsub.s32 0, %v1816
        %v1818 = vrot.slane %v1793, %v1817
        %v1820 = vadd.f32 %v1813, %v1818
        %v1821 = vpack.c.bf16 %v1820, %v1820
        %v1822 = vld [vmem:[%s10] sm:$0xf]
        %v1823 = vld [vmem:[%s10 + $0x4] sm:$0xf]
        %v1824 = vld [vmem:[%s10 + $0x8] sm:$0xf]
        %v1825 = vld [vmem:[%s10 + $0xc] sm:$0xf]
        %v1826 = vld [vmem:[%s11] sm:$0x1]
        %v1828 = vlaneseq
        %v1829 = vshrl.u32 %v1828, 7
        %v1830 = vsub.s32 0, %v1829
        %v1831 = vrot.slane %v1826, %v1830
        %v1837 = vunpack.c.l.b16 %v1822
        %v1838 = vunpack.c.l.b16 %v1823
        %v1839 = vunpack.c.l.b16 %v1824
        %v1840 = vunpack.c.l.b16 %v1825
        %v1841 = vpack.c.b16 %v1838, %v1837
        %v1842 = vpack.c.b16 %v1840, %v1839
        %v1846 = vsel %vm588, %v1821, 0
        %1848 = vmatprep.subr.bf16.mxu0 0
        %1849 = vmatpush1.bf16.msra.mxu0 %v1841
        %1850 = vmatprep.subr.bf16.mxu0 0
        %1851 = vmatpush1.bf16.msra.mxu0 %v1842
        %1852 = vmatprep.subr.bf16.mxu0 0
        %1853 = vmatpush1.bf16.msra.mxu0 0
        %1854 = vmatprep.subr.bf16.mxu0 0
        %1855 = vmatpush1.bf16.msra.mxu0 0
        %1856 = vmatprep.subr.bf16.mxu0 0
        %1857 = vmatpush1.bf16.msra.mxu0 0
        %1858 = vmatprep.subr.bf16.mxu0 0
        %1859 = vmatpush1.bf16.msra.mxu0 0
        %1860 = vmatprep.subr.bf16.mxu0 0
        %1861 = vmatpush1.bf16.msra.mxu0 0
        %1862 = vmatprep.subr.bf16.mxu0 0
        %1863 = vmatpush1.bf16.msra.mxu0 0
        %1864 = vmatprep.subr.bf16.mxu0 0
        %1865 = vmatpush1.bf16.msra.mxu0 0
        %1866 = vmatprep.subr.bf16.mxu0 0
        %1867 = vmatpush1.bf16.msra.mxu0 0
        %1868 = vmatprep.subr.bf16.mxu0 0
        %1869 = vmatpush1.bf16.msra.mxu0 0
        %1870 = vmatprep.subr.bf16.mxu0 0
        %1871 = vmatpush1.bf16.msra.mxu0 0
        %1872 = vmatprep.subr.bf16.mxu0 0
        %1873 = vmatpush1.bf16.msra.mxu0 0
        %1874 = vmatprep.subr.bf16.mxu0 0
        %1875 = vmatpush1.bf16.msra.mxu0 0
        %1876 = vmatprep.subr.bf16.mxu0 0
        %1877 = vmatpush1.bf16.msra.mxu0 0
        %1878 = vmatprep.subr.bf16.mxu0 0
        %1879 = vmatpush1.bf16.msra.mxu0 0
        %1880 = vmatprep.mubr.bf16.mxu0 0
        %1881 = vmatmul.mubr.bf16.gmra.mrb[0].mxu0 %v1846
        %v1882 = vpop.f32.mrb[0].mxu0
        %v1883 = vadd.f32 %v1831, %v1882
        %v1884 = vpop.f32.mrb[0].mxu0
        %v1885 = vpop.f32.mrb[0].mxu0
        %v1886 = vpop.f32.mrb[0].mxu0
        %1887 = vdwg.mxu0
        %v1888 = vmul.f32 %v1883, %v1883
        %v1889 = vmul.f32 %v1883, %v1888
        %v1890 = vmul.f32 %v1889, 0.044715
        %v1891 = vadd.f32 %v1883, %v1890
        %v1892 = vmul.f32 %v1891, 0.7978846
        %v1893 = vtanh.pop %v1892
        %v1894 = vadd.f32 %v1893, 1.0
        %v1895 = vmul.f32 %v1894, 0.5
        %v1896 = vmul.f32 %v1883, %v1895
        %v1897 = vpack.c.bf16 %v1896, %v1896
        %v1898 = vld [vmem:[%s12] sm:$0xf]
        %v1899 = vld [vmem:[%s12 + $0x4] sm:$0xf]
        %v1900 = vld [vmem:[%s12 + $0x8] sm:$0xf]
        %v1901 = vld [vmem:[%s12 + $0xc] sm:$0xf]
        %v1902 = vld [vmem:[%s12 + $0x10] sm:$0xf]
        %v1903 = vld [vmem:[%s12 + $0x14] sm:$0xf]
        %v1904 = vld [vmem:[%s12 + $0x18] sm:$0xf]
        %v1905 = vld [vmem:[%s12 + $0x1c] sm:$0xf]
        %v1906 = vld [vmem:[%s13] sm:$0x1]
        %v1908 = vlaneseq
        %v1909 = vshrl.u32 %v1908, 7
        %v1910 = vsub.s32 0, %v1909
        %v1911 = vrot.slane %v1906, %v1910
        %v1921 = vunpack.c.l.b16 %v1898
        %v1922 = vunpack.c.l.b16 %v1899
        %v1923 = vunpack.c.l.b16 %v1900
        %v1924 = vunpack.c.l.b16 %v1901
        %v1925 = vunpack.c.l.b16 %v1902
        %v1926 = vunpack.c.l.b16 %v1903
        %v1927 = vunpack.c.l.b16 %v1904
        %v1928 = vunpack.c.l.b16 %v1905
        %v1929 = vpack.c.b16 %v1922, %v1921
        %v1930 = vpack.c.b16 %v1924, %v1923
        %v1931 = vpack.c.b16 %v1926, %v1925
        %v1932 = vpack.c.b16 %v1928, %v1927
        %vm1937 = vcmask 523264
        %v1939 = vsel %vm1937, %v1897, 0
        %1941 = vmatprep.subr.bf16.mxu0 0
        %1942 = vmatpush1.bf16.msra.mxu0 %v1929
        %1943 = vmatprep.subr.bf16.mxu0 0
        %1944 = vmatpush1.bf16.msra.mxu0 %v1930
        %1945 = vmatprep.subr.bf16.mxu0 0
        %1946 = vmatpush1.bf16.msra.mxu0 %v1931
        %1947 = vmatprep.subr.bf16.mxu0 0
        %1948 = vmatpush1.bf16.msra.mxu0 %v1932
        %1949 = vmatprep.subr.bf16.mxu0 0
        %1950 = vmatpush1.bf16.msra.mxu0 0
        %1951 = vmatprep.subr.bf16.mxu0 0
        %1952 = vmatpush1.bf16.msra.mxu0 0
        %1953 = vmatprep.subr.bf16.mxu0 0
        %1954 = vmatpush1.bf16.msra.mxu0 0
        %1955 = vmatprep.subr.bf16.mxu0 0
        %1956 = vmatpush1.bf16.msra.mxu0 0
        %1957 = vmatprep.subr.bf16.mxu0 0
        %1958 = vmatpush1.bf16.msra.mxu0 0
        %1959 = vmatprep.subr.bf16.mxu0 0
        %1960 = vmatpush1.bf16.msra.mxu0 0
        %1961 = vmatprep.subr.bf16.mxu0 0
        %1962 = vmatpush1.bf16.msra.mxu0 0
        %1963 = vmatprep.subr.bf16.mxu0 0
        %1964 = vmatpush1.bf16.msra.mxu0 0
        %1965 = vmatprep.subr.bf16.mxu0 0
        %1966 = vmatpush1.bf16.msra.mxu0 0
        %1967 = vmatprep.subr.bf16.mxu0 0
        %1968 = vmatpush1.bf16.msra.mxu0 0
        %1969 = vmatprep.subr.bf16.mxu0 0
        %1970 = vmatpush1.bf16.msra.mxu0 0
        %1971 = vmatprep.subr.bf16.mxu0 0
        %1972 = vmatpush1.bf16.msra.mxu0 0
        %1973 = vmatprep.mubr.bf16.mxu0 0
        %1974 = vmatmul.mubr.bf16.gmra.mrb[0].mxu0 %v1939
        %v1975 = vpop.f32.mrb[0].mxu0
        %v1976 = vadd.f32 %v1911, %v1975
        %v1977 = vpop.f32.mrb[0].mxu0
        %v1978 = vpop.f32.mrb[0].mxu0
        %v1979 = vpop.f32.mrb[0].mxu0
        %1980 = vdwg.mxu0
        %v1981 = vadd.f32 %v1976, %v1820
        %v1982 = vld [vmem:[%s14] sm:$0x1]
        %v1983 = vld [vmem:[%s15] sm:$0x1]
        %v1984 = vsel %vm588, %v1981, 0.0
        %1985 = vadd.xlane.f32.xlu0 %v1984
        %v1986 = vpop.xlane.xlu0 %1985
        %v1987 = vmul.f32 %v1986, %v592
        %v1988 = vsub.f32 %v1981, %v1987
        %v1989 = vmul.f32 %v1988, %v1988
        %v1990 = vsel %vm588, %v1989, 0.0
        %1991 = vadd.xlane.f32.xlu0 %v1990
        %v1992 = vpop.xlane.xlu0 %1991
        %v1993 = vmul.f32 %v1992, %v592
        %v1994 = vadd.f32 %v1993, 1e-12
        %v1995 = vrsqrt.pop %v1994
        %v1996 = vmul.f32 %v1988, %v1995
        %v1998 = vlaneseq
        %v1999 = vshrl.u32 %v1998, 7
        %v2000 = vsub.s32 0, %v1999
        %v2001 = vrot.slane %v1982, %v2000
        %v2003 = vmul.f32 %v1996, %v2001
        %v2005 = vlaneseq
        %v2006 = vshrl.u32 %v2005, 7
        %v2007 = vsub.s32 0, %v2006
        %v2008 = vrot.slane %v1983, %v2007
        %v2010 = vadd.f32 %v2003, %v2008
        %v2011 = vpack.c.bf16 %v2010, %v2010
        %s2012 = scalar_lea.vmem %s4, 16
        %v2013 = vld [vmem:[%s2012] sm:$0xf]
        %v2014 = vld [vmem:[%s2012 + $0x4] sm:$0xf]
        %v2015 = vld [vmem:[%s2012 + $0x8] sm:$0xf]
        %v2016 = vld [vmem:[%s2012 + $0xc] sm:$0xf]
        %s2017 = scalar_lea.vmem %s5, 1
        %v2018 = vld [vmem:[%s2017] sm:$0x1]
        %v2020 = vlaneseq
        %v2021 = vshrl.u32 %v2020, 7
        %v2022 = vsub.s32 0, %v2021
        %v2023 = vrot.slane %v2018, %v2022
        %v2029 = vunpack.c.l.b16 %v2013
        %v2030 = vunpack.c.l.b16 %v2014
        %v2031 = vunpack.c.l.b16 %v2015
        %v2032 = vunpack.c.l.b16 %v2016
        %v2033 = vpack.c.b16 %v2030, %v2029
        %v2034 = vpack.c.b16 %v2032, %v2031
        %v2038 = vsel %vm588, %v2011, 0
        %2040 = vmatprep.subr.bf16.mxu0 0
        %2041 = vmatpush1.bf16.msra.mxu0 %v2033
        %2042 = vmatprep.subr.bf16.mxu0 0
        %2043 = vmatpush1.bf16.msra.mxu0 %v2034
        %2044 = vmatprep.subr.bf16.mxu0 0
        %2045 = vmatpush1.bf16.msra.mxu0 0
        %2046 = vmatprep.subr.bf16.mxu0 0
        %2047 = vmatpush1.bf16.msra.mxu0 0
        %2048 = vmatprep.subr.bf16.mxu0 0
        %2049 = vmatpush1.bf16.msra.mxu0 0
        %2050 = vmatprep.subr.bf16.mxu0 0
        %2051 = vmatpush1.bf16.msra.mxu0 0
        %2052 = vmatprep.subr.bf16.mxu0 0
        %2053 = vmatpush1.bf16.msra.mxu0 0
        %2054 = vmatprep.subr.bf16.mxu0 0
        %2055 = vmatpush1.bf16.msra.mxu0 0
        %2056 = vmatprep.subr.bf16.mxu0 0
        %2057 = vmatpush1.bf16.msra.mxu0 0
        %2058 = vmatprep.subr.bf16.mxu0 0
        %2059 = vmatpush1.bf16.msra.mxu0 0
        %2060 = vmatprep.subr.bf16.mxu0 0
        %2061 = vmatpush1.bf16.msra.mxu0 0
        %2062 = vmatprep.subr.bf16.mxu0 0
        %2063 = vmatpush1.bf16.msra.mxu0 0
        %2064 = vmatprep.subr.bf16.mxu0 0
        %2065 = vmatpush1.bf16.msra.mxu0 0
        %2066 = vmatprep.subr.bf16.mxu0 0
        %2067 = vmatpush1.bf16.msra.mxu0 0
        %2068 = vmatprep.subr.bf16.mxu0 0
        %2069 = vmatpush1.bf16.msra.mxu0 0
        %2070 = vmatprep.subr.bf16.mxu0 0
        %2071 = vmatpush1.bf16.msra.mxu0 0
        %2072 = vmatprep.mubr.bf16.mxu0 0
        %2073 = vmatmul.mubr.bf16.gmra.mrb[0].mxu0 %v2038
        %v2074 = vpop.f32.mrb[0].mxu0
        %v2075 = vadd.f32 %v2023, %v2074
        %v2076 = vpop.f32.mrb[0].mxu0
        %v2077 = vpop.f32.mrb[0].mxu0
        %v2078 = vpop.f32.mrb[0].mxu0
        %2079 = vdwg.mxu0
        %2081 = vrot.lane.b32.xlu0 %v2075, 120
        %v2082 = vpop.permute.xlu0 %2081
        %2084 = vrot.lane.b32.xlu0 %v2075, 112
        %v2085 = vpop.permute.xlu0 %2084
        %2087 = vrot.lane.b32.xlu0 %v2075, 104
        %v2088 = vpop.permute.xlu0 %2087
        %v2090 = vcombine.low %v2075, %v2085
        %v2091 = vcombine.high %v2075, %v2085
        %v2093 = vunpack.c.l.s4 1983009808
        %v2094 = vunpack.c.0.s8 %v2093
        %v2095 = vlaneseq
        %v2096 = vshrl.u32 %v2095, 7
        %v2097 = vsub.s32 %v2094, %v2096
        %v2098 = vrot.slane %v2090, %v2097
        %v2100 = vunpack.c.l.s4 1983009808
        %v2101 = vunpack.c.0.s8 %v2100
        %v2102 = vlaneseq
        %v2103 = vshrl.u32 %v2102, 7
        %v2104 = vsub.s32 %v2101, %v2103
        %v2105 = vrot.slane %v2091, %v2104
        %v2106 = vcombine.low %v2082, %v2088
        %v2107 = vcombine.high %v2082, %v2088
        %v2109 = vunpack.c.l.s4 1983009808
        %v2110 = vunpack.c.0.s8 %v2109
        %v2111 = vlaneseq
        %v2112 = vshrl.u32 %v2111, 7
        %v2113 = vsub.s32 %v2110, %v2112
        %v2114 = vrot.slane %v2106, %v2113
        %v2116 = vunpack.c.l.s4 1983009808
        %v2117 = vunpack.c.0.s8 %v2116
        %v2118 = vlaneseq
        %v2119 = vshrl.u32 %v2118, 7
        %v2120 = vsub.s32 %v2117, %v2119
        %v2121 = vrot.slane %v2107, %v2120
        %v2122 = vcombine.low %v2098, %v2114
        %v2123 = vcombine.high %v2098, %v2114
        %v2125 = vunpack.c.l.s4 1934713408
        %v2126 = vunpack.c.0.s8 %v2125
        %v2127 = vlaneseq
        %v2128 = vshrl.u32 %v2127, 7
        %v2129 = vsub.s32 %v2126, %v2128
        %v2130 = vrot.slane %v2122, %v2129
        %v2132 = vunpack.c.l.s4 1934713408
        %v2133 = vunpack.c.0.s8 %v2132
        %v2134 = vlaneseq
        %v2135 = vshrl.u32 %v2134, 7
        %v2136 = vsub.s32 %v2133, %v2135
        %v2137 = vrot.slane %v2123, %v2136
        %v2138 = vcombine.low %v2105, %v2121
        %v2139 = vcombine.high %v2105, %v2121
        %v2141 = vunpack.c.l.s4 1934713408
        %v2142 = vunpack.c.0.s8 %v2141
        %v2143 = vlaneseq
        %v2144 = vshrl.u32 %v2143, 7
        %v2145 = vsub.s32 %v2142, %v2144
        %v2146 = vrot.slane %v2138, %v2145
        %v2148 = vunpack.c.l.s4 1934713408
        %v2149 = vunpack.c.0.s8 %v2148
        %v2150 = vlaneseq
        %v2151 = vshrl.u32 %v2150, 7
        %v2152 = vsub.s32 %v2149, %v2151
        %v2153 = vrot.slane %v2139, %v2152
        %v2154 = vcombine.high %v2130, 0.0
        %v2155 = vcombine.high %v2137, 0.0
        %v2156 = vcombine.high %v2146, 0.0
        %v2157 = vcombine.high %v2153, 0.0
        %v2158 = vcombine.low %v2130, %v2137
        %v2160 = vunpack.c.l.s4 1983009808
        %v2161 = vunpack.c.0.s8 %v2160
        %v2162 = vlaneseq
        %v2163 = vshrl.u32 %v2162, 7
        %v2164 = vsub.s32 %v2161, %v2163
        %v2165 = vrot.slane %v2158, %v2164
        %v2166 = vcombine.low %v2154, %v2155
        %v2168 = vunpack.c.l.s4 1983009808
        %v2169 = vunpack.c.0.s8 %v2168
        %v2170 = vlaneseq
        %v2171 = vshrl.u32 %v2170, 7
        %v2172 = vsub.s32 %v2169, %v2171
        %v2173 = vrot.slane %v2166, %v2172
        %v2174 = vcombine.low %v2146, %v2153
        %v2176 = vunpack.c.l.s4 1983009808
        %v2177 = vunpack.c.0.s8 %v2176
        %v2178 = vlaneseq
        %v2179 = vshrl.u32 %v2178, 7
        %v2180 = vsub.s32 %v2177, %v2179
        %v2181 = vrot.slane %v2174, %v2180
        %v2182 = vcombine.low %v2156, %v2157
        %v2184 = vunpack.c.l.s4 1983009808
        %v2185 = vunpack.c.0.s8 %v2184
        %v2186 = vlaneseq
        %v2187 = vshrl.u32 %v2186, 7
        %v2188 = vsub.s32 %v2185, %v2187
        %v2189 = vrot.slane %v2182, %v2188
        %v2190 = vcombine.low %v2165, %v2173
        %v2191 = vcombine.high %v2165, %v2173
        %v2193 = vunpack.c.l.s4 1934713408
        %v2194 = vunpack.c.0.s8 %v2193
        %v2195 = vlaneseq
        %v2196 = vshrl.u32 %v2195, 7
        %v2197 = vsub.s32 %v2194, %v2196
        %v2198 = vrot.slane %v2190, %v2197
        %v2200 = vunpack.c.l.s4 1934713408
        %v2201 = vunpack.c.0.s8 %v2200
        %v2202 = vlaneseq
        %v2203 = vshrl.u32 %v2202, 7
        %v2204 = vsub.s32 %v2201, %v2203
        %v2205 = vrot.slane %v2191, %v2204
        %v2206 = vcombine.low %v2181, %v2189
        %v2207 = vcombine.high %v2181, %v2189
        %v2209 = vunpack.c.l.s4 1934713408
        %v2210 = vunpack.c.0.s8 %v2209
        %v2211 = vlaneseq
        %v2212 = vshrl.u32 %v2211, 7
        %v2213 = vsub.s32 %v2210, %v2212
        %v2214 = vrot.slane %v2206, %v2213
        %v2216 = vunpack.c.l.s4 1934713408
        %v2217 = vunpack.c.0.s8 %v2216
        %v2218 = vlaneseq
        %v2219 = vshrl.u32 %v2218, 7
        %v2220 = vsub.s32 %v2217, %v2219
        %v2221 = vrot.slane %v2207, %v2220
        %v2222 = vcombine.low %v2198, %v2214
        %v2223 = vcombine.high %v2198, %v2214
        %v2224 = vcombine.low %v2205, %v2221
        %v2225 = vcombine.high %v2205, %v2221
        %2226 = vrot.lane.b32.xlu0 %v2075, 96
        %v2227 = vpop.permute.xlu0 %2226
        %2228 = vrot.lane.b32.xlu0 %v2082, 96
        %v2229 = vpop.permute.xlu0 %2228
        %2230 = vrot.lane.b32.xlu0 %v2085, 96
        %v2231 = vpop.permute.xlu0 %2230
        %2232 = vrot.lane.b32.xlu0 %v2088, 96
        %v2233 = vpop.permute.xlu0 %2232
        %v2238 = vcombine.low %v2227, %v2231
        %v2239 = vcombine.high %v2227, %v2231
        %v2241 = vunpack.c.l.s4 1983009808
        %v2242 = vunpack.c.0.s8 %v2241
        %v2243 = vlaneseq
        %v2244 = vshrl.u32 %v2243, 7
        %v2245 = vsub.s32 %v2242, %v2244
        %v2246 = vrot.slane %v2238, %v2245
        %v2248 = vunpack.c.l.s4 1983009808
        %v2249 = vunpack.c.0.s8 %v2248
        %v2250 = vlaneseq
        %v2251 = vshrl.u32 %v2250, 7
        %v2252 = vsub.s32 %v2249, %v2251
        %v2253 = vrot.slane %v2239, %v2252
        %v2254 = vcombine.low %v2229, %v2233
        %v2255 = vcombine.high %v2229, %v2233
        %v2257 = vunpack.c.l.s4 1983009808
        %v2258 = vunpack.c.0.s8 %v2257
        %v2259 = vlaneseq
        %v2260 = vshrl.u32 %v2259, 7
        %v2261 = vsub.s32 %v2258, %v2260
        %v2262 = vrot.slane %v2254, %v2261
        %v2264 = vunpack.c.l.s4 1983009808
        %v2265 = vunpack.c.0.s8 %v2264
        %v2266 = vlaneseq
        %v2267 = vshrl.u32 %v2266, 7
        %v2268 = vsub.s32 %v2265, %v2267
        %v2269 = vrot.slane %v2255, %v2268
        %v2270 = vcombine.low %v2246, %v2262
        %v2271 = vcombine.high %v2246, %v2262
        %v2273 = vunpack.c.l.s4 1934713408
        %v2274 = vunpack.c.0.s8 %v2273
        %v2275 = vlaneseq
        %v2276 = vshrl.u32 %v2275, 7
        %v2277 = vsub.s32 %v2274, %v2276
        %v2278 = vrot.slane %v2270, %v2277
        %v2280 = vunpack.c.l.s4 1934713408
        %v2281 = vunpack.c.0.s8 %v2280
        %v2282 = vlaneseq
        %v2283 = vshrl.u32 %v2282, 7
        %v2284 = vsub.s32 %v2281, %v2283
        %v2285 = vrot.slane %v2271, %v2284
        %v2286 = vcombine.low %v2253, %v2269
        %v2287 = vcombine.high %v2253, %v2269
        %v2289 = vunpack.c.l.s4 1934713408
        %v2290 = vunpack.c.0.s8 %v2289
        %v2291 = vlaneseq
        %v2292 = vshrl.u32 %v2291, 7
        %v2293 = vsub.s32 %v2290, %v2292
        %v2294 = vrot.slane %v2286, %v2293
        %v2296 = vunpack.c.l.s4 1934713408
        %v2297 = vunpack.c.0.s8 %v2296
        %v2298 = vlaneseq
        %v2299 = vshrl.u32 %v2298, 7
        %v2300 = vsub.s32 %v2297, %v2299
        %v2301 = vrot.slane %v2287, %v2300
        %v2302 = vcombine.high %v2278, 0.0
        %v2303 = vcombine.high %v2285, 0.0
        %v2304 = vcombine.high %v2294, 0.0
        %v2305 = vcombine.high %v2301, 0.0
        %v2306 = vcombine.low %v2278, %v2285
        %v2308 = vunpack.c.l.s4 1983009808
        %v2309 = vunpack.c.0.s8 %v2308
        %v2310 = vlaneseq
        %v2311 = vshrl.u32 %v2310, 7
        %v2312 = vsub.s32 %v2309, %v2311
        %v2313 = vrot.slane %v2306, %v2312
        %v2314 = vcombine.low %v2302, %v2303
        %v2316 = vunpack.c.l.s4 1983009808
        %v2317 = vunpack.c.0.s8 %v2316
        %v2318 = vlaneseq
        %v2319 = vshrl.u32 %v2318, 7
        %v2320 = vsub.s32 %v2317, %v2319
        %v2321 = vrot.slane %v2314, %v2320
        %v2322 = vcombine.low %v2294, %v2301
        %v2324 = vunpack.c.l.s4 1983009808
        %v2325 = vunpack.c.0.s8 %v2324
        %v2326 = vlaneseq
        %v2327 = vshrl.u32 %v2326, 7
        %v2328 = vsub.s32 %v2325, %v2327
        %v2329 = vrot.slane %v2322, %v2328
        %v2330 = vcombine.low %v2304, %v2305
        %v2332 = vunpack.c.l.s4 1983009808
        %v2333 = vunpack.c.0.s8 %v2332
        %v2334 = vlaneseq
        %v2335 = vshrl.u32 %v2334, 7
        %v2336 = vsub.s32 %v2333, %v2335
        %v2337 = vrot.slane %v2330, %v2336
        %v2338 = vcombine.low %v2313, %v2321
        %v2339 = vcombine.high %v2313, %v2321
        %v2341 = vunpack.c.l.s4 1934713408
        %v2342 = vunpack.c.0.s8 %v2341
        %v2343 = vlaneseq
        %v2344 = vshrl.u32 %v2343, 7
        %v2345 = vsub.s32 %v2342, %v2344
        %v2346 = vrot.slane %v2338, %v2345
        %v2348 = vunpack.c.l.s4 1934713408
        %v2349 = vunpack.c.0.s8 %v2348
        %v2350 = vlaneseq
        %v2351 = vshrl.u32 %v2350, 7
        %v2352 = vsub.s32 %v2349, %v2351
        %v2353 = vrot.slane %v2339, %v2352
        %v2354 = vcombine.low %v2329, %v2337
        %v2355 = vcombine.high %v2329, %v2337
        %v2357 = vunpack.c.l.s4 1934713408
        %v2358 = vunpack.c.0.s8 %v2357
        %v2359 = vlaneseq
        %v2360 = vshrl.u32 %v2359, 7
        %v2361 = vsub.s32 %v2358, %v2360
        %v2362 = vrot.slane %v2354, %v2361
        %v2364 = vunpack.c.l.s4 1934713408
        %v2365 = vunpack.c.0.s8 %v2364
        %v2366 = vlaneseq
        %v2367 = vshrl.u32 %v2366, 7
        %v2368 = vsub.s32 %v2365, %v2367
        %v2369 = vrot.slane %v2355, %v2368
        %v2370 = vcombine.low %v2346, %v2362
        %v2371 = vcombine.high %v2346, %v2362
        %v2372 = vcombine.low %v2353, %v2369
        %v2373 = vcombine.high %v2353, %v2369
        %2374 = vrot.lane.b32.xlu0 %v2075, 64
        %v2375 = vpop.permute.xlu0 %2374
        %2376 = vrot.lane.b32.xlu0 %v2082, 64
        %v2377 = vpop.permute.xlu0 %2376
        %2378 = vrot.lane.b32.xlu0 %v2085, 64
        %v2379 = vpop.permute.xlu0 %2378
        %2380 = vrot.lane.b32.xlu0 %v2088, 64
        %v2381 = vpop.permute.xlu0 %2380
        %v2386 = vcombine.low %v2375, %v2379
        %v2387 = vcombine.high %v2375, %v2379
        %v2389 = vunpack.c.l.s4 1983009808
        %v2390 = vunpack.c.0.s8 %v2389
        %v2391 = vlaneseq
        %v2392 = vshrl.u32 %v2391, 7
        %v2393 = vsub.s32 %v2390, %v2392
        %v2394 = vrot.slane %v2386, %v2393
        %v2396 = vunpack.c.l.s4 1983009808
        %v2397 = vunpack.c.0.s8 %v2396
        %v2398 = vlaneseq
        %v2399 = vshrl.u32 %v2398, 7
        %v2400 = vsub.s32 %v2397, %v2399
        %v2401 = vrot.slane %v2387, %v2400
        %v2402 = vcombine.low %v2377, %v2381
        %v2403 = vcombine.high %v2377, %v2381
        %v2405 = vunpack.c.l.s4 1983009808
        %v2406 = vunpack.c.0.s8 %v2405
        %v2407 = vlaneseq
        %v2408 = vshrl.u32 %v2407, 7
        %v2409 = vsub.s32 %v2406, %v2408
        %v2410 = vrot.slane %v2402, %v2409
        %v2412 = vunpack.c.l.s4 1983009808
        %v2413 = vunpack.c.0.s8 %v2412
        %v2414 = vlaneseq
        %v2415 = vshrl.u32 %v2414, 7
        %v2416 = vsub.s32 %v2413, %v2415
        %v2417 = vrot.slane %v2403, %v2416
        %v2418 = vcombine.low %v2394, %v2410
        %v2419 = vcombine.high %v2394, %v2410
        %v2421 = vunpack.c.l.s4 1934713408
        %v2422 = vunpack.c.0.s8 %v2421
        %v2423 = vlaneseq
        %v2424 = vshrl.u32 %v2423, 7
        %v2425 = vsub.s32 %v2422, %v2424
        %v2426 = vrot.slane %v2418, %v2425
        %v2428 = vunpack.c.l.s4 1934713408
        %v2429 = vunpack.c.0.s8 %v2428
        %v2430 = vlaneseq
        %v2431 = vshrl.u32 %v2430, 7
        %v2432 = vsub.s32 %v2429, %v2431
        %v2433 = vrot.slane %v2419, %v2432
        %v2434 = vcombine.low %v2401, %v2417
        %v2435 = vcombine.high %v2401, %v2417
        %v2437 = vunpack.c.l.s4 1934713408
        %v2438 = vunpack.c.0.s8 %v2437
        %v2439 = vlaneseq
        %v2440 = vshrl.u32 %v2439, 7
        %v2441 = vsub.s32 %v2438, %v2440
        %v2442 = vrot.slane %v2434, %v2441
        %v2444 = vunpack.c.l.s4 1934713408
        %v2445 = vunpack.c.0.s8 %v2444
        %v2446 = vlaneseq
        %v2447 = vshrl.u32 %v2446, 7
        %v2448 = vsub.s32 %v2445, %v2447
        %v2449 = vrot.slane %v2435, %v2448
        %v2450 = vcombine.high %v2426, 0.0
        %v2451 = vcombine.high %v2433, 0.0
        %v2452 = vcombine.high %v2442, 0.0
        %v2453 = vcombine.high %v2449, 0.0
        %v2454 = vcombine.low %v2426, %v2433
        %v2456 = vunpack.c.l.s4 1983009808
        %v2457 = vunpack.c.0.s8 %v2456
        %v2458 = vlaneseq
        %v2459 = vshrl.u32 %v2458, 7
        %v2460 = vsub.s32 %v2457, %v2459
        %v2461 = vrot.slane %v2454, %v2460
        %v2462 = vcombine.low %v2450, %v2451
        %v2464 = vunpack.c.l.s4 1983009808
        %v2465 = vunpack.c.0.s8 %v2464
        %v2466 = vlaneseq
        %v2467 = vshrl.u32 %v2466, 7
        %v2468 = vsub.s32 %v2465, %v2467
        %v2469 = vrot.slane %v2462, %v2468
        %v2470 = vcombine.low %v2442, %v2449
        %v2472 = vunpack.c.l.s4 1983009808
        %v2473 = vunpack.c.0.s8 %v2472
        %v2474 = vlaneseq
        %v2475 = vshrl.u32 %v2474, 7
        %v2476 = vsub.s32 %v2473, %v2475
        %v2477 = vrot.slane %v2470, %v2476
        %v2478 = vcombine.low %v2452, %v2453
        %v2480 = vunpack.c.l.s4 1983009808
        %v2481 = vunpack.c.0.s8 %v2480
        %v2482 = vlaneseq
        %v2483 = vshrl.u32 %v2482, 7
        %v2484 = vsub.s32 %v2481, %v2483
        %v2485 = vrot.slane %v2478, %v2484
        %v2486 = vcombine.low %v2461, %v2469
        %v2487 = vcombine.high %v2461, %v2469
        %v2489 = vunpack.c.l.s4 1934713408
        %v2490 = vunpack.c.0.s8 %v2489
        %v2491 = vlaneseq
        %v2492 = vshrl.u32 %v2491, 7
        %v2493 = vsub.s32 %v2490, %v2492
        %v2494 = vrot.slane %v2486, %v2493
        %v2496 = vunpack.c.l.s4 1934713408
        %v2497 = vunpack.c.0.s8 %v2496
        %v2498 = vlaneseq
        %v2499 = vshrl.u32 %v2498, 7
        %v2500 = vsub.s32 %v2497, %v2499
        %v2501 = vrot.slane %v2487, %v2500
        %v2502 = vcombine.low %v2477, %v2485
        %v2503 = vcombine.high %v2477, %v2485
        %v2505 = vunpack.c.l.s4 1934713408
        %v2506 = vunpack.c.0.s8 %v2505
        %v2507 = vlaneseq
        %v2508 = vshrl.u32 %v2507, 7
        %v2509 = vsub.s32 %v2506, %v2508
        %v2510 = vrot.slane %v2502, %v2509
        %v2512 = vunpack.c.l.s4 1934713408
        %v2513 = vunpack.c.0.s8 %v2512
        %v2514 = vlaneseq
        %v2515 = vshrl.u32 %v2514, 7
        %v2516 = vsub.s32 %v2513, %v2515
        %v2517 = vrot.slane %v2503, %v2516
        %v2518 = vcombine.low %v2494, %v2510
        %v2519 = vcombine.high %v2494, %v2510
        %v2520 = vcombine.low %v2501, %v2517
        %v2521 = vcombine.high %v2501, %v2517
        %v2522 = vpack.c.bf16 %v2222, %v2222
        %v2523 = vpack.c.bf16 %v2223, %v2223
        %v2524 = vpack.c.bf16 %v2224, %v2224
        %v2525 = vpack.c.bf16 %v2225, %v2225
        %v2526 = vpack.c.bf16 %v2370, %v2370
        %v2527 = vpack.c.bf16 %v2371, %v2371
        %v2528 = vpack.c.bf16 %v2372, %v2372
        %v2529 = vpack.c.bf16 %v2373, %v2373
        %v2531 = vsel %vm1141, %v2522, 0
        %v2534 = vsel %vm1141, %v2526, 0
        %2536 = vmatprep.subr.bf16.mxu0 0
        %2537 = vmatpush1.bf16.xpose.msra.mxu0 %v2534
        %2538 = vmatprep.subr.bf16.mxu0 0
        %2539 = vmatpush1.bf16.xpose.msra.mxu0 0
        %2540 = vmatprep.subr.bf16.mxu0 0
        %2541 = vmatpush1.bf16.xpose.msra.mxu0 0
        %2542 = vmatprep.subr.bf16.mxu0 0
        %2543 = vmatpush1.bf16.xpose.msra.mxu0 0
        %2544 = vmatprep.subr.bf16.mxu0 0
        %2545 = vmatpush1.bf16.xpose.msra.mxu0 0
        %2546 = vmatprep.subr.bf16.mxu0 0
        %2547 = vmatpush1.bf16.xpose.msra.mxu0 0
        %2548 = vmatprep.subr.bf16.mxu0 0
        %2549 = vmatpush1.bf16.xpose.msra.mxu0 0
        %2550 = vmatprep.subr.bf16.mxu0 0
        %2551 = vmatpush1.bf16.xpose.msra.mxu0 0
        %2552 = vmatprep.subr.bf16.mxu0 0
        %2553 = vmatpush1.bf16.xpose.msra.mxu0 0
        %2554 = vmatprep.subr.bf16.mxu0 0
        %2555 = vmatpush1.bf16.xpose.msra.mxu0 0
        %2556 = vmatprep.subr.bf16.mxu0 0
        %2557 = vmatpush1.bf16.xpose.msra.mxu0 0
        %2558 = vmatprep.subr.bf16.mxu0 0
        %2559 = vmatpush1.bf16.xpose.msra.mxu0 0
        %2560 = vmatprep.subr.bf16.mxu0 0
        %2561 = vmatpush1.bf16.xpose.msra.mxu0 0
        %2562 = vmatprep.subr.bf16.mxu0 0
        %2563 = vmatpush1.bf16.xpose.msra.mxu0 0
        %2564 = vmatprep.subr.bf16.mxu0 0
        %2565 = vmatpush1.bf16.xpose.msra.mxu0 0
        %2566 = vmatprep.subr.bf16.mxu0 0
        %2567 = vmatpush1.bf16.xpose.msra.mxu0 0
        %2568 = vmatprep.mubr.bf16.mxu0 0
        %2569 = vmatmul.mubr.bf16.gmra.mrb[0].mxu0 %v2531
        %v2570 = vpop.f32.mrb[0].mxu0
        %v2571 = vadd.f32 0.0, %v2570
        %v2572 = vpop.f32.mrb[0].mxu0
        %v2573 = vpop.f32.mrb[0].mxu0
        %v2574 = vpop.f32.mrb[0].mxu0
        %2575 = vdwg.mxu0
        %v2577 = vsel %vm1141, %v2523, 0
        %v2580 = vsel %vm1141, %v2527, 0
        %2582 = vmatprep.subr.bf16.mxu0 0
        %2583 = vmatpush1.bf16.xpose.msra.mxu0 %v2580
        %2584 = vmatprep.subr.bf16.mxu0 0
        %2585 = vmatpush1.bf16.xpose.msra.mxu0 0
        %2586 = vmatprep.subr.bf16.mxu0 0
        %2587 = vmatpush1.bf16.xpose.msra.mxu0 0
        %2588 = vmatprep.subr.bf16.mxu0 0
        %2589 = vmatpush1.bf16.xpose.msra.mxu0 0
        %2590 = vmatprep.subr.bf16.mxu0 0
        %2591 = vmatpush1.bf16.xpose.msra.mxu0 0
        %2592 = vmatprep.subr.bf16.mxu0 0
        %2593 = vmatpush1.bf16.xpose.msra.mxu0 0
        %2594 = vmatprep.subr.bf16.mxu0 0
        %2595 = vmatpush1.bf16.xpose.msra.mxu0 0
        %2596 = vmatprep.subr.bf16.mxu0 0
        %2597 = vmatpush1.bf16.xpose.msra.mxu0 0
        %2598 = vmatprep.subr.bf16.mxu0 0
        %2599 = vmatpush1.bf16.xpose.msra.mxu0 0
        %2600 = vmatprep.subr.bf16.mxu0 0
        %2601 = vmatpush1.bf16.xpose.msra.mxu0 0
        %2602 = vmatprep.subr.bf16.mxu0 0
        %2603 = vmatpush1.bf16.xpose.msra.mxu0 0
        %2604 = vmatprep.subr.bf16.mxu0 0
        %2605 = vmatpush1.bf16.xpose.msra.mxu0 0
        %2606 = vmatprep.subr.bf16.mxu0 0
        %2607 = vmatpush1.bf16.xpose.msra.mxu0 0
        %2608 = vmatprep.subr.bf16.mxu0 0
        %2609 = vmatpush1.bf16.xpose.msra.mxu0 0
        %2610 = vmatprep.subr.bf16.mxu0 0
        %2611 = vmatpush1.bf16.xpose.msra.mxu0 0
        %2612 = vmatprep.subr.bf16.mxu0 0
        %2613 = vmatpush1.bf16.xpose.msra.mxu0 0
        %2614 = vmatprep.mubr.bf16.mxu0 0
        %2615 = vmatmul.mubr.bf16.gmra.mrb[0].mxu0 %v2577
        %v2616 = vpop.f32.mrb[0].mxu0
        %v2617 = vadd.f32 0.0, %v2616
        %v2618 = vpop.f32.mrb[0].mxu0
        %v2619 = vpop.f32.mrb[0].mxu0
        %v2620 = vpop.f32.mrb[0].mxu0
        %2621 = vdwg.mxu0
        %v2623 = vsel %vm1141, %v2524, 0
        %v2626 = vsel %vm1141, %v2528, 0
        %2628 = vmatprep.subr.bf16.mxu0 0
        %2629 = vmatpush1.bf16.xpose.msra.mxu0 %v2626
        %2630 = vmatprep.subr.bf16.mxu0 0
        %2631 = vmatpush1.bf16.xpose.msra.mxu0 0
        %2632 = vmatprep.subr.bf16.mxu0 0
        %2633 = vmatpush1.bf16.xpose.msra.mxu0 0
        %2634 = vmatprep.subr.bf16.mxu0 0
        %2635 = vmatpush1.bf16.xpose.msra.mxu0 0
        %2636 = vmatprep.subr.bf16.mxu0 0
        %2637 = vmatpush1.bf16.xpose.msra.mxu0 0
        %2638 = vmatprep.subr.bf16.mxu0 0
        %2639 = vmatpush1.bf16.xpose.msra.mxu0 0
        %2640 = vmatprep.subr.bf16.mxu0 0
        %2641 = vmatpush1.bf16.xpose.msra.mxu0 0
        %2642 = vmatprep.subr.bf16.mxu0 0
        %2643 = vmatpush1.bf16.xpose.msra.mxu0 0
        %2644 = vmatprep.subr.bf16.mxu0 0
        %2645 = vmatpush1.bf16.xpose.msra.mxu0 0
        %2646 = vmatprep.subr.bf16.mxu0 0
        %2647 = vmatpush1.bf16.xpose.msra.mxu0 0
        %2648 = vmatprep.subr.bf16.mxu0 0
        %2649 = vmatpush1.bf16.xpose.msra.mxu0 0
        %2650 = vmatprep.subr.bf16.mxu0 0
        %2651 = vmatpush1.bf16.xpose.msra.mxu0 0
        %2652 = vmatprep.subr.bf16.mxu0 0
        %2653 = vmatpush1.bf16.xpose.msra.mxu0 0
        %2654 = vmatprep.subr.bf16.mxu0 0
        %2655 = vmatpush1.bf16.xpose.msra.mxu0 0
        %2656 = vmatprep.subr.bf16.mxu0 0
        %2657 = vmatpush1.bf16.xpose.msra.mxu0 0
        %2658 = vmatprep.subr.bf16.mxu0 0
        %2659 = vmatpush1.bf16.xpose.msra.mxu0 0
        %2660 = vmatprep.mubr.bf16.mxu0 0
        %2661 = vmatmul.mubr.bf16.gmra.mrb[0].mxu0 %v2623
        %v2662 = vpop.f32.mrb[0].mxu0
        %v2663 = vadd.f32 0.0, %v2662
        %v2664 = vpop.f32.mrb[0].mxu0
        %v2665 = vpop.f32.mrb[0].mxu0
        %v2666 = vpop.f32.mrb[0].mxu0
        %2667 = vdwg.mxu0
        %v2669 = vsel %vm1141, %v2525, 0
        %v2672 = vsel %vm1141, %v2529, 0
        %2674 = vmatprep.subr.bf16.mxu0 0
        %2675 = vmatpush1.bf16.xpose.msra.mxu0 %v2672
        %2676 = vmatprep.subr.bf16.mxu0 0
        %2677 = vmatpush1.bf16.xpose.msra.mxu0 0
        %2678 = vmatprep.subr.bf16.mxu0 0
        %2679 = vmatpush1.bf16.xpose.msra.mxu0 0
        %2680 = vmatprep.subr.bf16.mxu0 0
        %2681 = vmatpush1.bf16.xpose.msra.mxu0 0
        %2682 = vmatprep.subr.bf16.mxu0 0
        %2683 = vmatpush1.bf16.xpose.msra.mxu0 0
        %2684 = vmatprep.subr.bf16.mxu0 0
        %2685 = vmatpush1.bf16.xpose.msra.mxu0 0
        %2686 = vmatprep.subr.bf16.mxu0 0
        %2687 = vmatpush1.bf16.xpose.msra.mxu0 0
        %2688 = vmatprep.subr.bf16.mxu0 0
        %2689 = vmatpush1.bf16.xpose.msra.mxu0 0
        %2690 = vmatprep.subr.bf16.mxu0 0
        %2691 = vmatpush1.bf16.xpose.msra.mxu0 0
        %2692 = vmatprep.subr.bf16.mxu0 0
        %2693 = vmatpush1.bf16.xpose.msra.mxu0 0
        %2694 = vmatprep.subr.bf16.mxu0 0
        %2695 = vmatpush1.bf16.xpose.msra.mxu0 0
        %2696 = vmatprep.subr.bf16.mxu0 0
        %2697 = vmatpush1.bf16.xpose.msra.mxu0 0
        %2698 = vmatprep.subr.bf16.mxu0 0
        %2699 = vmatpush1.bf16.xpose.msra.mxu0 0
        %2700 = vmatprep.subr.bf16.mxu0 0
        %2701 = vmatpush1.bf16.xpose.msra.mxu0 0
        %2702 = vmatprep.subr.bf16.mxu0 0
        %2703 = vmatpush1.bf16.xpose.msra.mxu0 0
        %2704 = vmatprep.subr.bf16.mxu0 0
        %2705 = vmatpush1.bf16.xpose.msra.mxu0 0
        %2706 = vmatprep.mubr.bf16.mxu0 0
        %2707 = vmatmul.mubr.bf16.gmra.mrb[0].mxu0 %v2669
        %v2708 = vpop.f32.mrb[0].mxu0
        %v2709 = vadd.f32 0.0, %v2708
        %v2710 = vpop.f32.mrb[0].mxu0
        %v2711 = vpop.f32.mrb[0].mxu0
        %v2712 = vpop.f32.mrb[0].mxu0
        %2713 = vdwg.mxu0
        %v2714 = vmul.f32 %v2571, 0.35355338
        %v2715 = vmul.f32 %v2617, 0.35355338
        %v2716 = vmul.f32 %v2663, 0.35355338
        %v2717 = vmul.f32 %v2709, 0.35355338
        %v2718 = vadd.f32 %v2714, %v622
        %v2719 = vadd.f32 %v2715, %v622
        %v2720 = vadd.f32 %v2716, %v622
        %v2721 = vadd.f32 %v2717, %v622
        %v2722 = vsel %vm1141, %v2718, -inf
        %2723 = vmax.xlane.f32.xlu0 %v2722
        %v2724 = vpop.xlane.xlu0 %2723
        %v2725 = vsel %vm1141, %v2719, -inf
        %2726 = vmax.xlane.f32.xlu0 %v2725
        %v2727 = vpop.xlane.xlu0 %2726
        %v2728 = vsel %vm1141, %v2720, -inf
        %2729 = vmax.xlane.f32.xlu0 %v2728
        %v2730 = vpop.xlane.xlu0 %2729
        %v2731 = vsel %vm1141, %v2721, -inf
        %2732 = vmax.xlane.f32.xlu0 %v2731
        %v2733 = vpop.xlane.xlu0 %2732
        %v2734 = vsub.f32 %v2718, %v2724
        %v2735 = vsub.f32 %v2719, %v2727
        %v2736 = vsub.f32 %v2720, %v2730
        %v2737 = vsub.f32 %v2721, %v2733
        %v2738 = vmul.f32 %v2734, 1.442695
        %v2739 = vpow.pop %v2738
        %v2740 = vmul.f32 %v2735, 1.442695
        %v2741 = vpow.pop %v2740
        %v2742 = vmul.f32 %v2736, 1.442695
        %v2743 = vpow.pop %v2742
        %v2744 = vmul.f32 %v2737, 1.442695
        %v2745 = vpow.pop %v2744
        %v2746 = vsel %vm1141, %v2739, 0.0
        %2747 = vadd.xlane.f32.xlu0 %v2746
        %v2748 = vpop.xlane.xlu0 %2747
        %v2749 = vsel %vm1141, %v2741, 0.0
        %2750 = vadd.xlane.f32.xlu0 %v2749
        %v2751 = vpop.xlane.xlu0 %2750
        %v2752 = vsel %vm1141, %v2743, 0.0
        %2753 = vadd.xlane.f32.xlu0 %v2752
        %v2754 = vpop.xlane.xlu0 %2753
        %v2755 = vsel %vm1141, %v2745, 0.0
        %2756 = vadd.xlane.f32.xlu0 %v2755
        %v2757 = vpop.xlane.xlu0 %2756
        %v2758 = vrcp.pop %v2748
        %v2759 = vmul.f32 %v2739, %v2758
        %v2760 = vrcp.pop %v2751
        %v2761 = vmul.f32 %v2741, %v2760
        %v2762 = vrcp.pop %v2754
        %v2763 = vmul.f32 %v2743, %v2762
        %v2764 = vrcp.pop %v2757
        %v2765 = vmul.f32 %v2745, %v2764
        %v2766 = vpack.c.bf16 %v2759, %v2759
        %v2767 = vpack.c.bf16 %v2761, %v2761
        %v2768 = vpack.c.bf16 %v2763, %v2763
        %v2769 = vpack.c.bf16 %v2765, %v2765
        %v2770 = vpack.c.bf16 %v2518, %v2518
        %v2771 = vpack.c.bf16 %v2519, %v2519
        %v2772 = vpack.c.bf16 %v2520, %v2520
        %v2773 = vpack.c.bf16 %v2521, %v2521
        %v2775 = vsel %vm1141, %v2766, 0
        %v2778 = vsel %vm1389, %v2770, 0
        %2780 = vmatprep.subr.bf16.mxu0 0
        %2781 = vmatpush1.bf16.msra.mxu0 %v2778
        %2782 = vmatprep.subr.bf16.mxu0 0
        %2783 = vmatpush1.bf16.msra.mxu0 0
        %2784 = vmatprep.subr.bf16.mxu0 0
        %2785 = vmatpush1.bf16.msra.mxu0 0
        %2786 = vmatprep.subr.bf16.mxu0 0
        %2787 = vmatpush1.bf16.msra.mxu0 0
        %2788 = vmatprep.subr.bf16.mxu0 0
        %2789 = vmatpush1.bf16.msra.mxu0 0
        %2790 = vmatprep.subr.bf16.mxu0 0
        %2791 = vmatpush1.bf16.msra.mxu0 0
        %2792 = vmatprep.subr.bf16.mxu0 0
        %2793 = vmatpush1.bf16.msra.mxu0 0
        %2794 = vmatprep.subr.bf16.mxu0 0
        %2795 = vmatpush1.bf16.msra.mxu0 0
        %2796 = vmatprep.subr.bf16.mxu0 0
        %2797 = vmatpush1.bf16.msra.mxu0 0
        %2798 = vmatprep.subr.bf16.mxu0 0
        %2799 = vmatpush1.bf16.msra.mxu0 0
        %2800 = vmatprep.subr.bf16.mxu0 0
        %2801 = vmatpush1.bf16.msra.mxu0 0
        %2802 = vmatprep.subr.bf16.mxu0 0
        %2803 = vmatpush1.bf16.msra.mxu0 0
        %2804 = vmatprep.subr.bf16.mxu0 0
        %2805 = vmatpush1.bf16.msra.mxu0 0
        %2806 = vmatprep.subr.bf16.mxu0 0
        %2807 = vmatpush1.bf16.msra.mxu0 0
        %2808 = vmatprep.subr.bf16.mxu0 0
        %2809 = vmatpush1.bf16.msra.mxu0 0
        %2810 = vmatprep.subr.bf16.mxu0 0
        %2811 = vmatpush1.bf16.msra.mxu0 0
        %2812 = vmatprep.mubr.bf16.mxu0 0
        %2813 = vmatmul.mubr.bf16.gmra.mrb[0].mxu0 %v2775
        %v2814 = vpop.f32.mrb[0].mxu0
        %v2815 = vadd.f32 0.0, %v2814
        %v2816 = vpop.f32.mrb[0].mxu0
        %v2817 = vpop.f32.mrb[0].mxu0
        %v2818 = vpop.f32.mrb[0].mxu0
        %2819 = vdwg.mxu0
        %v2821 = vsel %vm1141, %v2767, 0
        %v2824 = vsel %vm1389, %v2771, 0
        %2826 = vmatprep.subr.bf16.mxu0 0
        %2827 = vmatpush1.bf16.msra.mxu0 %v2824
        %2828 = vmatprep.subr.bf16.mxu0 0
        %2829 = vmatpush1.bf16.msra.mxu0 0
        %2830 = vmatprep.subr.bf16.mxu0 0
        %2831 = vmatpush1.bf16.msra.mxu0 0
        %2832 = vmatprep.subr.bf16.mxu0 0
        %2833 = vmatpush1.bf16.msra.mxu0 0
        %2834 = vmatprep.subr.bf16.mxu0 0
        %2835 = vmatpush1.bf16.msra.mxu0 0
        %2836 = vmatprep.subr.bf16.mxu0 0
        %2837 = vmatpush1.bf16.msra.mxu0 0
        %2838 = vmatprep.subr.bf16.mxu0 0
        %2839 = vmatpush1.bf16.msra.mxu0 0
        %2840 = vmatprep.subr.bf16.mxu0 0
        %2841 = vmatpush1.bf16.msra.mxu0 0
        %2842 = vmatprep.subr.bf16.mxu0 0
        %2843 = vmatpush1.bf16.msra.mxu0 0
        %2844 = vmatprep.subr.bf16.mxu0 0
        %2845 = vmatpush1.bf16.msra.mxu0 0
        %2846 = vmatprep.subr.bf16.mxu0 0
        %2847 = vmatpush1.bf16.msra.mxu0 0
        %2848 = vmatprep.subr.bf16.mxu0 0
        %2849 = vmatpush1.bf16.msra.mxu0 0
        %2850 = vmatprep.subr.bf16.mxu0 0
        %2851 = vmatpush1.bf16.msra.mxu0 0
        %2852 = vmatprep.subr.bf16.mxu0 0
        %2853 = vmatpush1.bf16.msra.mxu0 0
        %2854 = vmatprep.subr.bf16.mxu0 0
        %2855 = vmatpush1.bf16.msra.mxu0 0
        %2856 = vmatprep.subr.bf16.mxu0 0
        %2857 = vmatpush1.bf16.msra.mxu0 0
        %2858 = vmatprep.mubr.bf16.mxu0 0
        %2859 = vmatmul.mubr.bf16.gmra.mrb[0].mxu0 %v2821
        %v2860 = vpop.f32.mrb[0].mxu0
        %v2861 = vadd.f32 0.0, %v2860
        %v2862 = vpop.f32.mrb[0].mxu0
        %v2863 = vpop.f32.mrb[0].mxu0
        %v2864 = vpop.f32.mrb[0].mxu0
        %2865 = vdwg.mxu0
        %v2867 = vsel %vm1141, %v2768, 0
        %v2870 = vsel %vm1389, %v2772, 0
        %2872 = vmatprep.subr.bf16.mxu0 0
        %2873 = vmatpush1.bf16.msra.mxu0 %v2870
        %2874 = vmatprep.subr.bf16.mxu0 0
        %2875 = vmatpush1.bf16.msra.mxu0 0
        %2876 = vmatprep.subr.bf16.mxu0 0
        %2877 = vmatpush1.bf16.msra.mxu0 0
        %2878 = vmatprep.subr.bf16.mxu0 0
        %2879 = vmatpush1.bf16.msra.mxu0 0
        %2880 = vmatprep.subr.bf16.mxu0 0
        %2881 = vmatpush1.bf16.msra.mxu0 0
        %2882 = vmatprep.subr.bf16.mxu0 0
        %2883 = vmatpush1.bf16.msra.mxu0 0
        %2884 = vmatprep.subr.bf16.mxu0 0
        %2885 = vmatpush1.bf16.msra.mxu0 0
        %2886 = vmatprep.subr.bf16.mxu0 0
        %2887 = vmatpush1.bf16.msra.mxu0 0
        %2888 = vmatprep.subr.bf16.mxu0 0
        %2889 = vmatpush1.bf16.msra.mxu0 0
        %2890 = vmatprep.subr.bf16.mxu0 0
        %2891 = vmatpush1.bf16.msra.mxu0 0
        %2892 = vmatprep.subr.bf16.mxu0 0
        %2893 = vmatpush1.bf16.msra.mxu0 0
        %2894 = vmatprep.subr.bf16.mxu0 0
        %2895 = vmatpush1.bf16.msra.mxu0 0
        %2896 = vmatprep.subr.bf16.mxu0 0
        %2897 = vmatpush1.bf16.msra.mxu0 0
        %2898 = vmatprep.subr.bf16.mxu0 0
        %2899 = vmatpush1.bf16.msra.mxu0 0
        %2900 = vmatprep.subr.bf16.mxu0 0
        %2901 = vmatpush1.bf16.msra.mxu0 0
        %2902 = vmatprep.subr.bf16.mxu0 0
        %2903 = vmatpush1.bf16.msra.mxu0 0
        %2904 = vmatprep.mubr.bf16.mxu0 0
        %2905 = vmatmul.mubr.bf16.gmra.mrb[0].mxu0 %v2867
        %v2906 = vpop.f32.mrb[0].mxu0
        %v2907 = vadd.f32 0.0, %v2906
        %v2908 = vpop.f32.mrb[0].mxu0
        %v2909 = vpop.f32.mrb[0].mxu0
        %v2910 = vpop.f32.mrb[0].mxu0
        %2911 = vdwg.mxu0
        %v2913 = vsel %vm1141, %v2769, 0
        %v2916 = vsel %vm1389, %v2773, 0
        %2918 = vmatprep.subr.bf16.mxu0 0
        %2919 = vmatpush1.bf16.msra.mxu0 %v2916
        %2920 = vmatprep.subr.bf16.mxu0 0
        %2921 = vmatpush1.bf16.msra.mxu0 0
        %2922 = vmatprep.subr.bf16.mxu0 0
        %2923 = vmatpush1.bf16.msra.mxu0 0
        %2924 = vmatprep.subr.bf16.mxu0 0
        %2925 = vmatpush1.bf16.msra.mxu0 0
        %2926 = vmatprep.subr.bf16.mxu0 0
        %2927 = vmatpush1.bf16.msra.mxu0 0
        %2928 = vmatprep.subr.bf16.mxu0 0
        %2929 = vmatpush1.bf16.msra.mxu0 0
        %2930 = vmatprep.subr.bf16.mxu0 0
        %2931 = vmatpush1.bf16.msra.mxu0 0
        %2932 = vmatprep.subr.bf16.mxu0 0
        %2933 = vmatpush1.bf16.msra.mxu0 0
        %2934 = vmatprep.subr.bf16.mxu0 0
        %2935 = vmatpush1.bf16.msra.mxu0 0
        %2936 = vmatprep.subr.bf16.mxu0 0
        %2937 = vmatpush1.bf16.msra.mxu0 0
        %2938 = vmatprep.subr.bf16.mxu0 0
        %2939 = vmatpush1.bf16.msra.mxu0 0
        %2940 = vmatprep.subr.bf16.mxu0 0
        %2941 = vmatpush1.bf16.msra.mxu0 0
        %2942 = vmatprep.subr.bf16.mxu0 0
        %2943 = vmatpush1.bf16.msra.mxu0 0
        %2944 = vmatprep.subr.bf16.mxu0 0
        %2945 = vmatpush1.bf16.msra.mxu0 0
        %2946 = vmatprep.subr.bf16.mxu0 0
        %2947 = vmatpush1.bf16.msra.mxu0 0
        %2948 = vmatprep.subr.bf16.mxu0 0
        %2949 = vmatpush1.bf16.msra.mxu0 0
        %2950 = vmatprep.mubr.bf16.mxu0 0
        %2951 = vmatmul.mubr.bf16.gmra.mrb[0].mxu0 %v2913
        %v2952 = vpop.f32.mrb[0].mxu0
        %v2953 = vadd.f32 0.0, %v2952
        %v2954 = vpop.f32.mrb[0].mxu0
        %v2955 = vpop.f32.mrb[0].mxu0
        %v2956 = vpop.f32.mrb[0].mxu0
        %2957 = vdwg.mxu0
        %v2958 = vcombine.low %v2815, %v2907
        %v2959 = vcombine.high %v2815, %v2907
        %v2961 = vunpack.c.l.s4 1983009808
        %v2962 = vunpack.c.0.s8 %v2961
        %v2963 = vlaneseq
        %v2964 = vshrl.u32 %v2963, 7
        %v2965 = vsub.s32 %v2962, %v2964
        %v2966 = vrot.slane %v2958, %v2965
        %v2968 = vunpack.c.l.s4 1983009808
        %v2969 = vunpack.c.0.s8 %v2968
        %v2970 = vlaneseq
        %v2971 = vshrl.u32 %v2970, 7
        %v2972 = vsub.s32 %v2969, %v2971
        %v2973 = vrot.slane %v2959, %v2972
        %v2974 = vcombine.low %v2861, %v2953
        %v2975 = vcombine.high %v2861, %v2953
        %v2977 = vunpack.c.l.s4 1983009808
        %v2978 = vunpack.c.0.s8 %v2977
        %v2979 = vlaneseq
        %v2980 = vshrl.u32 %v2979, 7
        %v2981 = vsub.s32 %v2978, %v2980
        %v2982 = vrot.slane %v2974, %v2981
        %v2984 = vunpack.c.l.s4 1983009808
        %v2985 = vunpack.c.0.s8 %v2984
        %v2986 = vlaneseq
        %v2987 = vshrl.u32 %v2986, 7
        %v2988 = vsub.s32 %v2985, %v2987
        %v2989 = vrot.slane %v2975, %v2988
        %v2990 = vcombine.low %v2966, %v2982
        %v2991 = vcombine.high %v2966, %v2982
        %v2993 = vunpack.c.l.s4 1934713408
        %v2994 = vunpack.c.0.s8 %v2993
        %v2995 = vlaneseq
        %v2996 = vshrl.u32 %v2995, 7
        %v2997 = vsub.s32 %v2994, %v2996
        %v2998 = vrot.slane %v2990, %v2997
        %v3000 = vunpack.c.l.s4 1934713408
        %v3001 = vunpack.c.0.s8 %v3000
        %v3002 = vlaneseq
        %v3003 = vshrl.u32 %v3002, 7
        %v3004 = vsub.s32 %v3001, %v3003
        %v3005 = vrot.slane %v2991, %v3004
        %v3006 = vcombine.low %v2973, %v2989
        %v3007 = vcombine.high %v2973, %v2989
        %v3009 = vunpack.c.l.s4 1934713408
        %v3010 = vunpack.c.0.s8 %v3009
        %v3011 = vlaneseq
        %v3012 = vshrl.u32 %v3011, 7
        %v3013 = vsub.s32 %v3010, %v3012
        %v3014 = vrot.slane %v3006, %v3013
        %v3016 = vunpack.c.l.s4 1934713408
        %v3017 = vunpack.c.0.s8 %v3016
        %v3018 = vlaneseq
        %v3019 = vshrl.u32 %v3018, 7
        %v3020 = vsub.s32 %v3017, %v3019
        %v3021 = vrot.slane %v3007, %v3020
        %v3022 = vcombine.high %v2998, 0.0
        %v3023 = vcombine.high %v3005, 0.0
        %v3024 = vcombine.high %v3014, 0.0
        %v3025 = vcombine.high %v3021, 0.0
        %v3026 = vcombine.low %v2998, %v3005
        %v3028 = vunpack.c.l.s4 1983009808
        %v3029 = vunpack.c.0.s8 %v3028
        %v3030 = vlaneseq
        %v3031 = vshrl.u32 %v3030, 7
        %v3032 = vsub.s32 %v3029, %v3031
        %v3033 = vrot.slane %v3026, %v3032
        %v3034 = vcombine.low %v3022, %v3023
        %v3036 = vunpack.c.l.s4 1983009808
        %v3037 = vunpack.c.0.s8 %v3036
        %v3038 = vlaneseq
        %v3039 = vshrl.u32 %v3038, 7
        %v3040 = vsub.s32 %v3037, %v3039
        %v3041 = vrot.slane %v3034, %v3040
        %v3042 = vcombine.low %v3014, %v3021
        %v3044 = vunpack.c.l.s4 1983009808
        %v3045 = vunpack.c.0.s8 %v3044
        %v3046 = vlaneseq
        %v3047 = vshrl.u32 %v3046, 7
        %v3048 = vsub.s32 %v3045, %v3047
        %v3049 = vrot.slane %v3042, %v3048
        %v3050 = vcombine.low %v3024, %v3025
        %v3052 = vunpack.c.l.s4 1983009808
        %v3053 = vunpack.c.0.s8 %v3052
        %v3054 = vlaneseq
        %v3055 = vshrl.u32 %v3054, 7
        %v3056 = vsub.s32 %v3053, %v3055
        %v3057 = vrot.slane %v3050, %v3056
        %v3058 = vcombine.low %v3033, %v3041
        %v3059 = vcombine.high %v3033, %v3041
        %v3061 = vunpack.c.l.s4 1934713408
        %v3062 = vunpack.c.0.s8 %v3061
        %v3063 = vlaneseq
        %v3064 = vshrl.u32 %v3063, 7
        %v3065 = vsub.s32 %v3062, %v3064
        %v3066 = vrot.slane %v3058, %v3065
        %v3068 = vunpack.c.l.s4 1934713408
        %v3069 = vunpack.c.0.s8 %v3068
        %v3070 = vlaneseq
        %v3071 = vshrl.u32 %v3070, 7
        %v3072 = vsub.s32 %v3069, %v3071
        %v3073 = vrot.slane %v3059, %v3072
        %v3074 = vcombine.low %v3049, %v3057
        %v3075 = vcombine.high %v3049, %v3057
        %v3077 = vunpack.c.l.s4 1934713408
        %v3078 = vunpack.c.0.s8 %v3077
        %v3079 = vlaneseq
        %v3080 = vshrl.u32 %v3079, 7
        %v3081 = vsub.s32 %v3078, %v3080
        %v3082 = vrot.slane %v3074, %v3081
        %v3084 = vunpack.c.l.s4 1934713408
        %v3085 = vunpack.c.0.s8 %v3084
        %v3086 = vlaneseq
        %v3087 = vshrl.u32 %v3086, 7
        %v3088 = vsub.s32 %v3085, %v3087
        %v3089 = vrot.slane %v3075, %v3088
        %v3090 = vcombine.low %v3066, %v3082
        %v3091 = vcombine.high %v3066, %v3082
        %v3092 = vcombine.low %v3073, %v3089
        %v3093 = vcombine.high %v3073, %v3089
        %3095 = vrot.lane.b32.xlu0 %v3091, 8
        %v3096 = vpop.permute.xlu0 %3095
        %3099 = vrot.lane.b32.xlu0 %v3092, 16
        %v3100 = vpop.permute.xlu0 %3099
        %3103 = vrot.lane.b32.xlu0 %v3093, 24
        %v3104 = vpop.permute.xlu0 %3103
        %v3106 = vsel %vm1141, %v3090, %v3096
        %v3107 = vsel %vm1720, %v3106, %v3100
        %v3108 = vsel %vm1722, %v3107, %v3104
        %v3109 = vpack.c.bf16 %v3108, %v3108
        %s3110 = scalar_lea.vmem %s6, 16
        %v3111 = vld [vmem:[%s3110] sm:$0xf]
        %v3112 = vld [vmem:[%s3110 + $0x4] sm:$0xf]
        %v3113 = vld [vmem:[%s3110 + $0x8] sm:$0xf]
        %v3114 = vld [vmem:[%s3110 + $0xc] sm:$0xf]
        %s3115 = scalar_lea.vmem %s7, 1
        %v3116 = vld [vmem:[%s3115] sm:$0x1]
        %v3118 = vlaneseq
        %v3119 = vshrl.u32 %v3118, 7
        %v3120 = vsub.s32 0, %v3119
        %v3121 = vrot.slane %v3116, %v3120
        %v3127 = vunpack.c.l.b16 %v3111
        %v3128 = vunpack.c.l.b16 %v3112
        %v3129 = vunpack.c.l.b16 %v3113
        %v3130 = vunpack.c.l.b16 %v3114
        %v3131 = vpack.c.b16 %v3128, %v3127
        %v3132 = vpack.c.b16 %v3130, %v3129
        %v3136 = vsel %vm588, %v3109, 0
        %3138 = vmatprep.subr.bf16.mxu0 0
        %3139 = vmatpush1.bf16.msra.mxu0 %v3131
        %3140 = vmatprep.subr.bf16.mxu0 0
        %3141 = vmatpush1.bf16.msra.mxu0 %v3132
        %3142 = vmatprep.subr.bf16.mxu0 0
        %3143 = vmatpush1.bf16.msra.mxu0 0
        %3144 = vmatprep.subr.bf16.mxu0 0
        %3145 = vmatpush1.bf16.msra.mxu0 0
        %3146 = vmatprep.subr.bf16.mxu0 0
        %3147 = vmatpush1.bf16.msra.mxu0 0
        %3148 = vmatprep.subr.bf16.mxu0 0
        %3149 = vmatpush1.bf16.msra.mxu0 0
        %3150 = vmatprep.subr.bf16.mxu0 0
        %3151 = vmatpush1.bf16.msra.mxu0 0
        %3152 = vmatprep.subr.bf16.mxu0 0
        %3153 = vmatpush1.bf16.msra.mxu0 0
        %3154 = vmatprep.subr.bf16.mxu0 0
        %3155 = vmatpush1.bf16.msra.mxu0 0
        %3156 = vmatprep.subr.bf16.mxu0 0
        %3157 = vmatpush1.bf16.msra.mxu0 0
        %3158 = vmatprep.subr.bf16.mxu0 0
        %3159 = vmatpush1.bf16.msra.mxu0 0
        %3160 = vmatprep.subr.bf16.mxu0 0
        %3161 = vmatpush1.bf16.msra.mxu0 0
        %3162 = vmatprep.subr.bf16.mxu0 0
        %3163 = vmatpush1.bf16.msra.mxu0 0
        %3164 = vmatprep.subr.bf16.mxu0 0
        %3165 = vmatpush1.bf16.msra.mxu0 0
        %3166 = vmatprep.subr.bf16.mxu0 0
        %3167 = vmatpush1.bf16.msra.mxu0 0
        %3168 = vmatprep.subr.bf16.mxu0 0
        %3169 = vmatpush1.bf16.msra.mxu0 0
        %3170 = vmatprep.mubr.bf16.mxu0 0
        %3171 = vmatmul.mubr.bf16.gmra.mrb[0].mxu0 %v3136
        %v3172 = vpop.f32.mrb[0].mxu0
        %v3173 = vadd.f32 %v3121, %v3172
        %v3174 = vpop.f32.mrb[0].mxu0
        %v3175 = vpop.f32.mrb[0].mxu0
        %v3176 = vpop.f32.mrb[0].mxu0
        %3177 = vdwg.mxu0
        %v3178 = vadd.f32 %v3173, %v2010
        %s3179 = scalar_lea.vmem %s8, 1
        %v3180 = vld [vmem:[%s3179] sm:$0x1]
        %s3181 = scalar_lea.vmem %s9, 1
        %v3182 = vld [vmem:[%s3181] sm:$0x1]
        %v3183 = vsel %vm588, %v3178, 0.0
        %3184 = vadd.xlane.f32.xlu0 %v3183
        %v3185 = vpop.xlane.xlu0 %3184
        %v3186 = vmul.f32 %v3185, %v592
        %v3187 = vsub.f32 %v3178, %v3186
        %v3188 = vmul.f32 %v3187, %v3187
        %v3189 = vsel %vm588, %v3188, 0.0
        %3190 = vadd.xlane.f32.xlu0 %v3189
        %v3191 = vpop.xlane.xlu0 %3190
        %v3192 = vmul.f32 %v3191, %v592
        %v3193 = vadd.f32 %v3192, 1e-12
        %v3194 = vrsqrt.pop %v3193
        %v3195 = vmul.f32 %v3187, %v3194
        %v3197 = vlaneseq
        %v3198 = vshrl.u32 %v3197, 7
        %v3199 = vsub.s32 0, %v3198
        %v3200 = vrot.slane %v3180, %v3199
        %v3202 = vmul.f32 %v3195, %v3200
        %v3204 = vlaneseq
        %v3205 = vshrl.u32 %v3204, 7
        %v3206 = vsub.s32 0, %v3205
        %v3207 = vrot.slane %v3182, %v3206
        %v3209 = vadd.f32 %v3202, %v3207
        %v3210 = vpack.c.bf16 %v3209, %v3209
        %s3211 = scalar_lea.vmem %s10, 16
        %v3212 = vld [vmem:[%s3211] sm:$0xf]
        %v3213 = vld [vmem:[%s3211 + $0x4] sm:$0xf]
        %v3214 = vld [vmem:[%s3211 + $0x8] sm:$0xf]
        %v3215 = vld [vmem:[%s3211 + $0xc] sm:$0xf]
        %s3216 = scalar_lea.vmem %s11, 1
        %v3217 = vld [vmem:[%s3216] sm:$0x1]
        %v3219 = vlaneseq
        %v3220 = vshrl.u32 %v3219, 7
        %v3221 = vsub.s32 0, %v3220
        %v3222 = vrot.slane %v3217, %v3221
        %v3228 = vunpack.c.l.b16 %v3212
        %v3229 = vunpack.c.l.b16 %v3213
        %v3230 = vunpack.c.l.b16 %v3214
        %v3231 = vunpack.c.l.b16 %v3215
        %v3232 = vpack.c.b16 %v3229, %v3228
        %v3233 = vpack.c.b16 %v3231, %v3230
        %v3237 = vsel %vm588, %v3210, 0
        %3239 = vmatprep.subr.bf16.mxu0 0
        %3240 = vmatpush1.bf16.msra.mxu0 %v3232
        %3241 = vmatprep.subr.bf16.mxu0 0
        %3242 = vmatpush1.bf16.msra.mxu0 %v3233
        %3243 = vmatprep.subr.bf16.mxu0 0
        %3244 = vmatpush1.bf16.msra.mxu0 0
        %3245 = vmatprep.subr.bf16.mxu0 0
        %3246 = vmatpush1.bf16.msra.mxu0 0
        %3247 = vmatprep.subr.bf16.mxu0 0
        %3248 = vmatpush1.bf16.msra.mxu0 0
        %3249 = vmatprep.subr.bf16.mxu0 0
        %3250 = vmatpush1.bf16.msra.mxu0 0
        %3251 = vmatprep.subr.bf16.mxu0 0
        %3252 = vmatpush1.bf16.msra.mxu0 0
        %3253 = vmatprep.subr.bf16.mxu0 0
        %3254 = vmatpush1.bf16.msra.mxu0 0
        %3255 = vmatprep.subr.bf16.mxu0 0
        %3256 = vmatpush1.bf16.msra.mxu0 0
        %3257 = vmatprep.subr.bf16.mxu0 0
        %3258 = vmatpush1.bf16.msra.mxu0 0
        %3259 = vmatprep.subr.bf16.mxu0 0
        %3260 = vmatpush1.bf16.msra.mxu0 0
        %3261 = vmatprep.subr.bf16.mxu0 0
        %3262 = vmatpush1.bf16.msra.mxu0 0
        %3263 = vmatprep.subr.bf16.mxu0 0
        %3264 = vmatpush1.bf16.msra.mxu0 0
        %3265 = vmatprep.subr.bf16.mxu0 0
        %3266 = vmatpush1.bf16.msra.mxu0 0
        %3267 = vmatprep.subr.bf16.mxu0 0
        %3268 = vmatpush1.bf16.msra.mxu0 0
        %3269 = vmatprep.subr.bf16.mxu0 0
        %3270 = vmatpush1.bf16.msra.mxu0 0
        %3271 = vmatprep.mubr.bf16.mxu0 0
        %3272 = vmatmul.mubr.bf16.gmra.mrb[0].mxu0 %v3237
        %v3273 = vpop.f32.mrb[0].mxu0
        %v3274 = vadd.f32 %v3222, %v3273
        %v3275 = vpop.f32.mrb[0].mxu0
        %v3276 = vpop.f32.mrb[0].mxu0
        %v3277 = vpop.f32.mrb[0].mxu0
        %3278 = vdwg.mxu0
        %v3279 = vmul.f32 %v3274, %v3274
        %v3280 = vmul.f32 %v3274, %v3279
        %v3281 = vmul.f32 %v3280, 0.044715
        %v3282 = vadd.f32 %v3274, %v3281
        %v3283 = vmul.f32 %v3282, 0.7978846
        %v3284 = vtanh.pop %v3283
        %v3285 = vadd.f32 %v3284, 1.0
        %v3286 = vmul.f32 %v3285, 0.5
        %v3287 = vmul.f32 %v3274, %v3286
        %v3288 = vpack.c.bf16 %v3287, %v3287
        %s3289 = scalar_lea.vmem %s12, 32
        %v3290 = vld [vmem:[%s3289] sm:$0xf]
        %v3291 = vld [vmem:[%s3289 + $0x4] sm:$0xf]
        %v3292 = vld [vmem:[%s3289 + $0x8] sm:$0xf]
        %v3293 = vld [vmem:[%s3289 + $0xc] sm:$0xf]
        %v3294 = vld [vmem:[%s3289 + $0x10] sm:$0xf]
        %v3295 = vld [vmem:[%s3289 + $0x14] sm:$0xf]
        %v3296 = vld [vmem:[%s3289 + $0x18] sm:$0xf]
        %v3297 = vld [vmem:[%s3289 + $0x1c] sm:$0xf]
        %s3298 = scalar_lea.vmem %s13, 1
        %v3299 = vld [vmem:[%s3298] sm:$0x1]
        %v3301 = vlaneseq
        %v3302 = vshrl.u32 %v3301, 7
        %v3303 = vsub.s32 0, %v3302
        %v3304 = vrot.slane %v3299, %v3303
        %v3314 = vunpack.c.l.b16 %v3290
        %v3315 = vunpack.c.l.b16 %v3291
        %v3316 = vunpack.c.l.b16 %v3292
        %v3317 = vunpack.c.l.b16 %v3293
        %v3318 = vunpack.c.l.b16 %v3294
        %v3319 = vunpack.c.l.b16 %v3295
        %v3320 = vunpack.c.l.b16 %v3296
        %v3321 = vunpack.c.l.b16 %v3297
        %v3322 = vpack.c.b16 %v3315, %v3314
        %v3323 = vpack.c.b16 %v3317, %v3316
        %v3324 = vpack.c.b16 %v3319, %v3318
        %v3325 = vpack.c.b16 %v3321, %v3320
        %v3331 = vsel %vm1937, %v3288, 0
        %3333 = vmatprep.subr.bf16.mxu0 0
        %3334 = vmatpush1.bf16.msra.mxu0 %v3322
        %3335 = vmatprep.subr.bf16.mxu0 0
        %3336 = vmatpush1.bf16.msra.mxu0 %v3323
        %3337 = vmatprep.subr.bf16.mxu0 0
        %3338 = vmatpush1.bf16.msra.mxu0 %v3324
        %3339 = vmatprep.subr.bf16.mxu0 0
        %3340 = vmatpush1.bf16.msra.mxu0 %v3325
        %3341 = vmatprep.subr.bf16.mxu0 0
        %3342 = vmatpush1.bf16.msra.mxu0 0
        %3343 = vmatprep.subr.bf16.mxu0 0
        %3344 = vmatpush1.bf16.msra.mxu0 0
        %3345 = vmatprep.subr.bf16.mxu0 0
        %3346 = vmatpush1.bf16.msra.mxu0 0
        %3347 = vmatprep.subr.bf16.mxu0 0
        %3348 = vmatpush1.bf16.msra.mxu0 0
        %3349 = vmatprep.subr.bf16.mxu0 0
        %3350 = vmatpush1.bf16.msra.mxu0 0
        %3351 = vmatprep.subr.bf16.mxu0 0
        %3352 = vmatpush1.bf16.msra.mxu0 0
        %3353 = vmatprep.subr.bf16.mxu0 0
        %3354 = vmatpush1.bf16.msra.mxu0 0
        %3355 = vmatprep.subr.bf16.mxu0 0
        %3356 = vmatpush1.bf16.msra.mxu0 0
        %3357 = vmatprep.subr.bf16.mxu0 0
        %3358 = vmatpush1.bf16.msra.mxu0 0
        %3359 = vmatprep.subr.bf16.mxu0 0
        %3360 = vmatpush1.bf16.msra.mxu0 0
        %3361 = vmatprep.subr.bf16.mxu0 0
        %3362 = vmatpush1.bf16.msra.mxu0 0
        %3363 = vmatprep.subr.bf16.mxu0 0
        %3364 = vmatpush1.bf16.msra.mxu0 0
        %3365 = vmatprep.mubr.bf16.mxu0 0
        %3366 = vmatmul.mubr.bf16.gmra.mrb[0].mxu0 %v3331
        %v3367 = vpop.f32.mrb[0].mxu0
        %v3368 = vadd.f32 %v3304, %v3367
        %v3369 = vpop.f32.mrb[0].mxu0
        %v3370 = vpop.f32.mrb[0].mxu0
        %v3371 = vpop.f32.mrb[0].mxu0
        %3372 = vdwg.mxu0
        %v3373 = vadd.f32 %v3368, %v3209
        %s3374 = scalar_lea.vmem %s14, 1
        %v3375 = vld [vmem:[%s3374] sm:$0x1]
        %s3376 = scalar_lea.vmem %s15, 1
        %v3377 = vld [vmem:[%s3376] sm:$0x1]
        %v3378 = vsel %vm588, %v3373, 0.0
        %3379 = vadd.xlane.f32.xlu0 %v3378
        %v3380 = vpop.xlane.xlu0 %3379
        %v3381 = vmul.f32 %v3380, %v592
        %v3382 = vsub.f32 %v3373, %v3381
        %v3383 = vmul.f32 %v3382, %v3382
        %v3384 = vsel %vm588, %v3383, 0.0
        %3385 = vadd.xlane.f32.xlu0 %v3384
        %v3386 = vpop.xlane.xlu0 %3385
        %v3387 = vmul.f32 %v3386, %v592
        %v3388 = vadd.f32 %v3387, 1e-12
        %v3389 = vrsqrt.pop %v3388
        %v3390 = vmul.f32 %v3382, %v3389
        %v3392 = vlaneseq
        %v3393 = vshrl.u32 %v3392, 7
        %v3394 = vsub.s32 0, %v3393
        %v3395 = vrot.slane %v3375, %v3394
        %v3397 = vmul.f32 %v3390, %v3395
        %v3399 = vlaneseq
        %v3400 = vshrl.u32 %v3399, 7
        %v3401 = vsub.s32 0, %v3400
        %v3402 = vrot.slane %v3377, %v3401
        %v3404 = vadd.f32 %v3397, %v3402
        %v3405 = vpack.c.bf16 %v3404, %v3404
        %v3406 = vld [vmem:[%s16] sm:$0xf]
        %v3407 = vld [vmem:[%s16 + $0x4] sm:$0xf]
        %v3408 = vld [vmem:[%s16 + $0x8] sm:$0xf]
        %v3409 = vld [vmem:[%s16 + $0xc] sm:$0xf]
        %v3410 = vld [vmem:[%s17] sm:$0x1]
        %v3415 = vunpack.c.l.b16 %v3406
        %v3416 = vunpack.c.l.b16 %v3407
        %v3417 = vunpack.c.l.b16 %v3408
        %v3418 = vunpack.c.l.b16 %v3409
        %v3419 = vpack.c.b16 %v3416, %v3415
        %v3420 = vpack.c.b16 %v3418, %v3417
        %v3424 = vsel %vm588, %v3405, 0
        %3426 = vmatprep.subr.bf16.mxu0 0
        %3427 = vmatpush1.bf16.msra.mxu0 %v3419
        %3428 = vmatprep.subr.bf16.mxu0 0
        %3429 = vmatpush1.bf16.msra.mxu0 %v3420
        %3430 = vmatprep.subr.bf16.mxu0 0
        %3431 = vmatpush1.bf16.msra.mxu0 0
        %3432 = vmatprep.subr.bf16.mxu0 0
        %3433 = vmatpush1.bf16.msra.mxu0 0
        %3434 = vmatprep.subr.bf16.mxu0 0
        %3435 = vmatpush1.bf16.msra.mxu0 0
        %3436 = vmatprep.subr.bf16.mxu0 0
        %3437 = vmatpush1.bf16.msra.mxu0 0
        %3438 = vmatprep.subr.bf16.mxu0 0
        %3439 = vmatpush1.bf16.msra.mxu0 0
        %3440 = vmatprep.subr.bf16.mxu0 0
        %3441 = vmatpush1.bf16.msra.mxu0 0
        %3442 = vmatprep.subr.bf16.mxu0 0
        %3443 = vmatpush1.bf16.msra.mxu0 0
        %3444 = vmatprep.subr.bf16.mxu0 0
        %3445 = vmatpush1.bf16.msra.mxu0 0
        %3446 = vmatprep.subr.bf16.mxu0 0
        %3447 = vmatpush1.bf16.msra.mxu0 0
        %3448 = vmatprep.subr.bf16.mxu0 0
        %3449 = vmatpush1.bf16.msra.mxu0 0
        %3450 = vmatprep.subr.bf16.mxu0 0
        %3451 = vmatpush1.bf16.msra.mxu0 0
        %3452 = vmatprep.subr.bf16.mxu0 0
        %3453 = vmatpush1.bf16.msra.mxu0 0
        %3454 = vmatprep.subr.bf16.mxu0 0
        %3455 = vmatpush1.bf16.msra.mxu0 0
        %3456 = vmatprep.subr.bf16.mxu0 0
        %3457 = vmatpush1.bf16.msra.mxu0 0
        %3458 = vmatprep.mubr.bf16.mxu0 0
        %3459 = vmatmul.mubr.bf16.gmra.mrb[0].mxu0 %v3424
        %v3460 = vpop.f32.mrb[0].mxu0
        %v3461 = vadd.f32 %v3410, %v3460
        %v3462 = vpop.f32.mrb[0].mxu0
        %v3463 = vpop.f32.mrb[0].mxu0
        %v3464 = vpop.f32.mrb[0].mxu0
        %3465 = vdwg.mxu0
        %3466 = vst [vmem:[%s576] sm:$0x1] %v3461
        %s3467 = sand.u32 %s428, 1
        %s3468 = scalar_lea.sflag [#allocation3], %s3467
        %s3469 = sand.u32 %s428, 1
        %s3470 = scalar_lea.vmem [#allocation2], %s3469
        // Predicated region
        $region93: #{topic_detection_forward.1} parent=91 // pred_check
          %p3471 = pneg %p438
        $region94: #{topic_detection_forward.1} parent=91 // pred_check_branch
          %3473 = sbr.rel (%p3471) target = $region96
        $region95: #{topic_detection_forward.1} parent=91 // pred_region
          %s3475 = ssub.s32 16, 16
          %3476 = vsyncadd %s3468, %s3475
          %s3477 = smul.addr %s32, 16
          %s3478 = scalar_lea.hbm %s18, %s3477
          %s3480 = sshll.u32 %s3470, 4
          %s3481 = int_to_ptr.vmem [resolvable:$true] %s3480
          %3483 = dma.vmem_to_hbm [thread:$0]  %s3481, 16, %s3478, %s3468
        $region96: #{topic_detection_forward.1} parent=91 // pred_fallthru
          _
      $region92: #{topic_detection_forward.1} parent=5 // pred_fallthru
        _
      %p3484 = scmp.le.s32.totalorder 2, %s27
      // Predicated region
      $region97: #{topic_detection_forward.1} parent=5 // pred_check
        %p3485 = pneg %p3484
      $region98: #{topic_detection_forward.1} parent=5 // pred_check_branch
        %3487 = sbr.rel (%p3485) target = $region100
      $region99: #{topic_detection_forward.1} parent=5 // pred_region
        %s3488 = ssub.s32 %s27, 2
        // Predicated region
        $region101: #{topic_detection_forward.1} parent=99 // pred_check
          %p3489 = pneg %p444
        $region102: #{topic_detection_forward.1} parent=99 // pred_check_branch
          %3491 = sbr.rel (%p3489) target = $region104
        $region103: #{topic_detection_forward.1} parent=99 // pred_region
          %s3492 = sand.u32 %s429, 1
          %s3493 = scalar_lea.sflag [#allocation3], %s3492
          %s3494 = sand.u32 %s429, 1
          %s3495 = scalar_lea.vmem [#allocation2], %s3494
          %3496 = dma.done %s3493, 16
        $region104: #{topic_detection_forward.1} parent=99 // pred_fallthru
          _
      $region100: #{topic_detection_forward.1} parent=5 // pred_fallthru
        _
    $region6: #{topic_detection_forward.1} parent=1 // loop_footer
      %s31 = sadd.s32 1, %s27
    $region7: #{topic_detection_forward.1} parent=1 // loop_footer_branch
      %26 = sbr.rel target = $region3
    $region8: #{topic_detection_forward.1} parent=1 // loop_exit
      _
    %3497 = vsyncpa [#allocation3], 1
    %s3498 = scalar_lea.sflag [#allocation3], 1
    %3499 = vsyncpa %s3498, 1

</llo_original>
